<compile_context>
chip_gen: v5e
topology: v5e:2x2
jax: 0.10.0
libtpu: 0.0.40
codegen_flags: <defaults>
</compile_context>

<pallas_src>
import jax
import jax.numpy as jnp
from jax.experimental import pallas as pl
from jax.experimental.pallas import tpu as pltpu


# ----------------------------------------------------------------------------
# Pallas kernel: fused (row-tile) matmul + bias + ReLU
# ----------------------------------------------------------------------------
def conv_mm_kernel(x_ref, w_ref, b_ref, o_ref):
    """x_ref: (tn, K) bf16 im2col patches, w_ref: (K, Cout) bf16,
    b_ref: (1, Cout) f32, o_ref: (tn, Cout).  o = relu(x @ w + b)."""
    acc = jnp.dot(x_ref[...], w_ref[...], preferred_element_type=jnp.float32)
    acc = jnp.maximum(acc + b_ref[...], 0.0)
    o_ref[...] = acc.astype(o_ref.dtype)


# ----------------------------------------------------------------------------
# Wrappers
# ----------------------------------------------------------------------------
def _round_up(x, m):
    return ((x + m - 1) // m) * m


def _pick_row_tile(n):
    """Row tile: large enough to amortize per-step overhead, >=2 grid steps
    when possible (megacore on v7x), always a multiple of 128."""
    if n >= 16384:
        return 1024
    if n >= 4096:
        return 512
    if n >= 256:
        return 256
    return _round_up(max(n, 8), 128)


def _matmul_bias_relu(xs, w_mat, bias, out_dtype):
    """xs: (N, K) bf16, w_mat: (K, Cout) bf16, bias: (Cout,) -> (N, Cout)."""
    n, k = xs.shape
    cout = w_mat.shape[1]

    tn = _pick_row_tile(n)
    n_pad = _round_up(n, tn)
    if n_pad != n:
        xs = jnp.pad(xs, ((0, n_pad - n), (0, 0)))
    b2 = bias.reshape(1, cout).astype(jnp.float32)

    out = pl.pallas_call(
        conv_mm_kernel,
        out_shape=jax.ShapeDtypeStruct((n_pad, cout), out_dtype),
        grid=(n_pad // tn,),
        in_specs=[
            pl.BlockSpec((tn, k), lambda i: (i, 0)),
            pl.BlockSpec((k, cout), lambda i: (0, 0)),
            pl.BlockSpec((1, cout), lambda i: (0, 0)),
        ],
        out_specs=pl.BlockSpec((tn, cout), lambda i: (i, 0)),
        compiler_params=pltpu.CompilerParams(
            dimension_semantics=("parallel",),
            vmem_limit_bytes=32 * 1024 * 1024,
        ),
    )(xs, w_mat, b2)
    return out[:n]


def _im2col(x, k, pad):
    """x: (B, H, W, C) NHWC -> (B*Ho*Wo, k*k*C) with tap axis folded into the
    contraction dim (layout: ((kh*k + kw)*C + c))."""
    b, h, w, c = x.shape
    xp = jnp.pad(x, ((0, 0), (pad, pad), (pad, pad), (0, 0)))
    ho = h + 2 * pad - k + 1
    wo = w + 2 * pad - k + 1
    cols = []
    for kh in range(k):
        for kw in range(k):
            cols.append(xp[:, kh:kh + ho, kw:kw + wo, :])
    patches = jnp.concatenate(cols, axis=-1)             # (B, Ho, Wo, k*k*C)
    return patches.reshape(b * ho * wo, k * k * c), (b, ho, wo)


def conv3x3_relu(x_nhwc, w_pt, b_pt, *, out_dtype=jnp.bfloat16,
                 lane_pad_cout=None):
    """PyTorch-semantics Conv2d(k=3, s=1, p=1) + ReLU on an NHWC tensor.
    w_pt: (Cout, Cin, 3, 3).  If lane_pad_cout is set, Cout is zero-padded so
    the kernel's output block is lane-dense; the extra columns are dropped."""
    cout, cin, k, _ = w_pt.shape
    # (Cout, Cin, kh, kw) -> (kh*kw*Cin, Cout), matching the im2col layout.
    w_mat = jnp.transpose(w_pt, (2, 3, 1, 0)).reshape(k * k * cin, cout)
    bias = b_pt
    if lane_pad_cout is not None and cout < lane_pad_cout:
        w_mat = jnp.pad(w_mat, ((0, 0), (0, lane_pad_cout - cout)))
        bias = jnp.pad(bias, ((0, lane_pad_cout - cout),))

    xs, (b, ho, wo) = _im2col(x_nhwc.astype(jnp.bfloat16), k, pad=(k - 1) // 2)
    y = _matmul_bias_relu(xs, w_mat.astype(jnp.bfloat16), bias, out_dtype)
    y = y[:, :cout]
    return y.reshape(b, ho, wo, cout)


# ----------------------------------------------------------------------------
# Parameters (deterministic synthetic init; shapes match the nn.Module)
# ----------------------------------------------------------------------------
def init_params(key, number_f=32):
    shapes = {
        "w1": (number_f, 2, 3, 3),            "b1": (number_f,),
        "w2": (number_f, number_f, 3, 3),     "b2": (number_f,),
        "w3": (number_f, number_f, 3, 3),     "b3": (number_f,),
        "w4": (number_f, number_f, 3, 3),     "b4": (number_f,),
        "w5": (number_f, 2 * number_f, 3, 3), "b5": (number_f,),
        "w6": (number_f, 2 * number_f, 3, 3), "b6": (number_f,),
        "w7": (1, 2 * number_f, 3, 3),        "b7": (1,),
    }
    params = {}
    keys = jax.random.split(key, len(shapes))
    for (name, shp), k in zip(sorted(shapes.items()), keys):
        params[name] = 0.05 * jax.random.normal(k, shp, dtype=jnp.float32)
    return params


# ----------------------------------------------------------------------------
# Forward pass (mirrors CurveEstimation.forward)
# ----------------------------------------------------------------------------
def curve_estimation_forward(l, alpha, params):
    # l, alpha: NCHW (B, 1, H, W)
    x = jnp.concatenate([l, alpha], axis=1)                    # (B, 2, H, W)
    x = jnp.transpose(x, (0, 2, 3, 1))                         # -> NHWC

    x1 = conv3x3_relu(x,  params["w1"], params["b1"])
    x2 = conv3x3_relu(x1, params["w2"], params["b2"])
    x3 = conv3x3_relu(x2, params["w3"], params["b3"])
    x4 = conv3x3_relu(x3, params["w4"], params["b4"])
    x5 = conv3x3_relu(jnp.concatenate([x3, x4], axis=-1),
                      params["w5"], params["b5"])
    x6 = conv3x3_relu(jnp.concatenate([x2, x5], axis=-1),
                      params["w6"], params["b6"])
    A = conv3x3_relu(jnp.concatenate([x1, x6], axis=-1),
                     params["w7"], params["b7"],
                     out_dtype=jnp.float32, lane_pad_cout=128)  # (B, H, W, 1)

    return jnp.transpose(A, (0, 3, 1, 2))                       # back to NCHW


# ----------------------------------------------------------------------------
# Pure-JAX reference (bf16 matmul inputs, fp32 accumulation — matches kernel)
# ----------------------------------------------------------------------------
def _conv_ref(x_nhwc, w_pt, b):
    y = jax.lax.conv_general_dilated(
        x_nhwc.astype(jnp.bfloat16),
        jnp.transpose(w_pt, (2, 3, 1, 0)).astype(jnp.bfloat16),   # HWIO
        window_strides=(1, 1), padding="SAME",
        dimension_numbers=("NHWC", "HWIO", "NHWC"),
        preferred_element_type=jnp.float32)
    return jnp.maximum(y + b.reshape(1, 1, 1, -1).astype(jnp.float32), 0.0)


def curve_estimation_ref(l, alpha, params):
    x = jnp.transpose(jnp.concatenate([l, alpha], axis=1), (0, 2, 3, 1))
    x1 = _conv_ref(x,  params["w1"], params["b1"])
    x2 = _conv_ref(x1, params["w2"], params["b2"])
    x3 = _conv_ref(x2, params["w3"], params["b3"])
    x4 = _conv_ref(x3, params["w4"], params["b4"])
    x5 = _conv_ref(jnp.concatenate([x3, x4], -1), params["w5"], params["b5"])
    x6 = _conv_ref(jnp.concatenate([x2, x5], -1), params["w6"], params["b6"])
    A = _conv_ref(jnp.concatenate([x1, x6], -1), params["w7"], params["b7"])
    return jnp.transpose(A, (0, 3, 1, 2))


# ----------------------------------------------------------------------------
if __name__ == "__main__":
    B, H, W = 2, 16, 16
    key = jax.random.PRNGKey(0)
    k_l, k_a = jax.random.split(key)
    l = jax.random.uniform(k_l, (B, 1, H, W), dtype=jnp.float32)
    alpha = jax.random.uniform(k_a, (B, 1, H, W), dtype=jnp.float32)

    params = init_params(jax.random.PRNGKey(42))

    fwd = jax.jit(curve_estimation_forward)
    out = jax.block_until_ready(fwd(l, alpha, params))

    assert out.shape == (B, 1, H, W), out.shape
    assert out.dtype == jnp.float32
    assert bool(jnp.all(jnp.isfinite(out)))

    # Correctness check against an XLA conv reference with matching precision.
    ref = jax.block_until_ready(jax.jit(curve_estimation_ref)(l, alpha, params))
    max_err = float(jnp.max(jnp.abs(out - ref)))
    assert max_err < 2e-2, f"max abs err vs reference: {max_err}"

    print("KERNEL_OK")
</pallas_src>

<mosaic_0001>
module attributes {stable_mosaic.version = 11 : i64} {
  func.func @conv_mm_kernel(%arg0: i32, %arg1: memref<256x18xbf16, #tpu.memory_space<vmem>>, %arg2: memref<18x32xbf16, #tpu.memory_space<vmem>>, %arg3: memref<1x32xf32, #tpu.memory_space<vmem>>, %arg4: memref<256x32xbf16, #tpu.memory_space<vmem>>) attributes {dimension_semantics = [#tpu.dimension_semantics<parallel>], iteration_bounds = array<i64: 2>, scalar_prefetch = 0 : i64, scratch_operands = 0 : i64, tpu.core_type = #tpu.core_type<tc>, window_params = [{transform_indices = @transform_0, window_bounds = array<i64: 256, 18>}, {pipeline_mode = #tpu.pipeline_mode<synchronous>, transform_indices = @transform_1, window_bounds = array<i64: 18, 32>}, {pipeline_mode = #tpu.pipeline_mode<synchronous>, transform_indices = @transform_2, window_bounds = array<i64: 1, 32>}, {transform_indices = @transform_3, window_bounds = array<i64: 256, 32>}]} {
    %c0 = arith.constant 0 : index
    %c0_0 = arith.constant 0 : index
    %0 = vector.load %arg1[%c0, %c0_0] : memref<256x18xbf16, #tpu.memory_space<vmem>>, vector<256x18xbf16>
    %c0_1 = arith.constant 0 : index
    %c0_2 = arith.constant 0 : index
    %1 = vector.load %arg2[%c0_1, %c0_2] : memref<18x32xbf16, #tpu.memory_space<vmem>>, vector<18x32xbf16>
    %cst = arith.constant dense<0.000000e+00> : vector<256x32xf32>
    %2 = tpu.matmul %0, %1, %cst {dimension_numbers = #tpu.dot_dimension_numbers<[1], [0], [0], [1], [0, 0, 1, 1], [], []>} : vector<256x18xbf16>, vector<18x32xbf16>, vector<256x32xf32> -> vector<256x32xf32>
    %c0_3 = arith.constant 0 : index
    %c0_4 = arith.constant 0 : index
    %3 = vector.load %arg3[%c0_3, %c0_4] : memref<1x32xf32, #tpu.memory_space<vmem>>, vector<1x32xf32>
    %4 = vector.broadcast %3 : vector<1x32xf32> to vector<256x32xf32>
    %5 = arith.addf %2, %4 : vector<256x32xf32>
    %cst_5 = arith.constant 0.000000e+00 : f32
    %6 = vector.broadcast %cst_5 : f32 to vector<256x32xf32>
    %7 = arith.maximumf %5, %6 : vector<256x32xf32>
    %8 = arith.truncf %7 : vector<256x32xf32> to vector<256x32xbf16>
    %c0_6 = arith.constant 0 : index
    %c0_7 = arith.constant 0 : index
    %9 = vector.load %arg4[%c0_6, %c0_7] : memref<256x32xbf16, #tpu.memory_space<vmem>>, vector<256x32xbf16>
    tpu.vector_store %arg4[%c0_6, %c0_7], %8 {strides = array<i32>} : memref<256x32xbf16, #tpu.memory_space<vmem>>, vector<256x32xbf16>,
    return
  }
  func.func @transform_0(%arg0: i32) -> (i32, i32) {
    %c0_i32 = arith.constant 0 : i32
    %c0_i32_0 = arith.constant 0 : i32
    return %arg0, %c0_i32 : i32, i32
  }
  func.func @transform_1(%arg0: i32) -> (i32, i32) {
    %c0_i32 = arith.constant 0 : i32
    %c0_i32_0 = arith.constant 0 : i32
    %c0_i32_1 = arith.constant 0 : i32
    return %c0_i32, %c0_i32_0 : i32, i32
  }
  func.func @transform_2(%arg0: i32) -> (i32, i32) {
    %c0_i32 = arith.constant 0 : i32
    %c0_i32_0 = arith.constant 0 : i32
    %c0_i32_1 = arith.constant 0 : i32
    return %c0_i32, %c0_i32_0 : i32, i32
  }
  func.func @transform_3(%arg0: i32) -> (i32, i32) {
    %c0_i32 = arith.constant 0 : i32
    %c0_i32_0 = arith.constant 0 : i32
    return %arg0, %c0_i32 : i32, i32
  }
}

module attributes {stable_mosaic.version = 11 : i64} {
  func.func @conv_mm_kernel(%arg0: i32, %arg1: memref<256x288xbf16, #tpu.memory_space<vmem>>, %arg2: memref<288x32xbf16, #tpu.memory_space<vmem>>, %arg3: memref<1x32xf32, #tpu.memory_space<vmem>>, %arg4: memref<256x32xbf16, #tpu.memory_space<vmem>>) attributes {dimension_semantics = [#tpu.dimension_semantics<parallel>], iteration_bounds = array<i64: 2>, scalar_prefetch = 0 : i64, scratch_operands = 0 : i64, tpu.core_type = #tpu.core_type<tc>, window_params = [{transform_indices = @transform_0, window_bounds = array<i64: 256, 288>}, {pipeline_mode = #tpu.pipeline_mode<synchronous>, transform_indices = @transform_1, window_bounds = array<i64: 288, 32>}, {pipeline_mode = #tpu.pipeline_mode<synchronous>, transform_indices = @transform_2, window_bounds = array<i64: 1, 32>}, {transform_indices = @transform_3, window_bounds = array<i64: 256, 32>}]} {
    %c0 = arith.constant 0 : index
    %c0_0 = arith.constant 0 : index
    %0 = vector.load %arg1[%c0, %c0_0] : memref<256x288xbf16, #tpu.memory_space<vmem>>, vector<256x288xbf16>
    %c0_1 = arith.constant 0 : index
    %c0_2 = arith.constant 0 : index
    %1 = vector.load %arg2[%c0_1, %c0_2] : memref<288x32xbf16, #tpu.memory_space<vmem>>, vector<288x32xbf16>
    %cst = arith.constant dense<0.000000e+00> : vector<256x32xf32>
    %2 = tpu.matmul %0, %1, %cst {dimension_numbers = #tpu.dot_dimension_numbers<[1], [0], [0], [1], [0, 0, 1, 1], [], []>} : vector<256x288xbf16>, vector<288x32xbf16>, vector<256x32xf32> -> vector<256x32xf32>
    %c0_3 = arith.constant 0 : index
    %c0_4 = arith.constant 0 : index
    %3 = vector.load %arg3[%c0_3, %c0_4] : memref<1x32xf32, #tpu.memory_space<vmem>>, vector<1x32xf32>
    %4 = vector.broadcast %3 : vector<1x32xf32> to vector<256x32xf32>
    %5 = arith.addf %2, %4 : vector<256x32xf32>
    %cst_5 = arith.constant 0.000000e+00 : f32
    %6 = vector.broadcast %cst_5 : f32 to vector<256x32xf32>
    %7 = arith.maximumf %5, %6 : vector<256x32xf32>
    %8 = arith.truncf %7 : vector<256x32xf32> to vector<256x32xbf16>
    %c0_6 = arith.constant 0 : index
    %c0_7 = arith.constant 0 : index
    %9 = vector.load %arg4[%c0_6, %c0_7] : memref<256x32xbf16, #tpu.memory_space<vmem>>, vector<256x32xbf16>
    tpu.vector_store %arg4[%c0_6, %c0_7], %8 {strides = array<i32>} : memref<256x32xbf16, #tpu.memory_space<vmem>>, vector<256x32xbf16>,
    return
  }
  func.func @transform_0(%arg0: i32) -> (i32, i32) {
    %c0_i32 = arith.constant 0 : i32
    %c0_i32_0 = arith.constant 0 : i32
    return %arg0, %c0_i32 : i32, i32
  }
  func.func @transform_1(%arg0: i32) -> (i32, i32) {
    %c0_i32 = arith.constant 0 : i32
    %c0_i32_0 = arith.constant 0 : i32
    %c0_i32_1 = arith.constant 0 : i32
    return %c0_i32, %c0_i32_0 : i32, i32
  }
  func.func @transform_2(%arg0: i32) -> (i32, i32) {
    %c0_i32 = arith.constant 0 : i32
    %c0_i32_0 = arith.constant 0 : i32
    %c0_i32_1 = arith.constant 0 : i32
    return %c0_i32, %c0_i32_0 : i32, i32
  }
  func.func @transform_3(%arg0: i32) -> (i32, i32) {
    %c0_i32 = arith.constant 0 : i32
    %c0_i32_0 = arith.constant 0 : i32
    return %arg0, %c0_i32 : i32, i32
  }
}

module attributes {stable_mosaic.version = 11 : i64} {
  func.func @conv_mm_kernel(%arg0: i32, %arg1: memref<256x576xbf16, #tpu.memory_space<vmem>>, %arg2: memref<576x32xbf16, #tpu.memory_space<vmem>>, %arg3: memref<1x32xf32, #tpu.memory_space<vmem>>, %arg4: memref<256x32xbf16, #tpu.memory_space<vmem>>) attributes {dimension_semantics = [#tpu.dimension_semantics<parallel>], iteration_bounds = array<i64: 2>, scalar_prefetch = 0 : i64, scratch_operands = 0 : i64, tpu.core_type = #tpu.core_type<tc>, window_params = [{transform_indices = @transform_0, window_bounds = array<i64: 256, 576>}, {pipeline_mode = #tpu.pipeline_mode<synchronous>, transform_indices = @transform_1, window_bounds = array<i64: 576, 32>}, {pipeline_mode = #tpu.pipeline_mode<synchronous>, transform_indices = @transform_2, window_bounds = array<i64: 1, 32>}, {transform_indices = @transform_3, window_bounds = array<i64: 256, 32>}]} {
    %c0 = arith.constant 0 : index
    %c0_0 = arith.constant 0 : index
    %0 = vector.load %arg1[%c0, %c0_0] : memref<256x576xbf16, #tpu.memory_space<vmem>>, vector<256x576xbf16>
    %c0_1 = arith.constant 0 : index
    %c0_2 = arith.constant 0 : index
    %1 = vector.load %arg2[%c0_1, %c0_2] : memref<576x32xbf16, #tpu.memory_space<vmem>>, vector<576x32xbf16>
    %cst = arith.constant dense<0.000000e+00> : vector<256x32xf32>
    %2 = tpu.matmul %0, %1, %cst {dimension_numbers = #tpu.dot_dimension_numbers<[1], [0], [0], [1], [0, 0, 1, 1], [], []>} : vector<256x576xbf16>, vector<576x32xbf16>, vector<256x32xf32> -> vector<256x32xf32>
    %c0_3 = arith.constant 0 : index
    %c0_4 = arith.constant 0 : index
    %3 = vector.load %arg3[%c0_3, %c0_4] : memref<1x32xf32, #tpu.memory_space<vmem>>, vector<1x32xf32>
    %4 = vector.broadcast %3 : vector<1x32xf32> to vector<256x32xf32>
    %5 = arith.addf %2, %4 : vector<256x32xf32>
    %cst_5 = arith.constant 0.000000e+00 : f32
    %6 = vector.broadcast %cst_5 : f32 to vector<256x32xf32>
    %7 = arith.maximumf %5, %6 : vector<256x32xf32>
    %8 = arith.truncf %7 : vector<256x32xf32> to vector<256x32xbf16>
    %c0_6 = arith.constant 0 : index
    %c0_7 = arith.constant 0 : index
    %9 = vector.load %arg4[%c0_6, %c0_7] : memref<256x32xbf16, #tpu.memory_space<vmem>>, vector<256x32xbf16>
    tpu.vector_store %arg4[%c0_6, %c0_7], %8 {strides = array<i32>} : memref<256x32xbf16, #tpu.memory_space<vmem>>, vector<256x32xbf16>,
    return
  }
  func.func @transform_0(%arg0: i32) -> (i32, i32) {
    %c0_i32 = arith.constant 0 : i32
    %c0_i32_0 = arith.constant 0 : i32
    return %arg0, %c0_i32 : i32, i32
  }
  func.func @transform_1(%arg0: i32) -> (i32, i32) {
    %c0_i32 = arith.constant 0 : i32
    %c0_i32_0 = arith.constant 0 : i32
    %c0_i32_1 = arith.constant 0 : i32
    return %c0_i32, %c0_i32_0 : i32, i32
  }
  func.func @transform_2(%arg0: i32) -> (i32, i32) {
    %c0_i32 = arith.constant 0 : i32
    %c0_i32_0 = arith.constant 0 : i32
    %c0_i32_1 = arith.constant 0 : i32
    return %c0_i32, %c0_i32_0 : i32, i32
  }
  func.func @transform_3(%arg0: i32) -> (i32, i32) {
    %c0_i32 = arith.constant 0 : i32
    %c0_i32_0 = arith.constant 0 : i32
    return %arg0, %c0_i32 : i32, i32
  }
}

module attributes {stable_mosaic.version = 11 : i64} {
  func.func @conv_mm_kernel(%arg0: i32, %arg1: memref<256x576xbf16, #tpu.memory_space<vmem>>, %arg2: memref<576x128xbf16, #tpu.memory_space<vmem>>, %arg3: memref<1x128xf32, #tpu.memory_space<vmem>>, %arg4: memref<256x128xf32, #tpu.memory_space<vmem>>) attributes {dimension_semantics = [#tpu.dimension_semantics<parallel>], iteration_bounds = array<i64: 2>, scalar_prefetch = 0 : i64, scratch_operands = 0 : i64, tpu.core_type = #tpu.core_type<tc>, window_params = [{transform_indices = @transform_0, window_bounds = array<i64: 256, 576>}, {pipeline_mode = #tpu.pipeline_mode<synchronous>, transform_indices = @transform_1, window_bounds = array<i64: 576, 128>}, {pipeline_mode = #tpu.pipeline_mode<synchronous>, transform_indices = @transform_2, window_bounds = array<i64: 1, 128>}, {transform_indices = @transform_3, window_bounds = array<i64: 256, 128>}]} {
    %c0 = arith.constant 0 : index
    %c0_0 = arith.constant 0 : index
    %0 = vector.load %arg1[%c0, %c0_0] : memref<256x576xbf16, #tpu.memory_space<vmem>>, vector<256x576xbf16>
    %c0_1 = arith.constant 0 : index
    %c0_2 = arith.constant 0 : index
    %1 = vector.load %arg2[%c0_1, %c0_2] : memref<576x128xbf16, #tpu.memory_space<vmem>>, vector<576x128xbf16>
    %cst = arith.constant dense<0.000000e+00> : vector<256x128xf32>
    %2 = tpu.matmul %0, %1, %cst {dimension_numbers = #tpu.dot_dimension_numbers<[1], [0], [0], [1], [0, 0, 1, 1], [], []>} : vector<256x576xbf16>, vector<576x128xbf16>, vector<256x128xf32> -> vector<256x128xf32>
    %c0_3 = arith.constant 0 : index
    %c0_4 = arith.constant 0 : index
    %3 = vector.load %arg3[%c0_3, %c0_4] : memref<1x128xf32, #tpu.memory_space<vmem>>, vector<1x128xf32>
    %4 = vector.broadcast %3 : vector<1x128xf32> to vector<256x128xf32>
    %5 = arith.addf %2, %4 : vector<256x128xf32>
    %cst_5 = arith.constant 0.000000e+00 : f32
    %6 = vector.broadcast %cst_5 : f32 to vector<256x128xf32>
    %7 = arith.maximumf %5, %6 : vector<256x128xf32>
    %c0_6 = arith.constant 0 : index
    %c0_7 = arith.constant 0 : index
    %8 = vector.load %arg4[%c0_6, %c0_7] : memref<256x128xf32, #tpu.memory_space<vmem>>, vector<256x128xf32>
    tpu.vector_store %arg4[%c0_6, %c0_7], %7 {strides = array<i32>} : memref<256x128xf32, #tpu.memory_space<vmem>>, vector<256x128xf32>,
    return
  }
  func.func @transform_0(%arg0: i32) -> (i32, i32) {
    %c0_i32 = arith.constant 0 : i32
    %c0_i32_0 = arith.constant 0 : i32
    return %arg0, %c0_i32 : i32, i32
  }
  func.func @transform_1(%arg0: i32) -> (i32, i32) {
    %c0_i32 = arith.constant 0 : i32
    %c0_i32_0 = arith.constant 0 : i32
    %c0_i32_1 = arith.constant 0 : i32
    return %c0_i32, %c0_i32_0 : i32, i32
  }
  func.func @transform_2(%arg0: i32) -> (i32, i32) {
    %c0_i32 = arith.constant 0 : i32
    %c0_i32_0 = arith.constant 0 : i32
    %c0_i32_1 = arith.constant 0 : i32
    return %c0_i32, %c0_i32_0 : i32, i32
  }
  func.func @transform_3(%arg0: i32) -> (i32, i32) {
    %c0_i32 = arith.constant 0 : i32
    %c0_i32_0 = arith.constant 0 : i32
    return %arg0, %c0_i32 : i32, i32
  }
}

</mosaic_0001>

<llo_original>
// kernel: curve_estimation_forward.7
$region0: #{curve_estimation_forward.7}
  #allocation0 [shape = 'u32[]', space=smem, size = 0x4, offset = 0x4, fixed_abs, tag = 'smem constant byte address 0x4 - core index']
  #allocation1 [shape = 'u32[72,128]{1,0:T(1,128)}', space=vmem, size = 0x9000, scoped, tag = 'internal scratch']
  %s0 = inlined_call_operand.vmem [shape: bf16[512,18], index: 0, kind: input, shape index: {}]
  %s1 = inlined_call_operand.vmem [shape: bf16[18,32], index: 1, kind: input, shape index: {}]
  %s2 = inlined_call_operand.vmem [shape: f32[1,32], index: 2, kind: input, shape index: {}]
  %s3 = inlined_call_operand.vmem [shape: bf16[512,32], index: 3, kind: output, shape index: {}]
  %s4 = sld [smem:[#allocation0]]
  $region45: #{curve_estimation_forward.7} parent=0
    _
  %s6 = ssub.s32 1, %s4
  %s7 = scalar_select 0, %s6, %s4
  loop: start=0, step=1, limit=4
  $region2: #{curve_estimation_forward.7} parent=0 // loop_pre_header
    _
  $region3: #{curve_estimation_forward.7} parent=0 // loop_header
    %s9 = sphi 0, %s13
    %p10 = scmp.ge.s32.totalorder %s9, 4
    %s19 = sphi 0, %s21
    %s22 = sphi 0, %s19
    %s23 = sphi 0, %s22
    %s39 = sphi 0, %s23
    %s43 = sphi 0, %s43
    %s45 = sphi 0, %s43
    %s46 = sphi 0, %s45
    %s60 = sphi 0, %s46
    %s64 = sphi 0, %s64
    %s66 = sphi 0, %s64
    %s67 = sphi 0, %s66
    %s81 = sphi 0, %s67
    %s87 = sphi 0, %s89
    %s90 = sphi 0, %s87
    %s91 = sphi 0, %s90
    %s107 = sphi 0, %s91
  $region4: #{curve_estimation_forward.7} parent=0 // loop_header_branch
    %12 = sbr.rel (%p10) target = $region8
  $region5: #{curve_estimation_forward.7} parent=0 // loop_body
    %s14 = ssub.s32 %s9, 1
    %s15 = ssub.s32 %s9, 2
    %s16 = sadd.s32 %s9, 1
    %s17 = ssub.s32 %s9, %s16
    %p18 = scmp.eq.s32.totalorder %s17, 0
    %s20 = sadd.s32 %s19, 1
    %s21 = scalar_select %p18, %s19, %s20
    %p24 = pneg %p18
    %p25 = scmp.eq.s32.totalorder %s9, 1
    %p26 = por %p24, %p25
    %p27 = scmp.ne.s32.totalorder %s19, %s22
    %p28 = scmp.eq.s32.totalorder %s9, 0
    %p29 = por %p27, %p28
    %p30 = scmp.ne.s32.totalorder %s19, %s22
    %p31 = scmp.eq.s32.totalorder %s14, 1
    %p32 = por %p30, %p31
    %p33 = scmp.ne.s32.totalorder %s22, %s23
    %p34 = scmp.eq.s32.totalorder %s14, 0
    %p35 = por %p33, %p34
    %p36 = scmp.ne.s32.totalorder %s22, %s23
    %p37 = scmp.eq.s32.totalorder %s15, 1
    %p38 = por %p36, %p37
    %p40 = scmp.ne.s32.totalorder %s23, %s39
    %p41 = scmp.eq.s32.totalorder %s15, 0
    %p42 = por %p40, %p41
    %s44 = sadd.s32 %s43, 1
    %p47 = scmp.eq.s32.totalorder %s9, 1
    %p48 = scmp.ne.s32.totalorder %s43, %s45
    %p49 = scmp.eq.s32.totalorder %s9, 0
    %p50 = por %p48, %p49
    %p51 = scmp.ne.s32.totalorder %s43, %s45
    %p52 = scmp.eq.s32.totalorder %s14, 1
    %p53 = por %p51, %p52
    %p54 = scmp.ne.s32.totalorder %s45, %s46
    %p55 = scmp.eq.s32.totalorder %s14, 0
    %p56 = por %p54, %p55
    %p57 = scmp.ne.s32.totalorder %s45, %s46
    %p58 = scmp.eq.s32.totalorder %s15, 1
    %p59 = por %p57, %p58
    %p61 = scmp.ne.s32.totalorder %s46, %s60
    %p62 = scmp.eq.s32.totalorder %s15, 0
    %p63 = por %p61, %p62
    %s65 = sadd.s32 %s64, 1
    %p68 = scmp.eq.s32.totalorder %s9, 1
    %p69 = scmp.ne.s32.totalorder %s64, %s66
    %p70 = scmp.eq.s32.totalorder %s9, 0
    %p71 = por %p69, %p70
    %p72 = scmp.ne.s32.totalorder %s64, %s66
    %p73 = scmp.eq.s32.totalorder %s14, 1
    %p74 = por %p72, %p73
    %p75 = scmp.ne.s32.totalorder %s66, %s67
    %p76 = scmp.eq.s32.totalorder %s14, 0
    %p77 = por %p75, %p76
    %p78 = scmp.ne.s32.totalorder %s66, %s67
    %p79 = scmp.eq.s32.totalorder %s15, 1
    %p80 = por %p78, %p79
    %p82 = scmp.ne.s32.totalorder %s67, %s81
    %p83 = scmp.eq.s32.totalorder %s15, 0
    %p84 = por %p82, %p83
    %s85 = ssub.s32 %s9, %s16
    %p86 = scmp.eq.s32.totalorder %s85, 0
    %s88 = sadd.s32 %s87, 1
    %s89 = scalar_select %p86, %s87, %s88
    %p92 = pneg %p86
    %p93 = scmp.eq.s32.totalorder %s9, 1
    %p94 = por %p92, %p93
    %p95 = scmp.ne.s32.totalorder %s87, %s90
    %p96 = scmp.eq.s32.totalorder %s9, 0
    %p97 = por %p95, %p96
    %p98 = scmp.ne.s32.totalorder %s87, %s90
    %p99 = scmp.eq.s32.totalorder %s14, 1
    %p100 = por %p98, %p99
    %p101 = scmp.ne.s32.totalorder %s90, %s91
    %p102 = scmp.eq.s32.totalorder %s14, 0
    %p103 = por %p101, %p102
    %p104 = scmp.ne.s32.totalorder %s90, %s91
    %p105 = scmp.eq.s32.totalorder %s15, 1
    %p106 = por %p104, %p105
    %p108 = scmp.ne.s32.totalorder %s91, %s107
    %p109 = scmp.eq.s32.totalorder %s15, 0
    %p110 = por %p108, %p109
    %p111 = scmp.le.s32.totalorder 1, %s9
    %p112 = scmp.lt.s32.totalorder %s9, 3
    %p113 = pnand %p111, %p112
    %p114 = pneg %p113
    // Predicated region
    $region9: #{curve_estimation_forward.7} parent=5 // pred_check
      _
    $region10: #{curve_estimation_forward.7} parent=5 // pred_check_branch
      %116 = sbr.rel (%p113) target = $region12
    $region11: #{curve_estimation_forward.7} parent=5 // pred_region
      %s117 = ssub.s32 %s9, 1
      // Predicated region
      $region13: #{curve_estimation_forward.7} parent=11 // pred_check
        %p118 = pneg %p56
      $region14: #{curve_estimation_forward.7} parent=11 // pred_check_branch
        %120 = sbr.rel (%p118) target = $region16
      $region15: #{curve_estimation_forward.7} parent=11 // pred_region
        _
      $region16: #{curve_estimation_forward.7} parent=11 // pred_fallthru
        _
      // Predicated region
      $region17: #{curve_estimation_forward.7} parent=11 // pred_check
        %p121 = pneg %p77
      $region18: #{curve_estimation_forward.7} parent=11 // pred_check_branch
        %123 = sbr.rel (%p121) target = $region20
      $region19: #{curve_estimation_forward.7} parent=11 // pred_region
        _
      $region20: #{curve_estimation_forward.7} parent=11 // pred_fallthru
        _
    $region12: #{curve_estimation_forward.7} parent=5 // pred_fallthru
      _
    %p124 = scmp.lt.s32.totalorder %s9, 2
    // Predicated region
    $region21: #{curve_estimation_forward.7} parent=5 // pred_check
      %p125 = pneg %p124
    $region22: #{curve_estimation_forward.7} parent=5 // pred_check_branch
      %127 = sbr.rel (%p125) target = $region24
    $region23: #{curve_estimation_forward.7} parent=5 // pred_region
      // Predicated region
      $region25: #{curve_estimation_forward.7} parent=23 // pred_check
        %p128 = pneg %p29
      $region26: #{curve_estimation_forward.7} parent=23 // pred_check_branch
        %130 = sbr.rel (%p128) target = $region28
      $region27: #{curve_estimation_forward.7} parent=23 // pred_region
        %s131 = smul.u32 32, %s9
        %p132 = scmp.lt.s32.totalorder %s131, 63
        %s133 = scalar_select %p132, %s131, 63
        %s134 = smul.addr %s133, 4
        %s135 = scalar_lea.vmem %s0, %s134
        %s136 = smul.u32 32, %s9
      $region28: #{curve_estimation_forward.7} parent=23 // pred_fallthru
        _
    $region24: #{curve_estimation_forward.7} parent=5 // pred_fallthru
      _
    %p137 = scmp.le.s32.totalorder 1, %s9
    %p138 = scmp.lt.s32.totalorder %s9, 3
    %p139 = pnand %p137, %p138
    %p140 = pneg %p139
    // Predicated region
    $region29: #{curve_estimation_forward.7} parent=5 // pred_check
      _
    $region30: #{curve_estimation_forward.7} parent=5 // pred_check_branch
      %142 = sbr.rel (%p139) target = $region32
    $region31: #{curve_estimation_forward.7} parent=5 // pred_region
      %s143 = ssub.s32 %s9, 1
      %s144 = smul.u32 32, %s14
      %p145 = scmp.lt.s32.totalorder %s144, 63
      %s146 = scalar_select %p145, %s144, 63
      %s147 = smul.addr %s146, 4
      %s148 = scalar_lea.vmem %s0, %s147
      %p149 = pneg %p35
      %p150 = pneg %p32
      %p151 = pneg %p56
      %p152 = pneg %p53
      %p153 = pneg %p77
      %p154 = pneg %p74
      %p155 = pneg %p103
      %p156 = pneg %p100
      %s157 = smul.u32 32, %s14
      %p158 = scmp.lt.s32.totalorder %s157, 63
      %s159 = scalar_select %p158, %s157, 63
      %s160 = smul.addr %s159, 4
      %s161 = scalar_lea.vmem %s3, %s160
      %s162 = smul.u32 32, %s14
      %p163 = scmp.lt.s32.totalorder %s162, 63
      %s164 = scalar_select %p163, %s162, 63
      %s165 = smul.addr %s164, 4
      %s166 = scalar_lea.vmem %s0, %s165
      %s167 = smul.u32 32, %s14
      %s168 = smul.u32 32, %s14
      %p169 = scmp.lt.s32.totalorder %s168, 63
      %s170 = scalar_select %p169, %s168, 63
      %s171 = smul.addr %s170, 4
      %s172 = scalar_lea.vmem %s3, %s171
      %s173 = smul.u32 32, %s14
      %v175 = vld [vmem:[%s166] sm:$0xf]
      %v176 = vld [vmem:[%s166 + $0x4] sm:$0xf]
      %v177 = vld [vmem:[%s166 + $0x8] sm:$0xf]
      %v178 = vld [vmem:[%s166 + $0xc] sm:$0xf]
      %v179 = vld [vmem:[%s166 + $0x10] sm:$0xf]
      %v180 = vld [vmem:[%s166 + $0x14] sm:$0xf]
      %v181 = vld [vmem:[%s166 + $0x18] sm:$0xf]
      %v182 = vld [vmem:[%s166 + $0x1c] sm:$0xf]
      %v183 = vld [vmem:[%s166 + $0x20] sm:$0xf]
      %v184 = vld [vmem:[%s166 + $0x24] sm:$0xf]
      %v185 = vld [vmem:[%s166 + $0x28] sm:$0xf]
      %v186 = vld [vmem:[%s166 + $0x2c] sm:$0xf]
      %v187 = vld [vmem:[%s166 + $0x30] sm:$0xf]
      %v188 = vld [vmem:[%s166 + $0x34] sm:$0xf]
      %v189 = vld [vmem:[%s166 + $0x38] sm:$0xf]
      %v190 = vld [vmem:[%s166 + $0x3c] sm:$0xf]
      %v191 = vld [vmem:[%s166 + $0x40] sm:$0xf]
      %v192 = vld [vmem:[%s166 + $0x44] sm:$0xf]
      %v193 = vld [vmem:[%s166 + $0x48] sm:$0xf]
      %v194 = vld [vmem:[%s166 + $0x4c] sm:$0xf]
      %v195 = vld [vmem:[%s166 + $0x50] sm:$0xf]
      %v196 = vld [vmem:[%s166 + $0x54] sm:$0xf]
      %v197 = vld [vmem:[%s166 + $0x58] sm:$0xf]
      %v198 = vld [vmem:[%s166 + $0x5c] sm:$0xf]
      %v199 = vld [vmem:[%s166 + $0x60] sm:$0xf]
      %v200 = vld [vmem:[%s166 + $0x64] sm:$0xf]
      %v201 = vld [vmem:[%s166 + $0x68] sm:$0xf]
      %v202 = vld [vmem:[%s166 + $0x6c] sm:$0xf]
      %v203 = vld [vmem:[%s166 + $0x70] sm:$0xf]
      %v204 = vld [vmem:[%s166 + $0x74] sm:$0xf]
      %v205 = vld [vmem:[%s166 + $0x78] sm:$0xf]
      %v206 = vld [vmem:[%s166 + $0x7c] sm:$0xf]
      %v207 = vld [vmem:[%s1] sm:$0xf]
      %v208 = vld [vmem:[%s1 + $0x4] sm:$0xf]
      %v209 = vld [vmem:[%s1 + $0x8] sm:$0x1]
      %v210 = vld [vmem:[%s2] sm:$0x1]
      %v212 = vperm.slane %v210, 0
      %v246 = vunpack.c.l.b16 %v175
      %v247 = vunpack.c.l.b16 %v176
      %v248 = vunpack.c.l.b16 %v177
      %v249 = vunpack.c.l.b16 %v178
      %v250 = vunpack.c.l.b16 %v179
      %v251 = vunpack.c.l.b16 %v180
      %v252 = vunpack.c.l.b16 %v181
      %v253 = vunpack.c.l.b16 %v182
      %v254 = vunpack.c.l.b16 %v183
      %v255 = vunpack.c.l.b16 %v184
      %v256 = vunpack.c.l.b16 %v185
      %v257 = vunpack.c.l.b16 %v186
      %v258 = vunpack.c.l.b16 %v187
      %v259 = vunpack.c.l.b16 %v188
      %v260 = vunpack.c.l.b16 %v189
      %v261 = vunpack.c.l.b16 %v190
      %v262 = vunpack.c.l.b16 %v191
      %v263 = vunpack.c.l.b16 %v192
      %v264 = vunpack.c.l.b16 %v193
      %v265 = vunpack.c.l.b16 %v194
      %v266 = vunpack.c.l.b16 %v195
      %v267 = vunpack.c.l.b16 %v196
      %v268 = vunpack.c.l.b16 %v197
      %v269 = vunpack.c.l.b16 %v198
      %v270 = vunpack.c.l.b16 %v199
      %v271 = vunpack.c.l.b16 %v200
      %v272 = vunpack.c.l.b16 %v201
      %v273 = vunpack.c.l.b16 %v202
      %v274 = vunpack.c.l.b16 %v203
      %v275 = vunpack.c.l.b16 %v204
      %v276 = vunpack.c.l.b16 %v205
      %v277 = vunpack.c.l.b16 %v206
      %v278 = vpack.c.b16 %v247, %v246
      %v279 = vpack.c.b16 %v249, %v248
      %v280 = vpack.c.b16 %v251, %v250
      %v281 = vpack.c.b16 %v253, %v252
      %v282 = vpack.c.b16 %v255, %v254
      %v283 = vpack.c.b16 %v257, %v256
      %v284 = vpack.c.b16 %v259, %v258
      %v285 = vpack.c.b16 %v261, %v260
      %v286 = vpack.c.b16 %v263, %v262
      %v287 = vpack.c.b16 %v265, %v264
      %v288 = vpack.c.b16 %v267, %v266
      %v289 = vpack.c.b16 %v269, %v268
      %v290 = vpack.c.b16 %v271, %v270
      %v291 = vpack.c.b16 %v273, %v272
      %v292 = vpack.c.b16 %v275, %v274
      %v293 = vpack.c.b16 %v277, %v276
      %v297 = vunpack.c.l.b16 %v207
      %v298 = vunpack.c.l.b16 %v208
      %v299 = vunpack.c.l.b16 %v209
      %v300 = vpack.c.b16 %v298, %v297
      %v301 = vpack.c.b16 %v299, %v299
      %vm303 = vcmask 146432
      %v305 = vsel %vm303, %v278, 0
      %v308 = vsel %vm303, %v279, 0
      %v311 = vsel %vm303, %v280, 0
      %v314 = vsel %vm303, %v281, 0
      %v317 = vsel %vm303, %v282, 0
      %v320 = vsel %vm303, %v283, 0
      %v323 = vsel %vm303, %v284, 0
      %v326 = vsel %vm303, %v285, 0
      %v329 = vsel %vm303, %v286, 0
      %v332 = vsel %vm303, %v287, 0
      %v335 = vsel %vm303, %v288, 0
      %v338 = vsel %vm303, %v289, 0
      %v341 = vsel %vm303, %v290, 0
      %v344 = vsel %vm303, %v291, 0
      %v347 = vsel %vm303, %v292, 0
      %v350 = vsel %vm303, %v293, 0
      %vm352 = vcmask 1040384
      %v354 = vsel %vm352, %v301, 0
      %356 = vmatpush.bf16.msra.mxu0 0
      %357 = vmatpush.bf16.msra.mxu0 0
      %358 = vmatpush.bf16.msra.mxu0 0
      %359 = vmatpush.bf16.msra.mxu0 0
      %360 = vmatpush.bf16.msra.mxu0 0
      %361 = vmatpush.bf16.msra.mxu0 0
      %362 = vmatpush.bf16.msra.mxu0 %v354
      %363 = vmatpush.bf16.msra.mxu0 %v300
      %364 = vmatmul.bf16.gmra.mxu0 %v305
      %v365 = vpop.f32.mrf.mxu0
      %v366 = vadd.f32 %v212, %v365
      %v367 = vpop.f32.mrf.mxu0
      %v368 = vadd.f32 %v212, %v367
      %369 = vmatmul.bf16.gmra.mxu0 %v308
      %v370 = vpop.f32.mrf.mxu0
      %v371 = vadd.f32 %v212, %v370
      %v372 = vpop.f32.mrf.mxu0
      %v373 = vadd.f32 %v212, %v372
      %374 = vmatmul.bf16.gmra.mxu0 %v311
      %v375 = vpop.f32.mrf.mxu0
      %v376 = vadd.f32 %v212, %v375
      %v377 = vpop.f32.mrf.mxu0
      %v378 = vadd.f32 %v212, %v377
      %379 = vmatmul.bf16.gmra.mxu0 %v314
      %v380 = vpop.f32.mrf.mxu0
      %v381 = vadd.f32 %v212, %v380
      %v382 = vpop.f32.mrf.mxu0
      %v383 = vadd.f32 %v212, %v382
      %384 = vmatmul.bf16.gmra.mxu0 %v317
      %v385 = vpop.f32.mrf.mxu0
      %v386 = vadd.f32 %v212, %v385
      %v387 = vpop.f32.mrf.mxu0
      %v388 = vadd.f32 %v212, %v387
      %389 = vmatmul.bf16.gmra.mxu0 %v320
      %v390 = vpop.f32.mrf.mxu0
      %v391 = vadd.f32 %v212, %v390
      %v392 = vpop.f32.mrf.mxu0
      %v393 = vadd.f32 %v212, %v392
      %394 = vmatmul.bf16.gmra.mxu0 %v323
      %v395 = vpop.f32.mrf.mxu0
      %v396 = vadd.f32 %v212, %v395
      %v397 = vpop.f32.mrf.mxu0
      %v398 = vadd.f32 %v212, %v397
      %399 = vmatmul.bf16.gmra.mxu0 %v326
      %v400 = vpop.f32.mrf.mxu0
      %v401 = vadd.f32 %v212, %v400
      %v402 = vpop.f32.mrf.mxu0
      %v403 = vadd.f32 %v212, %v402
      %404 = vmatmul.bf16.gmra.mxu0 %v329
      %v405 = vpop.f32.mrf.mxu0
      %v406 = vadd.f32 %v212, %v405
      %v407 = vpop.f32.mrf.mxu0
      %v408 = vadd.f32 %v212, %v407
      %409 = vmatmul.bf16.gmra.mxu0 %v332
      %v410 = vpop.f32.mrf.mxu0
      %v411 = vadd.f32 %v212, %v410
      %v412 = vpop.f32.mrf.mxu0
      %v413 = vadd.f32 %v212, %v412
      %414 = vmatmul.bf16.gmra.mxu0 %v335
      %v415 = vpop.f32.mrf.mxu0
      %v416 = vadd.f32 %v212, %v415
      %v417 = vpop.f32.mrf.mxu0
      %v418 = vadd.f32 %v212, %v417
      %419 = vmatmul.bf16.gmra.mxu0 %v338
      %v420 = vpop.f32.mrf.mxu0
      %v421 = vadd.f32 %v212, %v420
      %v422 = vpop.f32.mrf.mxu0
      %v423 = vadd.f32 %v212, %v422
      %424 = vmatmul.bf16.gmra.mxu0 %v341
      %v425 = vpop.f32.mrf.mxu0
      %v426 = vadd.f32 %v212, %v425
      %v427 = vpop.f32.mrf.mxu0
      %v428 = vadd.f32 %v212, %v427
      %429 = vmatmul.bf16.gmra.mxu0 %v344
      %v430 = vpop.f32.mrf.mxu0
      %v431 = vadd.f32 %v212, %v430
      %v432 = vpop.f32.mrf.mxu0
      %v433 = vadd.f32 %v212, %v432
      %434 = vmatmul.bf16.gmra.mxu0 %v347
      %v435 = vpop.f32.mrf.mxu0
      %v436 = vadd.f32 %v212, %v435
      %v437 = vpop.f32.mrf.mxu0
      %v438 = vadd.f32 %v212, %v437
      %439 = vmatmul.bf16.gmra.mxu0 %v350
      %v440 = vpop.f32.mrf.mxu0
      %v441 = vadd.f32 %v212, %v440
      %v442 = vpop.f32.mrf.mxu0
      %v443 = vadd.f32 %v212, %v442
      %444 = vdwg.mxu0
      %v445 = vmax.f32 %v366, 0.0
      %v446 = vmax.f32 %v368, 0.0
      %v447 = vmax.f32 %v371, 0.0
      %v448 = vmax.f32 %v373, 0.0
      %v449 = vmax.f32 %v376, 0.0
      %v450 = vmax.f32 %v378, 0.0
      %v451 = vmax.f32 %v381, 0.0
      %v452 = vmax.f32 %v383, 0.0
      %v453 = vmax.f32 %v386, 0.0
      %v454 = vmax.f32 %v388, 0.0
      %v455 = vmax.f32 %v391, 0.0
      %v456 = vmax.f32 %v393, 0.0
      %v457 = vmax.f32 %v396, 0.0
      %v458 = vmax.f32 %v398, 0.0
      %v459 = vmax.f32 %v401, 0.0
      %v460 = vmax.f32 %v403, 0.0
      %v461 = vmax.f32 %v406, 0.0
      %v462 = vmax.f32 %v408, 0.0
      %v463 = vmax.f32 %v411, 0.0
      %v464 = vmax.f32 %v413, 0.0
      %v465 = vmax.f32 %v416, 0.0
      %v466 = vmax.f32 %v418, 0.0
      %v467 = vmax.f32 %v421, 0.0
      %v468 = vmax.f32 %v423, 0.0
      %v469 = vmax.f32 %v426, 0.0
      %v470 = vmax.f32 %v428, 0.0
      %v471 = vmax.f32 %v431, 0.0
      %v472 = vmax.f32 %v433, 0.0
      %v473 = vmax.f32 %v436, 0.0
      %v474 = vmax.f32 %v438, 0.0
      %v475 = vmax.f32 %v441, 0.0
      %v476 = vmax.f32 %v443, 0.0
      %v477 = vpack.c.bf16 %v445, %v445
      %v478 = vpack.c.bf16 %v446, %v446
      %v479 = vpack.c.bf16 %v447, %v447
      %v480 = vpack.c.bf16 %v448, %v448
      %v481 = vpack.c.bf16 %v449, %v449
      %v482 = vpack.c.bf16 %v450, %v450
      %v483 = vpack.c.bf16 %v451, %v451
      %v484 = vpack.c.bf16 %v452, %v452
      %v485 = vpack.c.bf16 %v453, %v453
      %v486 = vpack.c.bf16 %v454, %v454
      %v487 = vpack.c.bf16 %v455, %v455
      %v488 = vpack.c.bf16 %v456, %v456
      %v489 = vpack.c.bf16 %v457, %v457
      %v490 = vpack.c.bf16 %v458, %v458
      %v491 = vpack.c.bf16 %v459, %v459
      %v492 = vpack.c.bf16 %v460, %v460
      %v493 = vpack.c.bf16 %v461, %v461
      %v494 = vpack.c.bf16 %v462, %v462
      %v495 = vpack.c.bf16 %v463, %v463
      %v496 = vpack.c.bf16 %v464, %v464
      %v497 = vpack.c.bf16 %v465, %v465
      %v498 = vpack.c.bf16 %v466, %v466
      %v499 = vpack.c.bf16 %v467, %v467
      %v500 = vpack.c.bf16 %v468, %v468
      %v501 = vpack.c.bf16 %v469, %v469
      %v502 = vpack.c.bf16 %v470, %v470
      %v503 = vpack.c.bf16 %v471, %v471
      %v504 = vpack.c.bf16 %v472, %v472
      %v505 = vpack.c.bf16 %v473, %v473
      %v506 = vpack.c.bf16 %v474, %v474
      %v507 = vpack.c.bf16 %v475, %v475
      %v508 = vpack.c.bf16 %v476, %v476
      %vm509 = vcmask 257024
      %510 = vst.msk [vmem:[%s172] sm:$0xf] %vm509, %v477
      %511 = vst.msk [vmem:[%s172 + $0x4] sm:$0xf] %vm509, %v478
      %512 = vst.msk [vmem:[%s172 + $0x8] sm:$0xf] %vm509, %v479
      %513 = vst.msk [vmem:[%s172 + $0xc] sm:$0xf] %vm509, %v480
      %514 = vst.msk [vmem:[%s172 + $0x10] sm:$0xf] %vm509, %v481
      %515 = vst.msk [vmem:[%s172 + $0x14] sm:$0xf] %vm509, %v482
      %516 = vst.msk [vmem:[%s172 + $0x18] sm:$0xf] %vm509, %v483
      %517 = vst.msk [vmem:[%s172 + $0x1c] sm:$0xf] %vm509, %v484
      %518 = vst.msk [vmem:[%s172 + $0x20] sm:$0xf] %vm509, %v485
      %519 = vst.msk [vmem:[%s172 + $0x24] sm:$0xf] %vm509, %v486
      %520 = vst.msk [vmem:[%s172 + $0x28] sm:$0xf] %vm509, %v487
      %521 = vst.msk [vmem:[%s172 + $0x2c] sm:$0xf] %vm509, %v488
      %522 = vst.msk [vmem:[%s172 + $0x30] sm:$0xf] %vm509, %v489
      %523 = vst.msk [vmem:[%s172 + $0x34] sm:$0xf] %vm509, %v490
      %524 = vst.msk [vmem:[%s172 + $0x38] sm:$0xf] %vm509, %v491
      %525 = vst.msk [vmem:[%s172 + $0x3c] sm:$0xf] %vm509, %v492
      %526 = vst.msk [vmem:[%s172 + $0x40] sm:$0xf] %vm509, %v493
      %527 = vst.msk [vmem:[%s172 + $0x44] sm:$0xf] %vm509, %v494
      %528 = vst.msk [vmem:[%s172 + $0x48] sm:$0xf] %vm509, %v495
      %529 = vst.msk [vmem:[%s172 + $0x4c] sm:$0xf] %vm509, %v496
      %530 = vst.msk [vmem:[%s172 + $0x50] sm:$0xf] %vm509, %v497
      %531 = vst.msk [vmem:[%s172 + $0x54] sm:$0xf] %vm509, %v498
      %532 = vst.msk [vmem:[%s172 + $0x58] sm:$0xf] %vm509, %v499
      %533 = vst.msk [vmem:[%s172 + $0x5c] sm:$0xf] %vm509, %v500
      %534 = vst.msk [vmem:[%s172 + $0x60] sm:$0xf] %vm509, %v501
      %535 = vst.msk [vmem:[%s172 + $0x64] sm:$0xf] %vm509, %v502
      %536 = vst.msk [vmem:[%s172 + $0x68] sm:$0xf] %vm509, %v503
      %537 = vst.msk [vmem:[%s172 + $0x6c] sm:$0xf] %vm509, %v504
      %538 = vst.msk [vmem:[%s172 + $0x70] sm:$0xf] %vm509, %v505
      %539 = vst.msk [vmem:[%s172 + $0x74] sm:$0xf] %vm509, %v506
      %540 = vst.msk [vmem:[%s172 + $0x78] sm:$0xf] %vm509, %v507
      %541 = vst.msk [vmem:[%s172 + $0x7c] sm:$0xf] %vm509, %v508
      %s542 = smul.u32 32, %s14
      %p543 = scmp.lt.s32.totalorder %s542, 63
      %s544 = scalar_select %p543, %s542, 63
      %s545 = smul.addr %s544, 4
      %s546 = scalar_lea.vmem %s3, %s545
      // Predicated region
      $region33: #{curve_estimation_forward.7} parent=31 // pred_check
        %p547 = pneg %p100
      $region34: #{curve_estimation_forward.7} parent=31 // pred_check_branch
        %549 = sbr.rel (%p547) target = $region36
      $region35: #{curve_estimation_forward.7} parent=31 // pred_region
        %s550 = smul.u32 32, %s14
      $region36: #{curve_estimation_forward.7} parent=31 // pred_fallthru
        _
    $region32: #{curve_estimation_forward.7} parent=5 // pred_fallthru
      _
    %p551 = scmp.le.s32.totalorder 2, %s9
    // Predicated region
    $region37: #{curve_estimation_forward.7} parent=5 // pred_check
      %p552 = pneg %p551
    $region38: #{curve_estimation_forward.7} parent=5 // pred_check_branch
      %554 = sbr.rel (%p552) target = $region40
    $region39: #{curve_estimation_forward.7} parent=5 // pred_region
      %s555 = ssub.s32 %s9, 2
      // Predicated region
      $region41: #{curve_estimation_forward.7} parent=39 // pred_check
        %p556 = pneg %p106
      $region42: #{curve_estimation_forward.7} parent=39 // pred_check_branch
        %558 = sbr.rel (%p556) target = $region44
      $region43: #{curve_estimation_forward.7} parent=39 // pred_region
        %s559 = smul.u32 32, %s15
        %p560 = scmp.lt.s32.totalorder %s559, 63
        %s561 = scalar_select %p560, %s559, 63
        %s562 = smul.addr %s561, 4
        %s563 = scalar_lea.vmem %s3, %s562
      $region44: #{curve_estimation_forward.7} parent=39 // pred_fallthru
        _
    $region40: #{curve_estimation_forward.7} parent=5 // pred_fallthru
      _
  $region6: #{curve_estimation_forward.7} parent=0 // loop_footer
    %s13 = sadd.s32 1, %s9
  $region7: #{curve_estimation_forward.7} parent=0 // loop_footer_branch
    %8 = sbr.rel target = $region3
  $region8: #{curve_estimation_forward.7} parent=0 // loop_exit
    _

// kernel: curve_estimation_forward.8
$region0: #{curve_estimation_forward.8}
  #allocation0 [shape = 'u32[]', space=smem, size = 0x4, offset = 0x4, fixed_abs, tag = 'smem constant byte address 0x4 - core index']
  #allocation1 [shape = 'u32[72,128]{1,0:T(1,128)}', space=vmem, size = 0x9000, scoped, tag = 'internal scratch']
  %s0 = inlined_call_operand.vmem [shape: bf16[512,288], index: 0, kind: input, shape index: {}]
  %s1 = inlined_call_operand.vmem [shape: bf16[288,32], index: 1, kind: input, shape index: {}]
  %s2 = inlined_call_operand.vmem [shape: f32[1,32], index: 2, kind: input, shape index: {}]
  %s3 = inlined_call_operand.vmem [shape: bf16[512,32], index: 3, kind: output, shape index: {}]
  %s4 = sld [smem:[#allocation0]]
  $region45: #{curve_estimation_forward.8} parent=0
    _
  %s6 = ssub.s32 1, %s4
  %s7 = scalar_select 0, %s6, %s4
  loop: start=0, step=1, limit=4
  $region2: #{curve_estimation_forward.8} parent=0 // loop_pre_header
    _
  $region3: #{curve_estimation_forward.8} parent=0 // loop_header
    %s9 = sphi 0, %s13
    %p10 = scmp.ge.s32.totalorder %s9, 4
    %s19 = sphi 0, %s21
    %s22 = sphi 0, %s19
    %s23 = sphi 0, %s22
    %s39 = sphi 0, %s23
    %s43 = sphi 0, %s43
    %s45 = sphi 0, %s43
    %s46 = sphi 0, %s45
    %s60 = sphi 0, %s46
    %s64 = sphi 0, %s64
    %s66 = sphi 0, %s64
    %s67 = sphi 0, %s66
    %s81 = sphi 0, %s67
    %s87 = sphi 0, %s89
    %s90 = sphi 0, %s87
    %s91 = sphi 0, %s90
    %s107 = sphi 0, %s91
  $region4: #{curve_estimation_forward.8} parent=0 // loop_header_branch
    %12 = sbr.rel (%p10) target = $region8
  $region5: #{curve_estimation_forward.8} parent=0 // loop_body
    %s14 = ssub.s32 %s9, 1
    %s15 = ssub.s32 %s9, 2
    %s16 = sadd.s32 %s9, 1
    %s17 = ssub.s32 %s9, %s16
    %p18 = scmp.eq.s32.totalorder %s17, 0
    %s20 = sadd.s32 %s19, 1
    %s21 = scalar_select %p18, %s19, %s20
    %p24 = pneg %p18
    %p25 = scmp.eq.s32.totalorder %s9, 1
    %p26 = por %p24, %p25
    %p27 = scmp.ne.s32.totalorder %s19, %s22
    %p28 = scmp.eq.s32.totalorder %s9, 0
    %p29 = por %p27, %p28
    %p30 = scmp.ne.s32.totalorder %s19, %s22
    %p31 = scmp.eq.s32.totalorder %s14, 1
    %p32 = por %p30, %p31
    %p33 = scmp.ne.s32.totalorder %s22, %s23
    %p34 = scmp.eq.s32.totalorder %s14, 0
    %p35 = por %p33, %p34
    %p36 = scmp.ne.s32.totalorder %s22, %s23
    %p37 = scmp.eq.s32.totalorder %s15, 1
    %p38 = por %p36, %p37
    %p40 = scmp.ne.s32.totalorder %s23, %s39
    %p41 = scmp.eq.s32.totalorder %s15, 0
    %p42 = por %p40, %p41
    %s44 = sadd.s32 %s43, 1
    %p47 = scmp.eq.s32.totalorder %s9, 1
    %p48 = scmp.ne.s32.totalorder %s43, %s45
    %p49 = scmp.eq.s32.totalorder %s9, 0
    %p50 = por %p48, %p49
    %p51 = scmp.ne.s32.totalorder %s43, %s45
    %p52 = scmp.eq.s32.totalorder %s14, 1
    %p53 = por %p51, %p52
    %p54 = scmp.ne.s32.totalorder %s45, %s46
    %p55 = scmp.eq.s32.totalorder %s14, 0
    %p56 = por %p54, %p55
    %p57 = scmp.ne.s32.totalorder %s45, %s46
    %p58 = scmp.eq.s32.totalorder %s15, 1
    %p59 = por %p57, %p58
    %p61 = scmp.ne.s32.totalorder %s46, %s60
    %p62 = scmp.eq.s32.totalorder %s15, 0
    %p63 = por %p61, %p62
    %s65 = sadd.s32 %s64, 1
    %p68 = scmp.eq.s32.totalorder %s9, 1
    %p69 = scmp.ne.s32.totalorder %s64, %s66
    %p70 = scmp.eq.s32.totalorder %s9, 0
    %p71 = por %p69, %p70
    %p72 = scmp.ne.s32.totalorder %s64, %s66
    %p73 = scmp.eq.s32.totalorder %s14, 1
    %p74 = por %p72, %p73
    %p75 = scmp.ne.s32.totalorder %s66, %s67
    %p76 = scmp.eq.s32.totalorder %s14, 0
    %p77 = por %p75, %p76
    %p78 = scmp.ne.s32.totalorder %s66, %s67
    %p79 = scmp.eq.s32.totalorder %s15, 1
    %p80 = por %p78, %p79
    %p82 = scmp.ne.s32.totalorder %s67, %s81
    %p83 = scmp.eq.s32.totalorder %s15, 0
    %p84 = por %p82, %p83
    %s85 = ssub.s32 %s9, %s16
    %p86 = scmp.eq.s32.totalorder %s85, 0
    %s88 = sadd.s32 %s87, 1
    %s89 = scalar_select %p86, %s87, %s88
    %p92 = pneg %p86
    %p93 = scmp.eq.s32.totalorder %s9, 1
    %p94 = por %p92, %p93
    %p95 = scmp.ne.s32.totalorder %s87, %s90
    %p96 = scmp.eq.s32.totalorder %s9, 0
    %p97 = por %p95, %p96
    %p98 = scmp.ne.s32.totalorder %s87, %s90
    %p99 = scmp.eq.s32.totalorder %s14, 1
    %p100 = por %p98, %p99
    %p101 = scmp.ne.s32.totalorder %s90, %s91
    %p102 = scmp.eq.s32.totalorder %s14, 0
    %p103 = por %p101, %p102
    %p104 = scmp.ne.s32.totalorder %s90, %s91
    %p105 = scmp.eq.s32.totalorder %s15, 1
    %p106 = por %p104, %p105
    %p108 = scmp.ne.s32.totalorder %s91, %s107
    %p109 = scmp.eq.s32.totalorder %s15, 0
    %p110 = por %p108, %p109
    %p111 = scmp.le.s32.totalorder 1, %s9
    %p112 = scmp.lt.s32.totalorder %s9, 3
    %p113 = pnand %p111, %p112
    %p114 = pneg %p113
    // Predicated region
    $region9: #{curve_estimation_forward.8} parent=5 // pred_check
      _
    $region10: #{curve_estimation_forward.8} parent=5 // pred_check_branch
      %116 = sbr.rel (%p113) target = $region12
    $region11: #{curve_estimation_forward.8} parent=5 // pred_region
      %s117 = ssub.s32 %s9, 1
      // Predicated region
      $region13: #{curve_estimation_forward.8} parent=11 // pred_check
        %p118 = pneg %p56
      $region14: #{curve_estimation_forward.8} parent=11 // pred_check_branch
        %120 = sbr.rel (%p118) target = $region16
      $region15: #{curve_estimation_forward.8} parent=11 // pred_region
        _
      $region16: #{curve_estimation_forward.8} parent=11 // pred_fallthru
        _
      // Predicated region
      $region17: #{curve_estimation_forward.8} parent=11 // pred_check
        %p121 = pneg %p77
      $region18: #{curve_estimation_forward.8} parent=11 // pred_check_branch
        %123 = sbr.rel (%p121) target = $region20
      $region19: #{curve_estimation_forward.8} parent=11 // pred_region
        _
      $region20: #{curve_estimation_forward.8} parent=11 // pred_fallthru
        _
    $region12: #{curve_estimation_forward.8} parent=5 // pred_fallthru
      _
    %p124 = scmp.lt.s32.totalorder %s9, 2
    // Predicated region
    $region21: #{curve_estimation_forward.8} parent=5 // pred_check
      %p125 = pneg %p124
    $region22: #{curve_estimation_forward.8} parent=5 // pred_check_branch
      %127 = sbr.rel (%p125) target = $region24
    $region23: #{curve_estimation_forward.8} parent=5 // pred_region
      // Predicated region
      $region25: #{curve_estimation_forward.8} parent=23 // pred_check
        %p128 = pneg %p29
      $region26: #{curve_estimation_forward.8} parent=23 // pred_check_branch
        %130 = sbr.rel (%p128) target = $region28
      $region27: #{curve_estimation_forward.8} parent=23 // pred_region
        %s131 = smul.u32 32, %s9
        %p132 = scmp.lt.s32.totalorder %s131, 63
        %s133 = scalar_select %p132, %s131, 63
        %s134 = smul.addr %s133, 3
        %s135 = smul.addr %s134, 4
        %s136 = scalar_lea.vmem %s0, %s135
        %s137 = smul.u32 32, %s9
      $region28: #{curve_estimation_forward.8} parent=23 // pred_fallthru
        _
    $region24: #{curve_estimation_forward.8} parent=5 // pred_fallthru
      _
    %p138 = scmp.le.s32.totalorder 1, %s9
    %p139 = scmp.lt.s32.totalorder %s9, 3
    %p140 = pnand %p138, %p139
    %p141 = pneg %p140
    // Predicated region
    $region29: #{curve_estimation_forward.8} parent=5 // pred_check
      _
    $region30: #{curve_estimation_forward.8} parent=5 // pred_check_branch
      %143 = sbr.rel (%p140) target = $region32
    $region31: #{curve_estimation_forward.8} parent=5 // pred_region
      %s144 = ssub.s32 %s9, 1
      %s145 = smul.u32 32, %s14
      %p146 = scmp.lt.s32.totalorder %s145, 63
      %s147 = scalar_select %p146, %s145, 63
      %s148 = smul.addr %s147, 3
      %s149 = smul.addr %s148, 4
      %s150 = scalar_lea.vmem %s0, %s149
      %p151 = pneg %p35
      %p152 = pneg %p32
      %p153 = pneg %p56
      %p154 = pneg %p53
      %p155 = pneg %p77
      %p156 = pneg %p74
      %p157 = pneg %p103
      %p158 = pneg %p100
      %s159 = smul.u32 32, %s14
      %p160 = scmp.lt.s32.totalorder %s159, 63
      %s161 = scalar_select %p160, %s159, 63
      %s162 = smul.addr %s161, 4
      %s163 = scalar_lea.vmem %s3, %s162
      %s164 = smul.u32 32, %s14
      %p165 = scmp.lt.s32.totalorder %s164, 63
      %s166 = scalar_select %p165, %s164, 63
      %s167 = smul.addr %s166, 3
      %s168 = smul.addr %s167, 4
      %s169 = scalar_lea.vmem %s0, %s168
      %s170 = smul.u32 32, %s14
      %s171 = smul.u32 32, %s14
      %p172 = scmp.lt.s32.totalorder %s171, 63
      %s173 = scalar_select %p172, %s171, 63
      %s174 = smul.addr %s173, 4
      %s175 = scalar_lea.vmem %s3, %s174
      %s176 = smul.u32 32, %s14
      %v178 = vld [vmem:[%s169] sm:$0xff]
      %v179 = vld [vmem:[%s169 + $0x8] sm:$0xf]
      %v180 = vld [vmem:[%s169 + $0xc] sm:$0xff]
      %v181 = vld [vmem:[%s169 + $0x14] sm:$0xf]
      %v182 = vld [vmem:[%s169 + $0x18] sm:$0xff]
      %v183 = vld [vmem:[%s169 + $0x20] sm:$0xf]
      %v184 = vld [vmem:[%s169 + $0x24] sm:$0xff]
      %v185 = vld [vmem:[%s169 + $0x2c] sm:$0xf]
      %v186 = vld [vmem:[%s169 + $0x30] sm:$0xff]
      %v187 = vld [vmem:[%s169 + $0x38] sm:$0xf]
      %v188 = vld [vmem:[%s169 + $0x3c] sm:$0xff]
      %v189 = vld [vmem:[%s169 + $0x44] sm:$0xf]
      %v190 = vld [vmem:[%s169 + $0x48] sm:$0xff]
      %v191 = vld [vmem:[%s169 + $0x50] sm:$0xf]
      %v192 = vld [vmem:[%s169 + $0x54] sm:$0xff]
      %v193 = vld [vmem:[%s169 + $0x5c] sm:$0xf]
      %v194 = vld [vmem:[%s169 + $0x60] sm:$0xff]
      %v195 = vld [vmem:[%s169 + $0x68] sm:$0xf]
      %v196 = vld [vmem:[%s169 + $0x6c] sm:$0xff]
      %v197 = vld [vmem:[%s169 + $0x74] sm:$0xf]
      %v198 = vld [vmem:[%s169 + $0x78] sm:$0xff]
      %v199 = vld [vmem:[%s169 + $0x80] sm:$0xf]
      %v200 = vld [vmem:[%s169 + $0x84] sm:$0xff]
      %v201 = vld [vmem:[%s169 + $0x8c] sm:$0xf]
      %v202 = vld [vmem:[%s169 + $0x90] sm:$0xff]
      %v203 = vld [vmem:[%s169 + $0x98] sm:$0xf]
      %v204 = vld [vmem:[%s169 + $0x9c] sm:$0xff]
      %v205 = vld [vmem:[%s169 + $0xa4] sm:$0xf]
      %v206 = vld [vmem:[%s169 + $0xa8] sm:$0xff]
      %v207 = vld [vmem:[%s169 + $0xb0] sm:$0xf]
      %v208 = vld [vmem:[%s169 + $0xb4] sm:$0xff]
      %v209 = vld [vmem:[%s169 + $0xbc] sm:$0xf]
      %v210 = vld [vmem:[%s169 + $0xc0] sm:$0xff]
      %v211 = vld [vmem:[%s169 + $0xc8] sm:$0xf]
      %v212 = vld [vmem:[%s169 + $0xcc] sm:$0xff]
      %v213 = vld [vmem:[%s169 + $0xd4] sm:$0xf]
      %v214 = vld [vmem:[%s169 + $0xd8] sm:$0xff]
      %v215 = vld [vmem:[%s169 + $0xe0] sm:$0xf]
      %v216 = vld [vmem:[%s169 + $0xe4] sm:$0xff]
      %v217 = vld [vmem:[%s169 + $0xec] sm:$0xf]
      %v218 = vld [vmem:[%s169 + $0xf0] sm:$0xff]
      %v219 = vld [vmem:[%s169 + $0xf8] sm:$0xf]
      %v220 = vld [vmem:[%s169 + $0xfc] sm:$0xff]
      %v221 = vld [vmem:[%s169 + $0x104] sm:$0xf]
      %v222 = vld [vmem:[%s169 + $0x108] sm:$0xff]
      %v223 = vld [vmem:[%s169 + $0x110] sm:$0xf]
      %v224 = vld [vmem:[%s169 + $0x114] sm:$0xff]
      %v225 = vld [vmem:[%s169 + $0x11c] sm:$0xf]
      %v226 = vld [vmem:[%s169 + $0x120] sm:$0xff]
      %v227 = vld [vmem:[%s169 + $0x128] sm:$0xf]
      %v228 = vld [vmem:[%s169 + $0x12c] sm:$0xff]
      %v229 = vld [vmem:[%s169 + $0x134] sm:$0xf]
      %v230 = vld [vmem:[%s169 + $0x138] sm:$0xff]
      %v231 = vld [vmem:[%s169 + $0x140] sm:$0xf]
      %v232 = vld [vmem:[%s169 + $0x144] sm:$0xff]
      %v233 = vld [vmem:[%s169 + $0x14c] sm:$0xf]
      %v234 = vld [vmem:[%s169 + $0x150] sm:$0xff]
      %v235 = vld [vmem:[%s169 + $0x158] sm:$0xf]
      %v236 = vld [vmem:[%s169 + $0x15c] sm:$0xff]
      %v237 = vld [vmem:[%s169 + $0x164] sm:$0xf]
      %v238 = vld [vmem:[%s169 + $0x168] sm:$0xff]
      %v239 = vld [vmem:[%s169 + $0x170] sm:$0xf]
      %v240 = vld [vmem:[%s169 + $0x174] sm:$0xff]
      %v241 = vld [vmem:[%s169 + $0x17c] sm:$0xf]
      %v242 = vld [vmem:[%s1] sm:$0xf]
      %v243 = vld [vmem:[%s1 + $0x4] sm:$0xf]
      %v244 = vld [vmem:[%s1 + $0x8] sm:$0xf]
      %v245 = vld [vmem:[%s1 + $0xc] sm:$0xf]
      %v246 = vld [vmem:[%s1 + $0x10] sm:$0xf]
      %v247 = vld [vmem:[%s1 + $0x14] sm:$0xf]
      %v248 = vld [vmem:[%s1 + $0x18] sm:$0xf]
      %v249 = vld [vmem:[%s1 + $0x1c] sm:$0xf]
      %v250 = vld [vmem:[%s1 + $0x20] sm:$0xf]
      %v251 = vld [vmem:[%s1 + $0x24] sm:$0xf]
      %v252 = vld [vmem:[%s1 + $0x28] sm:$0xf]
      %v253 = vld [vmem:[%s1 + $0x2c] sm:$0xf]
      %v254 = vld [vmem:[%s1 + $0x30] sm:$0xf]
      %v255 = vld [vmem:[%s1 + $0x34] sm:$0xf]
      %v256 = vld [vmem:[%s1 + $0x38] sm:$0xf]
      %v257 = vld [vmem:[%s1 + $0x3c] sm:$0xf]
      %v258 = vld [vmem:[%s1 + $0x40] sm:$0xf]
      %v259 = vld [vmem:[%s1 + $0x44] sm:$0xf]
      %v260 = vld [vmem:[%s1 + $0x48] sm:$0xf]
      %v261 = vld [vmem:[%s1 + $0x4c] sm:$0xf]
      %v262 = vld [vmem:[%s1 + $0x50] sm:$0xf]
      %v263 = vld [vmem:[%s1 + $0x54] sm:$0xf]
      %v264 = vld [vmem:[%s1 + $0x58] sm:$0xf]
      %v265 = vld [vmem:[%s1 + $0x5c] sm:$0xf]
      %v266 = vld [vmem:[%s1 + $0x60] sm:$0xf]
      %v267 = vld [vmem:[%s1 + $0x64] sm:$0xf]
      %v268 = vld [vmem:[%s1 + $0x68] sm:$0xf]
      %v269 = vld [vmem:[%s1 + $0x6c] sm:$0xf]
      %v270 = vld [vmem:[%s1 + $0x70] sm:$0xf]
      %v271 = vld [vmem:[%s1 + $0x74] sm:$0xf]
      %v272 = vld [vmem:[%s1 + $0x78] sm:$0xf]
      %v273 = vld [vmem:[%s1 + $0x7c] sm:$0xf]
      %v274 = vld [vmem:[%s1 + $0x80] sm:$0xf]
      %v275 = vld [vmem:[%s1 + $0x84] sm:$0xf]
      %v276 = vld [vmem:[%s1 + $0x88] sm:$0xf]
      %v277 = vld [vmem:[%s1 + $0x8c] sm:$0xf]
      %v278 = vld [vmem:[%s2] sm:$0x1]
      %v280 = vperm.slane %v278, 0
      %v346 = vunpack.c.l.b16 %v178
      %v347 = vunpack.c.h.b16 %v178
      %v348 = vunpack.c.l.b16 %v179
      %v349 = vunpack.c.l.b16 %v180
      %v350 = vunpack.c.h.b16 %v180
      %v351 = vunpack.c.l.b16 %v181
      %v352 = vunpack.c.l.b16 %v182
      %v353 = vunpack.c.h.b16 %v182
      %v354 = vunpack.c.l.b16 %v183
      %v355 = vunpack.c.l.b16 %v184
      %v356 = vunpack.c.h.b16 %v184
      %v357 = vunpack.c.l.b16 %v185
      %v358 = vunpack.c.l.b16 %v186
      %v359 = vunpack.c.h.b16 %v186
      %v360 = vunpack.c.l.b16 %v187
      %v361 = vunpack.c.l.b16 %v188
      %v362 = vunpack.c.h.b16 %v188
      %v363 = vunpack.c.l.b16 %v189
      %v364 = vunpack.c.l.b16 %v190
      %v365 = vunpack.c.h.b16 %v190
      %v366 = vunpack.c.l.b16 %v191
      %v367 = vunpack.c.l.b16 %v192
      %v368 = vunpack.c.h.b16 %v192
      %v369 = vunpack.c.l.b16 %v193
      %v370 = vunpack.c.l.b16 %v194
      %v371 = vunpack.c.h.b16 %v194
      %v372 = vunpack.c.l.b16 %v195
      %v373 = vunpack.c.l.b16 %v196
      %v374 = vunpack.c.h.b16 %v196
      %v375 = vunpack.c.l.b16 %v197
      %v376 = vunpack.c.l.b16 %v198
      %v377 = vunpack.c.h.b16 %v198
      %v378 = vunpack.c.l.b16 %v199
      %v379 = vunpack.c.l.b16 %v200
      %v380 = vunpack.c.h.b16 %v200
      %v381 = vunpack.c.l.b16 %v201
      %v382 = vunpack.c.l.b16 %v202
      %v383 = vunpack.c.h.b16 %v202
      %v384 = vunpack.c.l.b16 %v203
      %v385 = vunpack.c.l.b16 %v204
      %v386 = vunpack.c.h.b16 %v204
      %v387 = vunpack.c.l.b16 %v205
      %v388 = vunpack.c.l.b16 %v206
      %v389 = vunpack.c.h.b16 %v206
      %v390 = vunpack.c.l.b16 %v207
      %v391 = vunpack.c.l.b16 %v208
      %v392 = vunpack.c.h.b16 %v208
      %v393 = vunpack.c.l.b16 %v209
      %v394 = vunpack.c.l.b16 %v210
      %v395 = vunpack.c.h.b16 %v210
      %v396 = vunpack.c.l.b16 %v211
      %v397 = vunpack.c.l.b16 %v212
      %v398 = vunpack.c.h.b16 %v212
      %v399 = vunpack.c.l.b16 %v213
      %v400 = vunpack.c.l.b16 %v214
      %v401 = vunpack.c.h.b16 %v214
      %v402 = vunpack.c.l.b16 %v215
      %v403 = vunpack.c.l.b16 %v216
      %v404 = vunpack.c.h.b16 %v216
      %v405 = vunpack.c.l.b16 %v217
      %v406 = vunpack.c.l.b16 %v218
      %v407 = vunpack.c.h.b16 %v218
      %v408 = vunpack.c.l.b16 %v219
      %v409 = vunpack.c.l.b16 %v220
      %v410 = vunpack.c.h.b16 %v220
      %v411 = vunpack.c.l.b16 %v221
      %v412 = vunpack.c.l.b16 %v222
      %v413 = vunpack.c.h.b16 %v222
      %v414 = vunpack.c.l.b16 %v223
      %v415 = vunpack.c.l.b16 %v224
      %v416 = vunpack.c.h.b16 %v224
      %v417 = vunpack.c.l.b16 %v225
      %v418 = vunpack.c.l.b16 %v226
      %v419 = vunpack.c.h.b16 %v226
      %v420 = vunpack.c.l.b16 %v227
      %v421 = vunpack.c.l.b16 %v228
      %v422 = vunpack.c.h.b16 %v228
      %v423 = vunpack.c.l.b16 %v229
      %v424 = vunpack.c.l.b16 %v230
      %v425 = vunpack.c.h.b16 %v230
      %v426 = vunpack.c.l.b16 %v231
      %v427 = vunpack.c.l.b16 %v232
      %v428 = vunpack.c.h.b16 %v232
      %v429 = vunpack.c.l.b16 %v233
      %v430 = vunpack.c.l.b16 %v234
      %v431 = vunpack.c.h.b16 %v234
      %v432 = vunpack.c.l.b16 %v235
      %v433 = vunpack.c.l.b16 %v236
      %v434 = vunpack.c.h.b16 %v236
      %v435 = vunpack.c.l.b16 %v237
      %v436 = vunpack.c.l.b16 %v238
      %v437 = vunpack.c.h.b16 %v238
      %v438 = vunpack.c.l.b16 %v239
      %v439 = vunpack.c.l.b16 %v240
      %v440 = vunpack.c.h.b16 %v240
      %v441 = vunpack.c.l.b16 %v241
      %v442 = vpack.c.b16 %v349, %v346
      %v443 = vpack.c.b16 %v350, %v347
      %v444 = vpack.c.b16 %v351, %v348
      %v445 = vpack.c.b16 %v355, %v352
      %v446 = vpack.c.b16 %v356, %v353
      %v447 = vpack.c.b16 %v357, %v354
      %v448 = vpack.c.b16 %v361, %v358
      %v449 = vpack.c.b16 %v362, %v359
      %v450 = vpack.c.b16 %v363, %v360
      %v451 = vpack.c.b16 %v367, %v364
      %v452 = vpack.c.b16 %v368, %v365
      %v453 = vpack.c.b16 %v369, %v366
      %v454 = vpack.c.b16 %v373, %v370
      %v455 = vpack.c.b16 %v374, %v371
      %v456 = vpack.c.b16 %v375, %v372
      %v457 = vpack.c.b16 %v379, %v376
      %v458 = vpack.c.b16 %v380, %v377
      %v459 = vpack.c.b16 %v381, %v378
      %v460 = vpack.c.b16 %v385, %v382
      %v461 = vpack.c.b16 %v386, %v383
      %v462 = vpack.c.b16 %v387, %v384
      %v463 = vpack.c.b16 %v391, %v388
      %v464 = vpack.c.b16 %v392, %v389
      %v465 = vpack.c.b16 %v393, %v390
      %v466 = vpack.c.b16 %v397, %v394
      %v467 = vpack.c.b16 %v398, %v395
      %v468 = vpack.c.b16 %v399, %v396
      %v469 = vpack.c.b16 %v403, %v400
      %v470 = vpack.c.b16 %v404, %v401
      %v471 = vpack.c.b16 %v405, %v402
      %v472 = vpack.c.b16 %v409, %v406
      %v473 = vpack.c.b16 %v410, %v407
      %v474 = vpack.c.b16 %v411, %v408
      %v475 = vpack.c.b16 %v415, %v412
      %v476 = vpack.c.b16 %v416, %v413
      %v477 = vpack.c.b16 %v417, %v414
      %v478 = vpack.c.b16 %v421, %v418
      %v479 = vpack.c.b16 %v422, %v419
      %v480 = vpack.c.b16 %v423, %v420
      %v481 = vpack.c.b16 %v427, %v424
      %v482 = vpack.c.b16 %v428, %v425
      %v483 = vpack.c.b16 %v429, %v426
      %v484 = vpack.c.b16 %v433, %v430
      %v485 = vpack.c.b16 %v434, %v431
      %v486 = vpack.c.b16 %v435, %v432
      %v487 = vpack.c.b16 %v439, %v436
      %v488 = vpack.c.b16 %v440, %v437
      %v489 = vpack.c.b16 %v441, %v438
      %v558 = vunpack.c.l.b16 %v242
      %v559 = vunpack.c.l.b16 %v243
      %v560 = vunpack.c.l.b16 %v244
      %v561 = vunpack.c.l.b16 %v245
      %v562 = vunpack.c.l.b16 %v246
      %v563 = vunpack.c.l.b16 %v247
      %v564 = vunpack.c.l.b16 %v248
      %v565 = vunpack.c.l.b16 %v249
      %v566 = vunpack.c.l.b16 %v250
      %v567 = vunpack.c.l.b16 %v251
      %v568 = vunpack.c.l.b16 %v252
      %v569 = vunpack.c.l.b16 %v253
      %v570 = vunpack.c.l.b16 %v254
      %v571 = vunpack.c.l.b16 %v255
      %v572 = vunpack.c.l.b16 %v256
      %v573 = vunpack.c.l.b16 %v257
      %v574 = vunpack.c.l.b16 %v258
      %v575 = vunpack.c.l.b16 %v259
      %v576 = vunpack.c.l.b16 %v260
      %v577 = vunpack.c.l.b16 %v261
      %v578 = vunpack.c.l.b16 %v262
      %v579 = vunpack.c.l.b16 %v263
      %v580 = vunpack.c.l.b16 %v264
      %v581 = vunpack.c.l.b16 %v265
      %v582 = vunpack.c.l.b16 %v266
      %v583 = vunpack.c.l.b16 %v267
      %v584 = vunpack.c.l.b16 %v268
      %v585 = vunpack.c.l.b16 %v269
      %v586 = vunpack.c.l.b16 %v270
      %v587 = vunpack.c.l.b16 %v271
      %v588 = vunpack.c.l.b16 %v272
      %v589 = vunpack.c.l.b16 %v273
      %v590 = vunpack.c.l.b16 %v274
      %v591 = vunpack.c.l.b16 %v275
      %v592 = vunpack.c.l.b16 %v276
      %v593 = vunpack.c.l.b16 %v277
      %v594 = vpack.c.b16 %v559, %v558
      %v595 = vpack.c.b16 %v561, %v560
      %v596 = vpack.c.b16 %v563, %v562
      %v597 = vpack.c.b16 %v565, %v564
      %v598 = vpack.c.b16 %v567, %v566
      %v599 = vpack.c.b16 %v569, %v568
      %v600 = vpack.c.b16 %v571, %v570
      %v601 = vpack.c.b16 %v573, %v572
      %v602 = vpack.c.b16 %v575, %v574
      %v603 = vpack.c.b16 %v577, %v576
      %v604 = vpack.c.b16 %v579, %v578
      %v605 = vpack.c.b16 %v581, %v580
      %v606 = vpack.c.b16 %v583, %v582
      %v607 = vpack.c.b16 %v585, %v584
      %v608 = vpack.c.b16 %v587, %v586
      %v609 = vpack.c.b16 %v589, %v588
      %v610 = vpack.c.b16 %v591, %v590
      %v611 = vpack.c.b16 %v593, %v592
      %vm630 = vcmask 261120
      %v632 = vsel %vm630, %v444, 0
      %v635 = vsel %vm630, %v447, 0
      %v638 = vsel %vm630, %v450, 0
      %v641 = vsel %vm630, %v453, 0
      %v644 = vsel %vm630, %v456, 0
      %v647 = vsel %vm630, %v459, 0
      %v650 = vsel %vm630, %v462, 0
      %v653 = vsel %vm630, %v465, 0
      %v656 = vsel %vm630, %v468, 0
      %v659 = vsel %vm630, %v471, 0
      %v662 = vsel %vm630, %v474, 0
      %v665 = vsel %vm630, %v477, 0
      %v668 = vsel %vm630, %v480, 0
      %v671 = vsel %vm630, %v483, 0
      %v674 = vsel %vm630, %v486, 0
      %v677 = vsel %vm630, %v489, 0
      %679 = vmatpush.bf16.msra.mxu0 %v601
      %680 = vmatpush.bf16.msra.mxu0 %v600
      %681 = vmatpush.bf16.msra.mxu0 %v599
      %682 = vmatpush.bf16.msra.mxu0 %v598
      %683 = vmatpush.bf16.msra.mxu0 %v597
      %684 = vmatpush.bf16.msra.mxu0 %v596
      %685 = vmatpush.bf16.msra.mxu0 %v595
      %686 = vmatpush.bf16.msra.mxu0 %v594
      %687 = vmatmul.bf16.gmra.mxu0 %v442
      %v688 = vpop.f32.mrf.mxu0
      %v689 = vadd.f32 %v280, %v688
      %v690 = vpop.f32.mrf.mxu0
      %v691 = vadd.f32 %v280, %v690
      %692 = vmatmul.bf16.gmra.mxu0 %v445
      %v693 = vpop.f32.mrf.mxu0
      %v694 = vadd.f32 %v280, %v693
      %v695 = vpop.f32.mrf.mxu0
      %v696 = vadd.f32 %v280, %v695
      %697 = vmatmul.bf16.gmra.mxu0 %v448
      %v698 = vpop.f32.mrf.mxu0
      %v699 = vadd.f32 %v280, %v698
      %v700 = vpop.f32.mrf.mxu0
      %v701 = vadd.f32 %v280, %v700
      %702 = vmatmul.bf16.gmra.mxu0 %v451
      %v703 = vpop.f32.mrf.mxu0
      %v704 = vadd.f32 %v280, %v703
      %v705 = vpop.f32.mrf.mxu0
      %v706 = vadd.f32 %v280, %v705
      %707 = vmatmul.bf16.gmra.mxu0 %v454
      %v708 = vpop.f32.mrf.mxu0
      %v709 = vadd.f32 %v280, %v708
      %v710 = vpop.f32.mrf.mxu0
      %v711 = vadd.f32 %v280, %v710
      %712 = vmatmul.bf16.gmra.mxu0 %v457
      %v713 = vpop.f32.mrf.mxu0
      %v714 = vadd.f32 %v280, %v713
      %v715 = vpop.f32.mrf.mxu0
      %v716 = vadd.f32 %v280, %v715
      %717 = vmatmul.bf16.gmra.mxu0 %v460
      %v718 = vpop.f32.mrf.mxu0
      %v719 = vadd.f32 %v280, %v718
      %v720 = vpop.f32.mrf.mxu0
      %v721 = vadd.f32 %v280, %v720
      %722 = vmatmul.bf16.gmra.mxu0 %v463
      %v723 = vpop.f32.mrf.mxu0
      %v724 = vadd.f32 %v280, %v723
      %v725 = vpop.f32.mrf.mxu0
      %v726 = vadd.f32 %v280, %v725
      %727 = vmatmul.bf16.gmra.mxu0 %v466
      %v728 = vpop.f32.mrf.mxu0
      %v729 = vadd.f32 %v280, %v728
      %v730 = vpop.f32.mrf.mxu0
      %v731 = vadd.f32 %v280, %v730
      %732 = vmatmul.bf16.gmra.mxu0 %v469
      %v733 = vpop.f32.mrf.mxu0
      %v734 = vadd.f32 %v280, %v733
      %v735 = vpop.f32.mrf.mxu0
      %v736 = vadd.f32 %v280, %v735
      %737 = vmatmul.bf16.gmra.mxu0 %v472
      %v738 = vpop.f32.mrf.mxu0
      %v739 = vadd.f32 %v280, %v738
      %v740 = vpop.f32.mrf.mxu0
      %v741 = vadd.f32 %v280, %v740
      %742 = vmatmul.bf16.gmra.mxu0 %v475
      %v743 = vpop.f32.mrf.mxu0
      %v744 = vadd.f32 %v280, %v743
      %v745 = vpop.f32.mrf.mxu0
      %v746 = vadd.f32 %v280, %v745
      %747 = vmatmul.bf16.gmra.mxu0 %v478
      %v748 = vpop.f32.mrf.mxu0
      %v749 = vadd.f32 %v280, %v748
      %v750 = vpop.f32.mrf.mxu0
      %v751 = vadd.f32 %v280, %v750
      %752 = vmatmul.bf16.gmra.mxu0 %v481
      %v753 = vpop.f32.mrf.mxu0
      %v754 = vadd.f32 %v280, %v753
      %v755 = vpop.f32.mrf.mxu0
      %v756 = vadd.f32 %v280, %v755
      %757 = vmatmul.bf16.gmra.mxu0 %v484
      %v758 = vpop.f32.mrf.mxu0
      %v759 = vadd.f32 %v280, %v758
      %v760 = vpop.f32.mrf.mxu0
      %v761 = vadd.f32 %v280, %v760
      %762 = vmatmul.bf16.gmra.mxu0 %v487
      %v763 = vpop.f32.mrf.mxu0
      %v764 = vadd.f32 %v280, %v763
      %v765 = vpop.f32.mrf.mxu0
      %v766 = vadd.f32 %v280, %v765
      %767 = vdwg.mxu0
      %768 = vmatpush.bf16.msra.mxu0 %v609
      %769 = vmatpush.bf16.msra.mxu0 %v608
      %770 = vmatpush.bf16.msra.mxu0 %v607
      %771 = vmatpush.bf16.msra.mxu0 %v606
      %772 = vmatpush.bf16.msra.mxu0 %v605
      %773 = vmatpush.bf16.msra.mxu0 %v604
      %774 = vmatpush.bf16.msra.mxu0 %v603
      %775 = vmatpush.bf16.msra.mxu0 %v602
      %776 = vmatmul.bf16.gmra.mxu0 %v443
      %v777 = vpop.f32.mrf.mxu0
      %v778 = vadd.f32 %v689, %v777
      %v779 = vpop.f32.mrf.mxu0
      %v780 = vadd.f32 %v691, %v779
      %781 = vmatmul.bf16.gmra.mxu0 %v446
      %v782 = vpop.f32.mrf.mxu0
      %v783 = vadd.f32 %v694, %v782
      %v784 = vpop.f32.mrf.mxu0
      %v785 = vadd.f32 %v696, %v784
      %786 = vmatmul.bf16.gmra.mxu0 %v449
      %v787 = vpop.f32.mrf.mxu0
      %v788 = vadd.f32 %v699, %v787
      %v789 = vpop.f32.mrf.mxu0
      %v790 = vadd.f32 %v701, %v789
      %791 = vmatmul.bf16.gmra.mxu0 %v452
      %v792 = vpop.f32.mrf.mxu0
      %v793 = vadd.f32 %v704, %v792
      %v794 = vpop.f32.mrf.mxu0
      %v795 = vadd.f32 %v706, %v794
      %796 = vmatmul.bf16.gmra.mxu0 %v455
      %v797 = vpop.f32.mrf.mxu0
      %v798 = vadd.f32 %v709, %v797
      %v799 = vpop.f32.mrf.mxu0
      %v800 = vadd.f32 %v711, %v799
      %801 = vmatmul.bf16.gmra.mxu0 %v458
      %v802 = vpop.f32.mrf.mxu0
      %v803 = vadd.f32 %v714, %v802
      %v804 = vpop.f32.mrf.mxu0
      %v805 = vadd.f32 %v716, %v804
      %806 = vmatmul.bf16.gmra.mxu0 %v461
      %v807 = vpop.f32.mrf.mxu0
      %v808 = vadd.f32 %v719, %v807
      %v809 = vpop.f32.mrf.mxu0
      %v810 = vadd.f32 %v721, %v809
      %811 = vmatmul.bf16.gmra.mxu0 %v464
      %v812 = vpop.f32.mrf.mxu0
      %v813 = vadd.f32 %v724, %v812
      %v814 = vpop.f32.mrf.mxu0
      %v815 = vadd.f32 %v726, %v814
      %816 = vmatmul.bf16.gmra.mxu0 %v467
      %v817 = vpop.f32.mrf.mxu0
      %v818 = vadd.f32 %v729, %v817
      %v819 = vpop.f32.mrf.mxu0
      %v820 = vadd.f32 %v731, %v819
      %821 = vmatmul.bf16.gmra.mxu0 %v470
      %v822 = vpop.f32.mrf.mxu0
      %v823 = vadd.f32 %v734, %v822
      %v824 = vpop.f32.mrf.mxu0
      %v825 = vadd.f32 %v736, %v824
      %826 = vmatmul.bf16.gmra.mxu0 %v473
      %v827 = vpop.f32.mrf.mxu0
      %v828 = vadd.f32 %v739, %v827
      %v829 = vpop.f32.mrf.mxu0
      %v830 = vadd.f32 %v741, %v829
      %831 = vmatmul.bf16.gmra.mxu0 %v476
      %v832 = vpop.f32.mrf.mxu0
      %v833 = vadd.f32 %v744, %v832
      %v834 = vpop.f32.mrf.mxu0
      %v835 = vadd.f32 %v746, %v834
      %836 = vmatmul.bf16.gmra.mxu0 %v479
      %v837 = vpop.f32.mrf.mxu0
      %v838 = vadd.f32 %v749, %v837
      %v839 = vpop.f32.mrf.mxu0
      %v840 = vadd.f32 %v751, %v839
      %841 = vmatmul.bf16.gmra.mxu0 %v482
      %v842 = vpop.f32.mrf.mxu0
      %v843 = vadd.f32 %v754, %v842
      %v844 = vpop.f32.mrf.mxu0
      %v845 = vadd.f32 %v756, %v844
      %846 = vmatmul.bf16.gmra.mxu0 %v485
      %v847 = vpop.f32.mrf.mxu0
      %v848 = vadd.f32 %v759, %v847
      %v849 = vpop.f32.mrf.mxu0
      %v850 = vadd.f32 %v761, %v849
      %851 = vmatmul.bf16.gmra.mxu0 %v488
      %v852 = vpop.f32.mrf.mxu0
      %v853 = vadd.f32 %v764, %v852
      %v854 = vpop.f32.mrf.mxu0
      %v855 = vadd.f32 %v766, %v854
      %856 = vdwg.mxu0
      %857 = vmatpush.bf16.msra.mxu0 0
      %858 = vmatpush.bf16.msra.mxu0 0
      %859 = vmatpush.bf16.msra.mxu0 0
      %860 = vmatpush.bf16.msra.mxu0 0
      %861 = vmatpush.bf16.msra.mxu0 0
      %862 = vmatpush.bf16.msra.mxu0 0
      %863 = vmatpush.bf16.msra.mxu0 %v611
      %864 = vmatpush.bf16.msra.mxu0 %v610
      %865 = vmatmul.bf16.gmra.mxu0 %v632
      %v866 = vpop.f32.mrf.mxu0
      %v867 = vadd.f32 %v778, %v866
      %v868 = vpop.f32.mrf.mxu0
      %v869 = vadd.f32 %v780, %v868
      %870 = vmatmul.bf16.gmra.mxu0 %v635
      %v871 = vpop.f32.mrf.mxu0
      %v872 = vadd.f32 %v783, %v871
      %v873 = vpop.f32.mrf.mxu0
      %v874 = vadd.f32 %v785, %v873
      %875 = vmatmul.bf16.gmra.mxu0 %v638
      %v876 = vpop.f32.mrf.mxu0
      %v877 = vadd.f32 %v788, %v876
      %v878 = vpop.f32.mrf.mxu0
      %v879 = vadd.f32 %v790, %v878
      %880 = vmatmul.bf16.gmra.mxu0 %v641
      %v881 = vpop.f32.mrf.mxu0
      %v882 = vadd.f32 %v793, %v881
      %v883 = vpop.f32.mrf.mxu0
      %v884 = vadd.f32 %v795, %v883
      %885 = vmatmul.bf16.gmra.mxu0 %v644
      %v886 = vpop.f32.mrf.mxu0
      %v887 = vadd.f32 %v798, %v886
      %v888 = vpop.f32.mrf.mxu0
      %v889 = vadd.f32 %v800, %v888
      %890 = vmatmul.bf16.gmra.mxu0 %v647
      %v891 = vpop.f32.mrf.mxu0
      %v892 = vadd.f32 %v803, %v891
      %v893 = vpop.f32.mrf.mxu0
      %v894 = vadd.f32 %v805, %v893
      %895 = vmatmul.bf16.gmra.mxu0 %v650
      %v896 = vpop.f32.mrf.mxu0
      %v897 = vadd.f32 %v808, %v896
      %v898 = vpop.f32.mrf.mxu0
      %v899 = vadd.f32 %v810, %v898
      %900 = vmatmul.bf16.gmra.mxu0 %v653
      %v901 = vpop.f32.mrf.mxu0
      %v902 = vadd.f32 %v813, %v901
      %v903 = vpop.f32.mrf.mxu0
      %v904 = vadd.f32 %v815, %v903
      %905 = vmatmul.bf16.gmra.mxu0 %v656
      %v906 = vpop.f32.mrf.mxu0
      %v907 = vadd.f32 %v818, %v906
      %v908 = vpop.f32.mrf.mxu0
      %v909 = vadd.f32 %v820, %v908
      %910 = vmatmul.bf16.gmra.mxu0 %v659
      %v911 = vpop.f32.mrf.mxu0
      %v912 = vadd.f32 %v823, %v911
      %v913 = vpop.f32.mrf.mxu0
      %v914 = vadd.f32 %v825, %v913
      %915 = vmatmul.bf16.gmra.mxu0 %v662
      %v916 = vpop.f32.mrf.mxu0
      %v917 = vadd.f32 %v828, %v916
      %v918 = vpop.f32.mrf.mxu0
      %v919 = vadd.f32 %v830, %v918
      %920 = vmatmul.bf16.gmra.mxu0 %v665
      %v921 = vpop.f32.mrf.mxu0
      %v922 = vadd.f32 %v833, %v921
      %v923 = vpop.f32.mrf.mxu0
      %v924 = vadd.f32 %v835, %v923
      %925 = vmatmul.bf16.gmra.mxu0 %v668
      %v926 = vpop.f32.mrf.mxu0
      %v927 = vadd.f32 %v838, %v926
      %v928 = vpop.f32.mrf.mxu0
      %v929 = vadd.f32 %v840, %v928
      %930 = vmatmul.bf16.gmra.mxu0 %v671
      %v931 = vpop.f32.mrf.mxu0
      %v932 = vadd.f32 %v843, %v931
      %v933 = vpop.f32.mrf.mxu0
      %v934 = vadd.f32 %v845, %v933
      %935 = vmatmul.bf16.gmra.mxu0 %v674
      %v936 = vpop.f32.mrf.mxu0
      %v937 = vadd.f32 %v848, %v936
      %v938 = vpop.f32.mrf.mxu0
      %v939 = vadd.f32 %v850, %v938
      %940 = vmatmul.bf16.gmra.mxu0 %v677
      %v941 = vpop.f32.mrf.mxu0
      %v942 = vadd.f32 %v853, %v941
      %v943 = vpop.f32.mrf.mxu0
      %v944 = vadd.f32 %v855, %v943
      %945 = vdwg.mxu0
      %v946 = vmax.f32 %v867, 0.0
      %v947 = vmax.f32 %v869, 0.0
      %v948 = vmax.f32 %v872, 0.0
      %v949 = vmax.f32 %v874, 0.0
      %v950 = vmax.f32 %v877, 0.0
      %v951 = vmax.f32 %v879, 0.0
      %v952 = vmax.f32 %v882, 0.0
      %v953 = vmax.f32 %v884, 0.0
      %v954 = vmax.f32 %v887, 0.0
      %v955 = vmax.f32 %v889, 0.0
      %v956 = vmax.f32 %v892, 0.0
      %v957 = vmax.f32 %v894, 0.0
      %v958 = vmax.f32 %v897, 0.0
      %v959 = vmax.f32 %v899, 0.0
      %v960 = vmax.f32 %v902, 0.0
      %v961 = vmax.f32 %v904, 0.0
      %v962 = vmax.f32 %v907, 0.0
      %v963 = vmax.f32 %v909, 0.0
      %v964 = vmax.f32 %v912, 0.0
      %v965 = vmax.f32 %v914, 0.0
      %v966 = vmax.f32 %v917, 0.0
      %v967 = vmax.f32 %v919, 0.0
      %v968 = vmax.f32 %v922, 0.0
      %v969 = vmax.f32 %v924, 0.0
      %v970 = vmax.f32 %v927, 0.0
      %v971 = vmax.f32 %v929, 0.0
      %v972 = vmax.f32 %v932, 0.0
      %v973 = vmax.f32 %v934, 0.0
      %v974 = vmax.f32 %v937, 0.0
      %v975 = vmax.f32 %v939, 0.0
      %v976 = vmax.f32 %v942, 0.0
      %v977 = vmax.f32 %v944, 0.0
      %v978 = vpack.c.bf16 %v946, %v946
      %v979 = vpack.c.bf16 %v947, %v947
      %v980 = vpack.c.bf16 %v948, %v948
      %v981 = vpack.c.bf16 %v949, %v949
      %v982 = vpack.c.bf16 %v950, %v950
      %v983 = vpack.c.bf16 %v951, %v951
      %v984 = vpack.c.bf16 %v952, %v952
      %v985 = vpack.c.bf16 %v953, %v953
      %v986 = vpack.c.bf16 %v954, %v954
      %v987 = vpack.c.bf16 %v955, %v955
      %v988 = vpack.c.bf16 %v956, %v956
      %v989 = vpack.c.bf16 %v957, %v957
      %v990 = vpack.c.bf16 %v958, %v958
      %v991 = vpack.c.bf16 %v959, %v959
      %v992 = vpack.c.bf16 %v960, %v960
      %v993 = vpack.c.bf16 %v961, %v961
      %v994 = vpack.c.bf16 %v962, %v962
      %v995 = vpack.c.bf16 %v963, %v963
      %v996 = vpack.c.bf16 %v964, %v964
      %v997 = vpack.c.bf16 %v965, %v965
      %v998 = vpack.c.bf16 %v966, %v966
      %v999 = vpack.c.bf16 %v967, %v967
      %v1000 = vpack.c.bf16 %v968, %v968
      %v1001 = vpack.c.bf16 %v969, %v969
      %v1002 = vpack.c.bf16 %v970, %v970
      %v1003 = vpack.c.bf16 %v971, %v971
      %v1004 = vpack.c.bf16 %v972, %v972
      %v1005 = vpack.c.bf16 %v973, %v973
      %v1006 = vpack.c.bf16 %v974, %v974
      %v1007 = vpack.c.bf16 %v975, %v975
      %v1008 = vpack.c.bf16 %v976, %v976
      %v1009 = vpack.c.bf16 %v977, %v977
      %vm1010 = vcmask 257024
      %1011 = vst.msk [vmem:[%s175] sm:$0xf] %vm1010, %v978
      %1012 = vst.msk [vmem:[%s175 + $0x4] sm:$0xf] %vm1010, %v979
      %1013 = vst.msk [vmem:[%s175 + $0x8] sm:$0xf] %vm1010, %v980
      %1014 = vst.msk [vmem:[%s175 + $0xc] sm:$0xf] %vm1010, %v981
      %1015 = vst.msk [vmem:[%s175 + $0x10] sm:$0xf] %vm1010, %v982
      %1016 = vst.msk [vmem:[%s175 + $0x14] sm:$0xf] %vm1010, %v983
      %1017 = vst.msk [vmem:[%s175 + $0x18] sm:$0xf] %vm1010, %v984
      %1018 = vst.msk [vmem:[%s175 + $0x1c] sm:$0xf] %vm1010, %v985
      %1019 = vst.msk [vmem:[%s175 + $0x20] sm:$0xf] %vm1010, %v986
      %1020 = vst.msk [vmem:[%s175 + $0x24] sm:$0xf] %vm1010, %v987
      %1021 = vst.msk [vmem:[%s175 + $0x28] sm:$0xf] %vm1010, %v988
      %1022 = vst.msk [vmem:[%s175 + $0x2c] sm:$0xf] %vm1010, %v989
      %1023 = vst.msk [vmem:[%s175 + $0x30] sm:$0xf] %vm1010, %v990
      %1024 = vst.msk [vmem:[%s175 + $0x34] sm:$0xf] %vm1010, %v991
      %1025 = vst.msk [vmem:[%s175 + $0x38] sm:$0xf] %vm1010, %v992
      %1026 = vst.msk [vmem:[%s175 + $0x3c] sm:$0xf] %vm1010, %v993
      %1027 = vst.msk [vmem:[%s175 + $0x40] sm:$0xf] %vm1010, %v994
      %1028 = vst.msk [vmem:[%s175 + $0x44] sm:$0xf] %vm1010, %v995
      %1029 = vst.msk [vmem:[%s175 + $0x48] sm:$0xf] %vm1010, %v996
      %1030 = vst.msk [vmem:[%s175 + $0x4c] sm:$0xf] %vm1010, %v997
      %1031 = vst.msk [vmem:[%s175 + $0x50] sm:$0xf] %vm1010, %v998
      %1032 = vst.msk [vmem:[%s175 + $0x54] sm:$0xf] %vm1010, %v999
      %1033 = vst.msk [vmem:[%s175 + $0x58] sm:$0xf] %vm1010, %v1000
      %1034 = vst.msk [vmem:[%s175 + $0x5c] sm:$0xf] %vm1010, %v1001
      %1035 = vst.msk [vmem:[%s175 + $0x60] sm:$0xf] %vm1010, %v1002
      %1036 = vst.msk [vmem:[%s175 + $0x64] sm:$0xf] %vm1010, %v1003
      %1037 = vst.msk [vmem:[%s175 + $0x68] sm:$0xf] %vm1010, %v1004
      %1038 = vst.msk [vmem:[%s175 + $0x6c] sm:$0xf] %vm1010, %v1005
      %1039 = vst.msk [vmem:[%s175 + $0x70] sm:$0xf] %vm1010, %v1006
      %1040 = vst.msk [vmem:[%s175 + $0x74] sm:$0xf] %vm1010, %v1007
      %1041 = vst.msk [vmem:[%s175 + $0x78] sm:$0xf] %vm1010, %v1008
      %1042 = vst.msk [vmem:[%s175 + $0x7c] sm:$0xf] %vm1010, %v1009
      %s1043 = smul.u32 32, %s14
      %p1044 = scmp.lt.s32.totalorder %s1043, 63
      %s1045 = scalar_select %p1044, %s1043, 63
      %s1046 = smul.addr %s1045, 4
      %s1047 = scalar_lea.vmem %s3, %s1046
      // Predicated region
      $region33: #{curve_estimation_forward.8} parent=31 // pred_check
        %p1048 = pneg %p100
      $region34: #{curve_estimation_forward.8} parent=31 // pred_check_branch
        %1050 = sbr.rel (%p1048) target = $region36
      $region35: #{curve_estimation_forward.8} parent=31 // pred_region
        %s1051 = smul.u32 32, %s14
      $region36: #{curve_estimation_forward.8} parent=31 // pred_fallthru
        _
    $region32: #{curve_estimation_forward.8} parent=5 // pred_fallthru
      _
    %p1052 = scmp.le.s32.totalorder 2, %s9
    // Predicated region
    $region37: #{curve_estimation_forward.8} parent=5 // pred_check
      %p1053 = pneg %p1052
    $region38: #{curve_estimation_forward.8} parent=5 // pred_check_branch
      %1055 = sbr.rel (%p1053) target = $region40
    $region39: #{curve_estimation_forward.8} parent=5 // pred_region
      %s1056 = ssub.s32 %s9, 2
      // Predicated region
      $region41: #{curve_estimation_forward.8} parent=39 // pred_check
        %p1057 = pneg %p106
      $region42: #{curve_estimation_forward.8} parent=39 // pred_check_branch
        %1059 = sbr.rel (%p1057) target = $region44
      $region43: #{curve_estimation_forward.8} parent=39 // pred_region
        %s1060 = smul.u32 32, %s15
        %p1061 = scmp.lt.s32.totalorder %s1060, 63
        %s1062 = scalar_select %p1061, %s1060, 63
        %s1063 = smul.addr %s1062, 4
        %s1064 = scalar_lea.vmem %s3, %s1063
      $region44: #{curve_estimation_forward.8} parent=39 // pred_fallthru
        _
    $region40: #{curve_estimation_forward.8} parent=5 // pred_fallthru
      _
  $region6: #{curve_estimation_forward.8} parent=0 // loop_footer
    %s13 = sadd.s32 1, %s9
  $region7: #{curve_estimation_forward.8} parent=0 // loop_footer_branch
    %8 = sbr.rel target = $region3
  $region8: #{curve_estimation_forward.8} parent=0 // loop_exit
    _

// kernel: curve_estimation_forward.11
$region0: #{curve_estimation_forward.11}
  #allocation0 [shape = 'u32[]', space=smem, size = 0x4, offset = 0x4, fixed_abs, tag = 'smem constant byte address 0x4 - core index']
  #allocation1 [shape = 'u32[72,128]{1,0:T(1,128)}', space=vmem, size = 0x9000, scoped, tag = 'internal scratch']
  %s0 = inlined_call_operand.vmem [shape: bf16[512,576], index: 0, kind: input, shape index: {}]
  %s1 = inlined_call_operand.vmem [shape: bf16[576,32], index: 1, kind: input, shape index: {}]
  %s2 = inlined_call_operand.vmem [shape: f32[1,32], index: 2, kind: input, shape index: {}]
  %s3 = inlined_call_operand.vmem [shape: bf16[512,32], index: 3, kind: output, shape index: {}]
  %s4 = sld [smem:[#allocation0]]
  $region45: #{curve_estimation_forward.11} parent=0
    _
  %s6 = ssub.s32 1, %s4
  %s7 = scalar_select 0, %s6, %s4
  loop: start=0, step=1, limit=4
  $region2: #{curve_estimation_forward.11} parent=0 // loop_pre_header
    _
  $region3: #{curve_estimation_forward.11} parent=0 // loop_header
    %s9 = sphi 0, %s13
    %p10 = scmp.ge.s32.totalorder %s9, 4
    %s19 = sphi 0, %s21
    %s22 = sphi 0, %s19
    %s23 = sphi 0, %s22
    %s39 = sphi 0, %s23
    %s43 = sphi 0, %s43
    %s45 = sphi 0, %s43
    %s46 = sphi 0, %s45
    %s60 = sphi 0, %s46
    %s64 = sphi 0, %s64
    %s66 = sphi 0, %s64
    %s67 = sphi 0, %s66
    %s81 = sphi 0, %s67
    %s87 = sphi 0, %s89
    %s90 = sphi 0, %s87
    %s91 = sphi 0, %s90
    %s107 = sphi 0, %s91
  $region4: #{curve_estimation_forward.11} parent=0 // loop_header_branch
    %12 = sbr.rel (%p10) target = $region8
  $region5: #{curve_estimation_forward.11} parent=0 // loop_body
    %s14 = ssub.s32 %s9, 1
    %s15 = ssub.s32 %s9, 2
    %s16 = sadd.s32 %s9, 1
    %s17 = ssub.s32 %s9, %s16
    %p18 = scmp.eq.s32.totalorder %s17, 0
    %s20 = sadd.s32 %s19, 1
    %s21 = scalar_select %p18, %s19, %s20
    %p24 = pneg %p18
    %p25 = scmp.eq.s32.totalorder %s9, 1
    %p26 = por %p24, %p25
    %p27 = scmp.ne.s32.totalorder %s19, %s22
    %p28 = scmp.eq.s32.totalorder %s9, 0
    %p29 = por %p27, %p28
    %p30 = scmp.ne.s32.totalorder %s19, %s22
    %p31 = scmp.eq.s32.totalorder %s14, 1
    %p32 = por %p30, %p31
    %p33 = scmp.ne.s32.totalorder %s22, %s23
    %p34 = scmp.eq.s32.totalorder %s14, 0
    %p35 = por %p33, %p34
    %p36 = scmp.ne.s32.totalorder %s22, %s23
    %p37 = scmp.eq.s32.totalorder %s15, 1
    %p38 = por %p36, %p37
    %p40 = scmp.ne.s32.totalorder %s23, %s39
    %p41 = scmp.eq.s32.totalorder %s15, 0
    %p42 = por %p40, %p41
    %s44 = sadd.s32 %s43, 1
    %p47 = scmp.eq.s32.totalorder %s9, 1
    %p48 = scmp.ne.s32.totalorder %s43, %s45
    %p49 = scmp.eq.s32.totalorder %s9, 0
    %p50 = por %p48, %p49
    %p51 = scmp.ne.s32.totalorder %s43, %s45
    %p52 = scmp.eq.s32.totalorder %s14, 1
    %p53 = por %p51, %p52
    %p54 = scmp.ne.s32.totalorder %s45, %s46
    %p55 = scmp.eq.s32.totalorder %s14, 0
    %p56 = por %p54, %p55
    %p57 = scmp.ne.s32.totalorder %s45, %s46
    %p58 = scmp.eq.s32.totalorder %s15, 1
    %p59 = por %p57, %p58
    %p61 = scmp.ne.s32.totalorder %s46, %s60
    %p62 = scmp.eq.s32.totalorder %s15, 0
    %p63 = por %p61, %p62
    %s65 = sadd.s32 %s64, 1
    %p68 = scmp.eq.s32.totalorder %s9, 1
    %p69 = scmp.ne.s32.totalorder %s64, %s66
    %p70 = scmp.eq.s32.totalorder %s9, 0
    %p71 = por %p69, %p70
    %p72 = scmp.ne.s32.totalorder %s64, %s66
    %p73 = scmp.eq.s32.totalorder %s14, 1
    %p74 = por %p72, %p73
    %p75 = scmp.ne.s32.totalorder %s66, %s67
    %p76 = scmp.eq.s32.totalorder %s14, 0
    %p77 = por %p75, %p76
    %p78 = scmp.ne.s32.totalorder %s66, %s67
    %p79 = scmp.eq.s32.totalorder %s15, 1
    %p80 = por %p78, %p79
    %p82 = scmp.ne.s32.totalorder %s67, %s81
    %p83 = scmp.eq.s32.totalorder %s15, 0
    %p84 = por %p82, %p83
    %s85 = ssub.s32 %s9, %s16
    %p86 = scmp.eq.s32.totalorder %s85, 0
    %s88 = sadd.s32 %s87, 1
    %s89 = scalar_select %p86, %s87, %s88
    %p92 = pneg %p86
    %p93 = scmp.eq.s32.totalorder %s9, 1
    %p94 = por %p92, %p93
    %p95 = scmp.ne.s32.totalorder %s87, %s90
    %p96 = scmp.eq.s32.totalorder %s9, 0
    %p97 = por %p95, %p96
    %p98 = scmp.ne.s32.totalorder %s87, %s90
    %p99 = scmp.eq.s32.totalorder %s14, 1
    %p100 = por %p98, %p99
    %p101 = scmp.ne.s32.totalorder %s90, %s91
    %p102 = scmp.eq.s32.totalorder %s14, 0
    %p103 = por %p101, %p102
    %p104 = scmp.ne.s32.totalorder %s90, %s91
    %p105 = scmp.eq.s32.totalorder %s15, 1
    %p106 = por %p104, %p105
    %p108 = scmp.ne.s32.totalorder %s91, %s107
    %p109 = scmp.eq.s32.totalorder %s15, 0
    %p110 = por %p108, %p109
    %p111 = scmp.le.s32.totalorder 1, %s9
    %p112 = scmp.lt.s32.totalorder %s9, 3
    %p113 = pnand %p111, %p112
    %p114 = pneg %p113
    // Predicated region
    $region9: #{curve_estimation_forward.11} parent=5 // pred_check
      _
    $region10: #{curve_estimation_forward.11} parent=5 // pred_check_branch
      %116 = sbr.rel (%p113) target = $region12
    $region11: #{curve_estimation_forward.11} parent=5 // pred_region
      %s117 = ssub.s32 %s9, 1
      // Predicated region
      $region13: #{curve_estimation_forward.11} parent=11 // pred_check
        %p118 = pneg %p56
      $region14: #{curve_estimation_forward.11} parent=11 // pred_check_branch
        %120 = sbr.rel (%p118) target = $region16
      $region15: #{curve_estimation_forward.11} parent=11 // pred_region
        _
      $region16: #{curve_estimation_forward.11} parent=11 // pred_fallthru
        _
      // Predicated region
      $region17: #{curve_estimation_forward.11} parent=11 // pred_check
        %p121 = pneg %p77
      $region18: #{curve_estimation_forward.11} parent=11 // pred_check_branch
        %123 = sbr.rel (%p121) target = $region20
      $region19: #{curve_estimation_forward.11} parent=11 // pred_region
        _
      $region20: #{curve_estimation_forward.11} parent=11 // pred_fallthru
        _
    $region12: #{curve_estimation_forward.11} parent=5 // pred_fallthru
      _
    %p124 = scmp.lt.s32.totalorder %s9, 2
    // Predicated region
    $region21: #{curve_estimation_forward.11} parent=5 // pred_check
      %p125 = pneg %p124
    $region22: #{curve_estimation_forward.11} parent=5 // pred_check_branch
      %127 = sbr.rel (%p125) target = $region24
    $region23: #{curve_estimation_forward.11} parent=5 // pred_region
      // Predicated region
      $region25: #{curve_estimation_forward.11} parent=23 // pred_check
        %p128 = pneg %p29
      $region26: #{curve_estimation_forward.11} parent=23 // pred_check_branch
        %130 = sbr.rel (%p128) target = $region28
      $region27: #{curve_estimation_forward.11} parent=23 // pred_region
        %s131 = smul.u32 32, %s9
        %p132 = scmp.lt.s32.totalorder %s131, 63
        %s133 = scalar_select %p132, %s131, 63
        %s134 = smul.addr %s133, 5
        %s135 = smul.addr %s134, 4
        %s136 = scalar_lea.vmem %s0, %s135
        %s137 = smul.u32 32, %s9
      $region28: #{curve_estimation_forward.11} parent=23 // pred_fallthru
        _
    $region24: #{curve_estimation_forward.11} parent=5 // pred_fallthru
      _
    %p138 = scmp.le.s32.totalorder 1, %s9
    %p139 = scmp.lt.s32.totalorder %s9, 3
    %p140 = pnand %p138, %p139
    %p141 = pneg %p140
    // Predicated region
    $region29: #{curve_estimation_forward.11} parent=5 // pred_check
      _
    $region30: #{curve_estimation_forward.11} parent=5 // pred_check_branch
      %143 = sbr.rel (%p140) target = $region32
    $region31: #{curve_estimation_forward.11} parent=5 // pred_region
      %s144 = ssub.s32 %s9, 1
      %s145 = smul.u32 32, %s14
      %p146 = scmp.lt.s32.totalorder %s145, 63
      %s147 = scalar_select %p146, %s145, 63
      %s148 = smul.addr %s147, 5
      %s149 = smul.addr %s148, 4
      %s150 = scalar_lea.vmem %s0, %s149
      %p151 = pneg %p35
      %p152 = pneg %p32
      %p153 = pneg %p56
      %p154 = pneg %p53
      %p155 = pneg %p77
      %p156 = pneg %p74
      %p157 = pneg %p103
      %p158 = pneg %p100
      %s159 = smul.u32 32, %s14
      %p160 = scmp.lt.s32.totalorder %s159, 63
      %s161 = scalar_select %p160, %s159, 63
      %s162 = smul.addr %s161, 4
      %s163 = scalar_lea.vmem %s3, %s162
      %s164 = smul.u32 32, %s14
      %p165 = scmp.lt.s32.totalorder %s164, 63
      %s166 = scalar_select %p165, %s164, 63
      %s167 = smul.addr %s166, 5
      %s168 = smul.addr %s167, 4
      %s169 = scalar_lea.vmem %s0, %s168
      %s170 = smul.u32 32, %s14
      %s171 = smul.u32 32, %s14
      %p172 = scmp.lt.s32.totalorder %s171, 63
      %s173 = scalar_select %p172, %s171, 63
      %s174 = smul.addr %s173, 4
      %s175 = scalar_lea.vmem %s3, %s174
      %s176 = smul.u32 32, %s14
      %v178 = vld [vmem:[%s169] sm:$0xff]
      %v179 = vld [vmem:[%s169 + $0x8] sm:$0xff]
      %v180 = vld [vmem:[%s169 + $0x10] sm:$0xf]
      %v181 = vld [vmem:[%s169 + $0x14] sm:$0xff]
      %v182 = vld [vmem:[%s169 + $0x1c] sm:$0xff]
      %v183 = vld [vmem:[%s169 + $0x24] sm:$0xf]
      %v184 = vld [vmem:[%s169 + $0x28] sm:$0xff]
      %v185 = vld [vmem:[%s169 + $0x30] sm:$0xff]
      %v186 = vld [vmem:[%s169 + $0x38] sm:$0xf]
      %v187 = vld [vmem:[%s169 + $0x3c] sm:$0xff]
      %v188 = vld [vmem:[%s169 + $0x44] sm:$0xff]
      %v189 = vld [vmem:[%s169 + $0x4c] sm:$0xf]
      %v190 = vld [vmem:[%s169 + $0x50] sm:$0xff]
      %v191 = vld [vmem:[%s169 + $0x58] sm:$0xff]
      %v192 = vld [vmem:[%s169 + $0x60] sm:$0xf]
      %v193 = vld [vmem:[%s169 + $0x64] sm:$0xff]
      %v194 = vld [vmem:[%s169 + $0x6c] sm:$0xff]
      %v195 = vld [vmem:[%s169 + $0x74] sm:$0xf]
      %v196 = vld [vmem:[%s169 + $0x78] sm:$0xff]
      %v197 = vld [vmem:[%s169 + $0x80] sm:$0xff]
      %v198 = vld [vmem:[%s169 + $0x88] sm:$0xf]
      %v199 = vld [vmem:[%s169 + $0x8c] sm:$0xff]
      %v200 = vld [vmem:[%s169 + $0x94] sm:$0xff]
      %v201 = vld [vmem:[%s169 + $0x9c] sm:$0xf]
      %v202 = vld [vmem:[%s169 + $0xa0] sm:$0xff]
      %v203 = vld [vmem:[%s169 + $0xa8] sm:$0xff]
      %v204 = vld [vmem:[%s169 + $0xb0] sm:$0xf]
      %v205 = vld [vmem:[%s169 + $0xb4] sm:$0xff]
      %v206 = vld [vmem:[%s169 + $0xbc] sm:$0xff]
      %v207 = vld [vmem:[%s169 + $0xc4] sm:$0xf]
      %v208 = vld [vmem:[%s169 + $0xc8] sm:$0xff]
      %v209 = vld [vmem:[%s169 + $0xd0] sm:$0xff]
      %v210 = vld [vmem:[%s169 + $0xd8] sm:$0xf]
      %v211 = vld [vmem:[%s169 + $0xdc] sm:$0xff]
      %v212 = vld [vmem:[%s169 + $0xe4] sm:$0xff]
      %v213 = vld [vmem:[%s169 + $0xec] sm:$0xf]
      %v214 = vld [vmem:[%s169 + $0xf0] sm:$0xff]
      %v215 = vld [vmem:[%s169 + $0xf8] sm:$0xff]
      %v216 = vld [vmem:[%s169 + $0x100] sm:$0xf]
      %v217 = vld [vmem:[%s169 + $0x104] sm:$0xff]
      %v218 = vld [vmem:[%s169 + $0x10c] sm:$0xff]
      %v219 = vld [vmem:[%s169 + $0x114] sm:$0xf]
      %v220 = vld [vmem:[%s169 + $0x118] sm:$0xff]
      %v221 = vld [vmem:[%s169 + $0x120] sm:$0xff]
      %v222 = vld [vmem:[%s169 + $0x128] sm:$0xf]
      %v223 = vld [vmem:[%s169 + $0x12c] sm:$0xff]
      %v224 = vld [vmem:[%s169 + $0x134] sm:$0xff]
      %v225 = vld [vmem:[%s169 + $0x13c] sm:$0xf]
      %v226 = vld [vmem:[%s169 + $0x140] sm:$0xff]
      %v227 = vld [vmem:[%s169 + $0x148] sm:$0xff]
      %v228 = vld [vmem:[%s169 + $0x150] sm:$0xf]
      %v229 = vld [vmem:[%s169 + $0x154] sm:$0xff]
      %v230 = vld [vmem:[%s169 + $0x15c] sm:$0xff]
      %v231 = vld [vmem:[%s169 + $0x164] sm:$0xf]
      %v232 = vld [vmem:[%s169 + $0x168] sm:$0xff]
      %v233 = vld [vmem:[%s169 + $0x170] sm:$0xff]
      %v234 = vld [vmem:[%s169 + $0x178] sm:$0xf]
      %v235 = vld [vmem:[%s169 + $0x17c] sm:$0xff]
      %v236 = vld [vmem:[%s169 + $0x184] sm:$0xff]
      %v237 = vld [vmem:[%s169 + $0x18c] sm:$0xf]
      %v238 = vld [vmem:[%s169 + $0x190] sm:$0xff]
      %v239 = vld [vmem:[%s169 + $0x198] sm:$0xff]
      %v240 = vld [vmem:[%s169 + $0x1a0] sm:$0xf]
      %v241 = vld [vmem:[%s169 + $0x1a4] sm:$0xff]
      %v242 = vld [vmem:[%s169 + $0x1ac] sm:$0xff]
      %v243 = vld [vmem:[%s169 + $0x1b4] sm:$0xf]
      %v244 = vld [vmem:[%s169 + $0x1b8] sm:$0xff]
      %v245 = vld [vmem:[%s169 + $0x1c0] sm:$0xff]
      %v246 = vld [vmem:[%s169 + $0x1c8] sm:$0xf]
      %v247 = vld [vmem:[%s169 + $0x1cc] sm:$0xff]
      %v248 = vld [vmem:[%s169 + $0x1d4] sm:$0xff]
      %v249 = vld [vmem:[%s169 + $0x1dc] sm:$0xf]
      %v250 = vld [vmem:[%s169 + $0x1e0] sm:$0xff]
      %v251 = vld [vmem:[%s169 + $0x1e8] sm:$0xff]
      %v252 = vld [vmem:[%s169 + $0x1f0] sm:$0xf]
      %v253 = vld [vmem:[%s169 + $0x1f4] sm:$0xff]
      %v254 = vld [vmem:[%s169 + $0x1fc] sm:$0xff]
      %v255 = vld [vmem:[%s169 + $0x204] sm:$0xf]
      %v256 = vld [vmem:[%s169 + $0x208] sm:$0xff]
      %v257 = vld [vmem:[%s169 + $0x210] sm:$0xff]
      %v258 = vld [vmem:[%s169 + $0x218] sm:$0xf]
      %v259 = vld [vmem:[%s169 + $0x21c] sm:$0xff]
      %v260 = vld [vmem:[%s169 + $0x224] sm:$0xff]
      %v261 = vld [vmem:[%s169 + $0x22c] sm:$0xf]
      %v262 = vld [vmem:[%s169 + $0x230] sm:$0xff]
      %v263 = vld [vmem:[%s169 + $0x238] sm:$0xff]
      %v264 = vld [vmem:[%s169 + $0x240] sm:$0xf]
      %v265 = vld [vmem:[%s169 + $0x244] sm:$0xff]
      %v266 = vld [vmem:[%s169 + $0x24c] sm:$0xff]
      %v267 = vld [vmem:[%s169 + $0x254] sm:$0xf]
      %v268 = vld [vmem:[%s169 + $0x258] sm:$0xff]
      %v269 = vld [vmem:[%s169 + $0x260] sm:$0xff]
      %v270 = vld [vmem:[%s169 + $0x268] sm:$0xf]
      %v271 = vld [vmem:[%s169 + $0x26c] sm:$0xff]
      %v272 = vld [vmem:[%s169 + $0x274] sm:$0xff]
      %v273 = vld [vmem:[%s169 + $0x27c] sm:$0xf]
      %v274 = vld [vmem:[%s1] sm:$0xf]
      %v275 = vld [vmem:[%s1 + $0x4] sm:$0xf]
      %v276 = vld [vmem:[%s1 + $0x8] sm:$0xf]
      %v277 = vld [vmem:[%s1 + $0xc] sm:$0xf]
      %v278 = vld [vmem:[%s1 + $0x10] sm:$0xf]
      %v279 = vld [vmem:[%s1 + $0x14] sm:$0xf]
      %v280 = vld [vmem:[%s1 + $0x18] sm:$0xf]
      %v281 = vld [vmem:[%s1 + $0x1c] sm:$0xf]
      %v282 = vld [vmem:[%s1 + $0x20] sm:$0xf]
      %v283 = vld [vmem:[%s1 + $0x24] sm:$0xf]
      %v284 = vld [vmem:[%s1 + $0x28] sm:$0xf]
      %v285 = vld [vmem:[%s1 + $0x2c] sm:$0xf]
      %v286 = vld [vmem:[%s1 + $0x30] sm:$0xf]
      %v287 = vld [vmem:[%s1 + $0x34] sm:$0xf]
      %v288 = vld [vmem:[%s1 + $0x38] sm:$0xf]
      %v289 = vld [vmem:[%s1 + $0x3c] sm:$0xf]
      %v290 = vld [vmem:[%s1 + $0x40] sm:$0xf]
      %v291 = vld [vmem:[%s1 + $0x44] sm:$0xf]
      %v292 = vld [vmem:[%s1 + $0x48] sm:$0xf]
      %v293 = vld [vmem:[%s1 + $0x4c] sm:$0xf]
      %v294 = vld [vmem:[%s1 + $0x50] sm:$0xf]
      %v295 = vld [vmem:[%s1 + $0x54] sm:$0xf]
      %v296 = vld [vmem:[%s1 + $0x58] sm:$0xf]
      %v297 = vld [vmem:[%s1 + $0x5c] sm:$0xf]
      %v298 = vld [vmem:[%s1 + $0x60] sm:$0xf]
      %v299 = vld [vmem:[%s1 + $0x64] sm:$0xf]
      %v300 = vld [vmem:[%s1 + $0x68] sm:$0xf]
      %v301 = vld [vmem:[%s1 + $0x6c] sm:$0xf]
      %v302 = vld [vmem:[%s1 + $0x70] sm:$0xf]
      %v303 = vld [vmem:[%s1 + $0x74] sm:$0xf]
      %v304 = vld [vmem:[%s1 + $0x78] sm:$0xf]
      %v305 = vld [vmem:[%s1 + $0x7c] sm:$0xf]
      %v306 = vld [vmem:[%s1 + $0x80] sm:$0xf]
      %v307 = vld [vmem:[%s1 + $0x84] sm:$0xf]
      %v308 = vld [vmem:[%s1 + $0x88] sm:$0xf]
      %v309 = vld [vmem:[%s1 + $0x8c] sm:$0xf]
      %v310 = vld [vmem:[%s1 + $0x90] sm:$0xf]
      %v311 = vld [vmem:[%s1 + $0x94] sm:$0xf]
      %v312 = vld [vmem:[%s1 + $0x98] sm:$0xf]
      %v313 = vld [vmem:[%s1 + $0x9c] sm:$0xf]
      %v314 = vld [vmem:[%s1 + $0xa0] sm:$0xf]
      %v315 = vld [vmem:[%s1 + $0xa4] sm:$0xf]
      %v316 = vld [vmem:[%s1 + $0xa8] sm:$0xf]
      %v317 = vld [vmem:[%s1 + $0xac] sm:$0xf]
      %v318 = vld [vmem:[%s1 + $0xb0] sm:$0xf]
      %v319 = vld [vmem:[%s1 + $0xb4] sm:$0xf]
      %v320 = vld [vmem:[%s1 + $0xb8] sm:$0xf]
      %v321 = vld [vmem:[%s1 + $0xbc] sm:$0xf]
      %v322 = vld [vmem:[%s1 + $0xc0] sm:$0xf]
      %v323 = vld [vmem:[%s1 + $0xc4] sm:$0xf]
      %v324 = vld [vmem:[%s1 + $0xc8] sm:$0xf]
      %v325 = vld [vmem:[%s1 + $0xcc] sm:$0xf]
      %v326 = vld [vmem:[%s1 + $0xd0] sm:$0xf]
      %v327 = vld [vmem:[%s1 + $0xd4] sm:$0xf]
      %v328 = vld [vmem:[%s1 + $0xd8] sm:$0xf]
      %v329 = vld [vmem:[%s1 + $0xdc] sm:$0xf]
      %v330 = vld [vmem:[%s1 + $0xe0] sm:$0xf]
      %v331 = vld [vmem:[%s1 + $0xe4] sm:$0xf]
      %v332 = vld [vmem:[%s1 + $0xe8] sm:$0xf]
      %v333 = vld [vmem:[%s1 + $0xec] sm:$0xf]
      %v334 = vld [vmem:[%s1 + $0xf0] sm:$0xf]
      %v335 = vld [vmem:[%s1 + $0xf4] sm:$0xf]
      %v336 = vld [vmem:[%s1 + $0xf8] sm:$0xf]
      %v337 = vld [vmem:[%s1 + $0xfc] sm:$0xf]
      %v338 = vld [vmem:[%s1 + $0x100] sm:$0xf]
      %v339 = vld [vmem:[%s1 + $0x104] sm:$0xf]
      %v340 = vld [vmem:[%s1 + $0x108] sm:$0xf]
      %v341 = vld [vmem:[%s1 + $0x10c] sm:$0xf]
      %v342 = vld [vmem:[%s1 + $0x110] sm:$0xf]
      %v343 = vld [vmem:[%s1 + $0x114] sm:$0xf]
      %v344 = vld [vmem:[%s1 + $0x118] sm:$0xf]
      %v345 = vld [vmem:[%s1 + $0x11c] sm:$0xf]
      %v346 = vld [vmem:[%s2] sm:$0x1]
      %v348 = vperm.slane %v346, 0
      %v446 = vunpack.c.l.b16 %v178
      %v447 = vunpack.c.h.b16 %v178
      %v448 = vunpack.c.l.b16 %v179
      %v449 = vunpack.c.h.b16 %v179
      %v450 = vunpack.c.l.b16 %v180
      %v451 = vunpack.c.l.b16 %v181
      %v452 = vunpack.c.h.b16 %v181
      %v453 = vunpack.c.l.b16 %v182
      %v454 = vunpack.c.h.b16 %v182
      %v455 = vunpack.c.l.b16 %v183
      %v456 = vunpack.c.l.b16 %v184
      %v457 = vunpack.c.h.b16 %v184
      %v458 = vunpack.c.l.b16 %v185
      %v459 = vunpack.c.h.b16 %v185
      %v460 = vunpack.c.l.b16 %v186
      %v461 = vunpack.c.l.b16 %v187
      %v462 = vunpack.c.h.b16 %v187
      %v463 = vunpack.c.l.b16 %v188
      %v464 = vunpack.c.h.b16 %v188
      %v465 = vunpack.c.l.b16 %v189
      %v466 = vunpack.c.l.b16 %v190
      %v467 = vunpack.c.h.b16 %v190
      %v468 = vunpack.c.l.b16 %v191
      %v469 = vunpack.c.h.b16 %v191
      %v470 = vunpack.c.l.b16 %v192
      %v471 = vunpack.c.l.b16 %v193
      %v472 = vunpack.c.h.b16 %v193
      %v473 = vunpack.c.l.b16 %v194
      %v474 = vunpack.c.h.b16 %v194
      %v475 = vunpack.c.l.b16 %v195
      %v476 = vunpack.c.l.b16 %v196
      %v477 = vunpack.c.h.b16 %v196
      %v478 = vunpack.c.l.b16 %v197
      %v479 = vunpack.c.h.b16 %v197
      %v480 = vunpack.c.l.b16 %v198
      %v481 = vunpack.c.l.b16 %v199
      %v482 = vunpack.c.h.b16 %v199
      %v483 = vunpack.c.l.b16 %v200
      %v484 = vunpack.c.h.b16 %v200
      %v485 = vunpack.c.l.b16 %v201
      %v486 = vunpack.c.l.b16 %v202
      %v487 = vunpack.c.h.b16 %v202
      %v488 = vunpack.c.l.b16 %v203
      %v489 = vunpack.c.h.b16 %v203
      %v490 = vunpack.c.l.b16 %v204
      %v491 = vunpack.c.l.b16 %v205
      %v492 = vunpack.c.h.b16 %v205
      %v493 = vunpack.c.l.b16 %v206
      %v494 = vunpack.c.h.b16 %v206
      %v495 = vunpack.c.l.b16 %v207
      %v496 = vunpack.c.l.b16 %v208
      %v497 = vunpack.c.h.b16 %v208
      %v498 = vunpack.c.l.b16 %v209
      %v499 = vunpack.c.h.b16 %v209
      %v500 = vunpack.c.l.b16 %v210
      %v501 = vunpack.c.l.b16 %v211
      %v502 = vunpack.c.h.b16 %v211
      %v503 = vunpack.c.l.b16 %v212
      %v504 = vunpack.c.h.b16 %v212
      %v505 = vunpack.c.l.b16 %v213
      %v506 = vunpack.c.l.b16 %v214
      %v507 = vunpack.c.h.b16 %v214
      %v508 = vunpack.c.l.b16 %v215
      %v509 = vunpack.c.h.b16 %v215
      %v510 = vunpack.c.l.b16 %v216
      %v511 = vunpack.c.l.b16 %v217
      %v512 = vunpack.c.h.b16 %v217
      %v513 = vunpack.c.l.b16 %v218
      %v514 = vunpack.c.h.b16 %v218
      %v515 = vunpack.c.l.b16 %v219
      %v516 = vunpack.c.l.b16 %v220
      %v517 = vunpack.c.h.b16 %v220
      %v518 = vunpack.c.l.b16 %v221
      %v519 = vunpack.c.h.b16 %v221
      %v520 = vunpack.c.l.b16 %v222
      %v521 = vunpack.c.l.b16 %v223
      %v522 = vunpack.c.h.b16 %v223
      %v523 = vunpack.c.l.b16 %v224
      %v524 = vunpack.c.h.b16 %v224
      %v525 = vunpack.c.l.b16 %v225
      %v526 = vunpack.c.l.b16 %v226
      %v527 = vunpack.c.h.b16 %v226
      %v528 = vunpack.c.l.b16 %v227
      %v529 = vunpack.c.h.b16 %v227
      %v530 = vunpack.c.l.b16 %v228
      %v531 = vunpack.c.l.b16 %v229
      %v532 = vunpack.c.h.b16 %v229
      %v533 = vunpack.c.l.b16 %v230
      %v534 = vunpack.c.h.b16 %v230
      %v535 = vunpack.c.l.b16 %v231
      %v536 = vunpack.c.l.b16 %v232
      %v537 = vunpack.c.h.b16 %v232
      %v538 = vunpack.c.l.b16 %v233
      %v539 = vunpack.c.h.b16 %v233
      %v540 = vunpack.c.l.b16 %v234
      %v541 = vunpack.c.l.b16 %v235
      %v542 = vunpack.c.h.b16 %v235
      %v543 = vunpack.c.l.b16 %v236
      %v544 = vunpack.c.h.b16 %v236
      %v545 = vunpack.c.l.b16 %v237
      %v546 = vunpack.c.l.b16 %v238
      %v547 = vunpack.c.h.b16 %v238
      %v548 = vunpack.c.l.b16 %v239
      %v549 = vunpack.c.h.b16 %v239
      %v550 = vunpack.c.l.b16 %v240
      %v551 = vunpack.c.l.b16 %v241
      %v552 = vunpack.c.h.b16 %v241
      %v553 = vunpack.c.l.b16 %v242
      %v554 = vunpack.c.h.b16 %v242
      %v555 = vunpack.c.l.b16 %v243
      %v556 = vunpack.c.l.b16 %v244
      %v557 = vunpack.c.h.b16 %v244
      %v558 = vunpack.c.l.b16 %v245
      %v559 = vunpack.c.h.b16 %v245
      %v560 = vunpack.c.l.b16 %v246
      %v561 = vunpack.c.l.b16 %v247
      %v562 = vunpack.c.h.b16 %v247
      %v563 = vunpack.c.l.b16 %v248
      %v564 = vunpack.c.h.b16 %v248
      %v565 = vunpack.c.l.b16 %v249
      %v566 = vunpack.c.l.b16 %v250
      %v567 = vunpack.c.h.b16 %v250
      %v568 = vunpack.c.l.b16 %v251
      %v569 = vunpack.c.h.b16 %v251
      %v570 = vunpack.c.l.b16 %v252
      %v571 = vunpack.c.l.b16 %v253
      %v572 = vunpack.c.h.b16 %v253
      %v573 = vunpack.c.l.b16 %v254
      %v574 = vunpack.c.h.b16 %v254
      %v575 = vunpack.c.l.b16 %v255
      %v576 = vunpack.c.l.b16 %v256
      %v577 = vunpack.c.h.b16 %v256
      %v578 = vunpack.c.l.b16 %v257
      %v579 = vunpack.c.h.b16 %v257
      %v580 = vunpack.c.l.b16 %v258
      %v581 = vunpack.c.l.b16 %v259
      %v582 = vunpack.c.h.b16 %v259
      %v583 = vunpack.c.l.b16 %v260
      %v584 = vunpack.c.h.b16 %v260
      %v585 = vunpack.c.l.b16 %v261
      %v586 = vunpack.c.l.b16 %v262
      %v587 = vunpack.c.h.b16 %v262
      %v588 = vunpack.c.l.b16 %v263
      %v589 = vunpack.c.h.b16 %v263
      %v590 = vunpack.c.l.b16 %v264
      %v591 = vunpack.c.l.b16 %v265
      %v592 = vunpack.c.h.b16 %v265
      %v593 = vunpack.c.l.b16 %v266
      %v594 = vunpack.c.h.b16 %v266
      %v595 = vunpack.c.l.b16 %v267
      %v596 = vunpack.c.l.b16 %v268
      %v597 = vunpack.c.h.b16 %v268
      %v598 = vunpack.c.l.b16 %v269
      %v599 = vunpack.c.h.b16 %v269
      %v600 = vunpack.c.l.b16 %v270
      %v601 = vunpack.c.l.b16 %v271
      %v602 = vunpack.c.h.b16 %v271
      %v603 = vunpack.c.l.b16 %v272
      %v604 = vunpack.c.h.b16 %v272
      %v605 = vunpack.c.l.b16 %v273
      %v606 = vpack.c.b16 %v451, %v446
      %v607 = vpack.c.b16 %v452, %v447
      %v608 = vpack.c.b16 %v453, %v448
      %v609 = vpack.c.b16 %v454, %v449
      %v610 = vpack.c.b16 %v455, %v450
      %v611 = vpack.c.b16 %v461, %v456
      %v612 = vpack.c.b16 %v462, %v457
      %v613 = vpack.c.b16 %v463, %v458
      %v614 = vpack.c.b16 %v464, %v459
      %v615 = vpack.c.b16 %v465, %v460
      %v616 = vpack.c.b16 %v471, %v466
      %v617 = vpack.c.b16 %v472, %v467
      %v618 = vpack.c.b16 %v473, %v468
      %v619 = vpack.c.b16 %v474, %v469
      %v620 = vpack.c.b16 %v475, %v470
      %v621 = vpack.c.b16 %v481, %v476
      %v622 = vpack.c.b16 %v482, %v477
      %v623 = vpack.c.b16 %v483, %v478
      %v624 = vpack.c.b16 %v484, %v479
      %v625 = vpack.c.b16 %v485, %v480
      %v626 = vpack.c.b16 %v491, %v486
      %v627 = vpack.c.b16 %v492, %v487
      %v628 = vpack.c.b16 %v493, %v488
      %v629 = vpack.c.b16 %v494, %v489
      %v630 = vpack.c.b16 %v495, %v490
      %v631 = vpack.c.b16 %v501, %v496
      %v632 = vpack.c.b16 %v502, %v497
      %v633 = vpack.c.b16 %v503, %v498
      %v634 = vpack.c.b16 %v504, %v499
      %v635 = vpack.c.b16 %v505, %v500
      %v636 = vpack.c.b16 %v511, %v506
      %v637 = vpack.c.b16 %v512, %v507
      %v638 = vpack.c.b16 %v513, %v508
      %v639 = vpack.c.b16 %v514, %v509
      %v640 = vpack.c.b16 %v515, %v510
      %v641 = vpack.c.b16 %v521, %v516
      %v642 = vpack.c.b16 %v522, %v517
      %v643 = vpack.c.b16 %v523, %v518
      %v644 = vpack.c.b16 %v524, %v519
      %v645 = vpack.c.b16 %v525, %v520
      %v646 = vpack.c.b16 %v531, %v526
      %v647 = vpack.c.b16 %v532, %v527
      %v648 = vpack.c.b16 %v533, %v528
      %v649 = vpack.c.b16 %v534, %v529
      %v650 = vpack.c.b16 %v535, %v530
      %v651 = vpack.c.b16 %v541, %v536
      %v652 = vpack.c.b16 %v542, %v537
      %v653 = vpack.c.b16 %v543, %v538
      %v654 = vpack.c.b16 %v544, %v539
      %v655 = vpack.c.b16 %v545, %v540
      %v656 = vpack.c.b16 %v551, %v546
      %v657 = vpack.c.b16 %v552, %v547
      %v658 = vpack.c.b16 %v553, %v548
      %v659 = vpack.c.b16 %v554, %v549
      %v660 = vpack.c.b16 %v555, %v550
      %v661 = vpack.c.b16 %v561, %v556
      %v662 = vpack.c.b16 %v562, %v557
      %v663 = vpack.c.b16 %v563, %v558
      %v664 = vpack.c.b16 %v564, %v559
      %v665 = vpack.c.b16 %v565, %v560
      %v666 = vpack.c.b16 %v571, %v566
      %v667 = vpack.c.b16 %v572, %v567
      %v668 = vpack.c.b16 %v573, %v568
      %v669 = vpack.c.b16 %v574, %v569
      %v670 = vpack.c.b16 %v575, %v570
      %v671 = vpack.c.b16 %v581, %v576
      %v672 = vpack.c.b16 %v582, %v577
      %v673 = vpack.c.b16 %v583, %v578
      %v674 = vpack.c.b16 %v584, %v579
      %v675 = vpack.c.b16 %v585, %v580
      %v676 = vpack.c.b16 %v591, %v586
      %v677 = vpack.c.b16 %v592, %v587
      %v678 = vpack.c.b16 %v593, %v588
      %v679 = vpack.c.b16 %v594, %v589
      %v680 = vpack.c.b16 %v595, %v590
      %v681 = vpack.c.b16 %v601, %v596
      %v682 = vpack.c.b16 %v602, %v597
      %v683 = vpack.c.b16 %v603, %v598
      %v684 = vpack.c.b16 %v604, %v599
      %v685 = vpack.c.b16 %v605, %v600
      %v822 = vunpack.c.l.b16 %v274
      %v823 = vunpack.c.l.b16 %v275
      %v824 = vunpack.c.l.b16 %v276
      %v825 = vunpack.c.l.b16 %v277
      %v826 = vunpack.c.l.b16 %v278
      %v827 = vunpack.c.l.b16 %v279
      %v828 = vunpack.c.l.b16 %v280
      %v829 = vunpack.c.l.b16 %v281
      %v830 = vunpack.c.l.b16 %v282
      %v831 = vunpack.c.l.b16 %v283
      %v832 = vunpack.c.l.b16 %v284
      %v833 = vunpack.c.l.b16 %v285
      %v834 = vunpack.c.l.b16 %v286
      %v835 = vunpack.c.l.b16 %v287
      %v836 = vunpack.c.l.b16 %v288
      %v837 = vunpack.c.l.b16 %v289
      %v838 = vunpack.c.l.b16 %v290
      %v839 = vunpack.c.l.b16 %v291
      %v840 = vunpack.c.l.b16 %v292
      %v841 = vunpack.c.l.b16 %v293
      %v842 = vunpack.c.l.b16 %v294
      %v843 = vunpack.c.l.b16 %v295
      %v844 = vunpack.c.l.b16 %v296
      %v845 = vunpack.c.l.b16 %v297
      %v846 = vunpack.c.l.b16 %v298
      %v847 = vunpack.c.l.b16 %v299
      %v848 = vunpack.c.l.b16 %v300
      %v849 = vunpack.c.l.b16 %v301
      %v850 = vunpack.c.l.b16 %v302
      %v851 = vunpack.c.l.b16 %v303
      %v852 = vunpack.c.l.b16 %v304
      %v853 = vunpack.c.l.b16 %v305
      %v854 = vunpack.c.l.b16 %v306
      %v855 = vunpack.c.l.b16 %v307
      %v856 = vunpack.c.l.b16 %v308
      %v857 = vunpack.c.l.b16 %v309
      %v858 = vunpack.c.l.b16 %v310
      %v859 = vunpack.c.l.b16 %v311
      %v860 = vunpack.c.l.b16 %v312
      %v861 = vunpack.c.l.b16 %v313
      %v862 = vunpack.c.l.b16 %v314
      %v863 = vunpack.c.l.b16 %v315
      %v864 = vunpack.c.l.b16 %v316
      %v865 = vunpack.c.l.b16 %v317
      %v866 = vunpack.c.l.b16 %v318
      %v867 = vunpack.c.l.b16 %v319
      %v868 = vunpack.c.l.b16 %v320
      %v869 = vunpack.c.l.b16 %v321
      %v870 = vunpack.c.l.b16 %v322
      %v871 = vunpack.c.l.b16 %v323
      %v872 = vunpack.c.l.b16 %v324
      %v873 = vunpack.c.l.b16 %v325
      %v874 = vunpack.c.l.b16 %v326
      %v875 = vunpack.c.l.b16 %v327
      %v876 = vunpack.c.l.b16 %v328
      %v877 = vunpack.c.l.b16 %v329
      %v878 = vunpack.c.l.b16 %v330
      %v879 = vunpack.c.l.b16 %v331
      %v880 = vunpack.c.l.b16 %v332
      %v881 = vunpack.c.l.b16 %v333
      %v882 = vunpack.c.l.b16 %v334
      %v883 = vunpack.c.l.b16 %v335
      %v884 = vunpack.c.l.b16 %v336
      %v885 = vunpack.c.l.b16 %v337
      %v886 = vunpack.c.l.b16 %v338
      %v887 = vunpack.c.l.b16 %v339
      %v888 = vunpack.c.l.b16 %v340
      %v889 = vunpack.c.l.b16 %v341
      %v890 = vunpack.c.l.b16 %v342
      %v891 = vunpack.c.l.b16 %v343
      %v892 = vunpack.c.l.b16 %v344
      %v893 = vunpack.c.l.b16 %v345
      %v894 = vpack.c.b16 %v823, %v822
      %v895 = vpack.c.b16 %v825, %v824
      %v896 = vpack.c.b16 %v827, %v826
      %v897 = vpack.c.b16 %v829, %v828
      %v898 = vpack.c.b16 %v831, %v830
      %v899 = vpack.c.b16 %v833, %v832
      %v900 = vpack.c.b16 %v835, %v834
      %v901 = vpack.c.b16 %v837, %v836
      %v902 = vpack.c.b16 %v839, %v838
      %v903 = vpack.c.b16 %v841, %v840
      %v904 = vpack.c.b16 %v843, %v842
      %v905 = vpack.c.b16 %v845, %v844
      %v906 = vpack.c.b16 %v847, %v846
      %v907 = vpack.c.b16 %v849, %v848
      %v908 = vpack.c.b16 %v851, %v850
      %v909 = vpack.c.b16 %v853, %v852
      %v910 = vpack.c.b16 %v855, %v854
      %v911 = vpack.c.b16 %v857, %v856
      %v912 = vpack.c.b16 %v859, %v858
      %v913 = vpack.c.b16 %v861, %v860
      %v914 = vpack.c.b16 %v863, %v862
      %v915 = vpack.c.b16 %v865, %v864
      %v916 = vpack.c.b16 %v867, %v866
      %v917 = vpack.c.b16 %v869, %v868
      %v918 = vpack.c.b16 %v871, %v870
      %v919 = vpack.c.b16 %v873, %v872
      %v920 = vpack.c.b16 %v875, %v874
      %v921 = vpack.c.b16 %v877, %v876
      %v922 = vpack.c.b16 %v879, %v878
      %v923 = vpack.c.b16 %v881, %v880
      %v924 = vpack.c.b16 %v883, %v882
      %v925 = vpack.c.b16 %v885, %v884
      %v926 = vpack.c.b16 %v887, %v886
      %v927 = vpack.c.b16 %v889, %v888
      %v928 = vpack.c.b16 %v891, %v890
      %v929 = vpack.c.b16 %v893, %v892
      %vm966 = vcmask 523264
      %v968 = vsel %vm966, %v610, 0
      %v971 = vsel %vm966, %v615, 0
      %v974 = vsel %vm966, %v620, 0
      %v977 = vsel %vm966, %v625, 0
      %v980 = vsel %vm966, %v630, 0
      %v983 = vsel %vm966, %v635, 0
      %v986 = vsel %vm966, %v640, 0
      %v989 = vsel %vm966, %v645, 0
      %v992 = vsel %vm966, %v650, 0
      %v995 = vsel %vm966, %v655, 0
      %v998 = vsel %vm966, %v660, 0
      %v1001 = vsel %vm966, %v665, 0
      %v1004 = vsel %vm966, %v670, 0
      %v1007 = vsel %vm966, %v675, 0
      %v1010 = vsel %vm966, %v680, 0
      %v1013 = vsel %vm966, %v685, 0
      %1015 = vmatpush.bf16.msra.mxu0 %v901
      %1016 = vmatpush.bf16.msra.mxu0 %v900
      %1017 = vmatpush.bf16.msra.mxu0 %v899
      %1018 = vmatpush.bf16.msra.mxu0 %v898
      %1019 = vmatpush.bf16.msra.mxu0 %v897
      %1020 = vmatpush.bf16.msra.mxu0 %v896
      %1021 = vmatpush.bf16.msra.mxu0 %v895
      %1022 = vmatpush.bf16.msra.mxu0 %v894
      %1023 = vmatmul.bf16.gmra.mxu0 %v606
      %v1024 = vpop.f32.mrf.mxu0
      %v1025 = vadd.f32 %v348, %v1024
      %v1026 = vpop.f32.mrf.mxu0
      %v1027 = vadd.f32 %v348, %v1026
      %1028 = vmatmul.bf16.gmra.mxu0 %v611
      %v1029 = vpop.f32.mrf.mxu0
      %v1030 = vadd.f32 %v348, %v1029
      %v1031 = vpop.f32.mrf.mxu0
      %v1032 = vadd.f32 %v348, %v1031
      %1033 = vmatmul.bf16.gmra.mxu0 %v616
      %v1034 = vpop.f32.mrf.mxu0
      %v1035 = vadd.f32 %v348, %v1034
      %v1036 = vpop.f32.mrf.mxu0
      %v1037 = vadd.f32 %v348, %v1036
      %1038 = vmatmul.bf16.gmra.mxu0 %v621
      %v1039 = vpop.f32.mrf.mxu0
      %v1040 = vadd.f32 %v348, %v1039
      %v1041 = vpop.f32.mrf.mxu0
      %v1042 = vadd.f32 %v348, %v1041
      %1043 = vmatmul.bf16.gmra.mxu0 %v626
      %v1044 = vpop.f32.mrf.mxu0
      %v1045 = vadd.f32 %v348, %v1044
      %v1046 = vpop.f32.mrf.mxu0
      %v1047 = vadd.f32 %v348, %v1046
      %1048 = vmatmul.bf16.gmra.mxu0 %v631
      %v1049 = vpop.f32.mrf.mxu0
      %v1050 = vadd.f32 %v348, %v1049
      %v1051 = vpop.f32.mrf.mxu0
      %v1052 = vadd.f32 %v348, %v1051
      %1053 = vmatmul.bf16.gmra.mxu0 %v636
      %v1054 = vpop.f32.mrf.mxu0
      %v1055 = vadd.f32 %v348, %v1054
      %v1056 = vpop.f32.mrf.mxu0
      %v1057 = vadd.f32 %v348, %v1056
      %1058 = vmatmul.bf16.gmra.mxu0 %v641
      %v1059 = vpop.f32.mrf.mxu0
      %v1060 = vadd.f32 %v348, %v1059
      %v1061 = vpop.f32.mrf.mxu0
      %v1062 = vadd.f32 %v348, %v1061
      %1063 = vmatmul.bf16.gmra.mxu0 %v646
      %v1064 = vpop.f32.mrf.mxu0
      %v1065 = vadd.f32 %v348, %v1064
      %v1066 = vpop.f32.mrf.mxu0
      %v1067 = vadd.f32 %v348, %v1066
      %1068 = vmatmul.bf16.gmra.mxu0 %v651
      %v1069 = vpop.f32.mrf.mxu0
      %v1070 = vadd.f32 %v348, %v1069
      %v1071 = vpop.f32.mrf.mxu0
      %v1072 = vadd.f32 %v348, %v1071
      %1073 = vmatmul.bf16.gmra.mxu0 %v656
      %v1074 = vpop.f32.mrf.mxu0
      %v1075 = vadd.f32 %v348, %v1074
      %v1076 = vpop.f32.mrf.mxu0
      %v1077 = vadd.f32 %v348, %v1076
      %1078 = vmatmul.bf16.gmra.mxu0 %v661
      %v1079 = vpop.f32.mrf.mxu0
      %v1080 = vadd.f32 %v348, %v1079
      %v1081 = vpop.f32.mrf.mxu0
      %v1082 = vadd.f32 %v348, %v1081
      %1083 = vmatmul.bf16.gmra.mxu0 %v666
      %v1084 = vpop.f32.mrf.mxu0
      %v1085 = vadd.f32 %v348, %v1084
      %v1086 = vpop.f32.mrf.mxu0
      %v1087 = vadd.f32 %v348, %v1086
      %1088 = vmatmul.bf16.gmra.mxu0 %v671
      %v1089 = vpop.f32.mrf.mxu0
      %v1090 = vadd.f32 %v348, %v1089
      %v1091 = vpop.f32.mrf.mxu0
      %v1092 = vadd.f32 %v348, %v1091
      %1093 = vmatmul.bf16.gmra.mxu0 %v676
      %v1094 = vpop.f32.mrf.mxu0
      %v1095 = vadd.f32 %v348, %v1094
      %v1096 = vpop.f32.mrf.mxu0
      %v1097 = vadd.f32 %v348, %v1096
      %1098 = vmatmul.bf16.gmra.mxu0 %v681
      %v1099 = vpop.f32.mrf.mxu0
      %v1100 = vadd.f32 %v348, %v1099
      %v1101 = vpop.f32.mrf.mxu0
      %v1102 = vadd.f32 %v348, %v1101
      %1103 = vdwg.mxu0
      %1104 = vmatpush.bf16.msra.mxu0 %v909
      %1105 = vmatpush.bf16.msra.mxu0 %v908
      %1106 = vmatpush.bf16.msra.mxu0 %v907
      %1107 = vmatpush.bf16.msra.mxu0 %v906
      %1108 = vmatpush.bf16.msra.mxu0 %v905
      %1109 = vmatpush.bf16.msra.mxu0 %v904
      %1110 = vmatpush.bf16.msra.mxu0 %v903
      %1111 = vmatpush.bf16.msra.mxu0 %v902
      %1112 = vmatmul.bf16.gmra.mxu0 %v607
      %v1113 = vpop.f32.mrf.mxu0
      %v1114 = vadd.f32 %v1025, %v1113
      %v1115 = vpop.f32.mrf.mxu0
      %v1116 = vadd.f32 %v1027, %v1115
      %1117 = vmatmul.bf16.gmra.mxu0 %v612
      %v1118 = vpop.f32.mrf.mxu0
      %v1119 = vadd.f32 %v1030, %v1118
      %v1120 = vpop.f32.mrf.mxu0
      %v1121 = vadd.f32 %v1032, %v1120
      %1122 = vmatmul.bf16.gmra.mxu0 %v617
      %v1123 = vpop.f32.mrf.mxu0
      %v1124 = vadd.f32 %v1035, %v1123
      %v1125 = vpop.f32.mrf.mxu0
      %v1126 = vadd.f32 %v1037, %v1125
      %1127 = vmatmul.bf16.gmra.mxu0 %v622
      %v1128 = vpop.f32.mrf.mxu0
      %v1129 = vadd.f32 %v1040, %v1128
      %v1130 = vpop.f32.mrf.mxu0
      %v1131 = vadd.f32 %v1042, %v1130
      %1132 = vmatmul.bf16.gmra.mxu0 %v627
      %v1133 = vpop.f32.mrf.mxu0
      %v1134 = vadd.f32 %v1045, %v1133
      %v1135 = vpop.f32.mrf.mxu0
      %v1136 = vadd.f32 %v1047, %v1135
      %1137 = vmatmul.bf16.gmra.mxu0 %v632
      %v1138 = vpop.f32.mrf.mxu0
      %v1139 = vadd.f32 %v1050, %v1138
      %v1140 = vpop.f32.mrf.mxu0
      %v1141 = vadd.f32 %v1052, %v1140
      %1142 = vmatmul.bf16.gmra.mxu0 %v637
      %v1143 = vpop.f32.mrf.mxu0
      %v1144 = vadd.f32 %v1055, %v1143
      %v1145 = vpop.f32.mrf.mxu0
      %v1146 = vadd.f32 %v1057, %v1145
      %1147 = vmatmul.bf16.gmra.mxu0 %v642
      %v1148 = vpop.f32.mrf.mxu0
      %v1149 = vadd.f32 %v1060, %v1148
      %v1150 = vpop.f32.mrf.mxu0
      %v1151 = vadd.f32 %v1062, %v1150
      %1152 = vmatmul.bf16.gmra.mxu0 %v647
      %v1153 = vpop.f32.mrf.mxu0
      %v1154 = vadd.f32 %v1065, %v1153
      %v1155 = vpop.f32.mrf.mxu0
      %v1156 = vadd.f32 %v1067, %v1155
      %1157 = vmatmul.bf16.gmra.mxu0 %v652
      %v1158 = vpop.f32.mrf.mxu0
      %v1159 = vadd.f32 %v1070, %v1158
      %v1160 = vpop.f32.mrf.mxu0
      %v1161 = vadd.f32 %v1072, %v1160
      %1162 = vmatmul.bf16.gmra.mxu0 %v657
      %v1163 = vpop.f32.mrf.mxu0
      %v1164 = vadd.f32 %v1075, %v1163
      %v1165 = vpop.f32.mrf.mxu0
      %v1166 = vadd.f32 %v1077, %v1165
      %1167 = vmatmul.bf16.gmra.mxu0 %v662
      %v1168 = vpop.f32.mrf.mxu0
      %v1169 = vadd.f32 %v1080, %v1168
      %v1170 = vpop.f32.mrf.mxu0
      %v1171 = vadd.f32 %v1082, %v1170
      %1172 = vmatmul.bf16.gmra.mxu0 %v667
      %v1173 = vpop.f32.mrf.mxu0
      %v1174 = vadd.f32 %v1085, %v1173
      %v1175 = vpop.f32.mrf.mxu0
      %v1176 = vadd.f32 %v1087, %v1175
      %1177 = vmatmul.bf16.gmra.mxu0 %v672
      %v1178 = vpop.f32.mrf.mxu0
      %v1179 = vadd.f32 %v1090, %v1178
      %v1180 = vpop.f32.mrf.mxu0
      %v1181 = vadd.f32 %v1092, %v1180
      %1182 = vmatmul.bf16.gmra.mxu0 %v677
      %v1183 = vpop.f32.mrf.mxu0
      %v1184 = vadd.f32 %v1095, %v1183
      %v1185 = vpop.f32.mrf.mxu0
      %v1186 = vadd.f32 %v1097, %v1185
      %1187 = vmatmul.bf16.gmra.mxu0 %v682
      %v1188 = vpop.f32.mrf.mxu0
      %v1189 = vadd.f32 %v1100, %v1188
      %v1190 = vpop.f32.mrf.mxu0
      %v1191 = vadd.f32 %v1102, %v1190
      %1192 = vdwg.mxu0
      %1193 = vmatpush.bf16.msra.mxu0 %v917
      %1194 = vmatpush.bf16.msra.mxu0 %v916
      %1195 = vmatpush.bf16.msra.mxu0 %v915
      %1196 = vmatpush.bf16.msra.mxu0 %v914
      %1197 = vmatpush.bf16.msra.mxu0 %v913
      %1198 = vmatpush.bf16.msra.mxu0 %v912
      %1199 = vmatpush.bf16.msra.mxu0 %v911
      %1200 = vmatpush.bf16.msra.mxu0 %v910
      %1201 = vmatmul.bf16.gmra.mxu0 %v608
      %v1202 = vpop.f32.mrf.mxu0
      %v1203 = vadd.f32 %v1114, %v1202
      %v1204 = vpop.f32.mrf.mxu0
      %v1205 = vadd.f32 %v1116, %v1204
      %1206 = vmatmul.bf16.gmra.mxu0 %v613
      %v1207 = vpop.f32.mrf.mxu0
      %v1208 = vadd.f32 %v1119, %v1207
      %v1209 = vpop.f32.mrf.mxu0
      %v1210 = vadd.f32 %v1121, %v1209
      %1211 = vmatmul.bf16.gmra.mxu0 %v618
      %v1212 = vpop.f32.mrf.mxu0
      %v1213 = vadd.f32 %v1124, %v1212
      %v1214 = vpop.f32.mrf.mxu0
      %v1215 = vadd.f32 %v1126, %v1214
      %1216 = vmatmul.bf16.gmra.mxu0 %v623
      %v1217 = vpop.f32.mrf.mxu0
      %v1218 = vadd.f32 %v1129, %v1217
      %v1219 = vpop.f32.mrf.mxu0
      %v1220 = vadd.f32 %v1131, %v1219
      %1221 = vmatmul.bf16.gmra.mxu0 %v628
      %v1222 = vpop.f32.mrf.mxu0
      %v1223 = vadd.f32 %v1134, %v1222
      %v1224 = vpop.f32.mrf.mxu0
      %v1225 = vadd.f32 %v1136, %v1224
      %1226 = vmatmul.bf16.gmra.mxu0 %v633
      %v1227 = vpop.f32.mrf.mxu0
      %v1228 = vadd.f32 %v1139, %v1227
      %v1229 = vpop.f32.mrf.mxu0
      %v1230 = vadd.f32 %v1141, %v1229
      %1231 = vmatmul.bf16.gmra.mxu0 %v638
      %v1232 = vpop.f32.mrf.mxu0
      %v1233 = vadd.f32 %v1144, %v1232
      %v1234 = vpop.f32.mrf.mxu0
      %v1235 = vadd.f32 %v1146, %v1234
      %1236 = vmatmul.bf16.gmra.mxu0 %v643
      %v1237 = vpop.f32.mrf.mxu0
      %v1238 = vadd.f32 %v1149, %v1237
      %v1239 = vpop.f32.mrf.mxu0
      %v1240 = vadd.f32 %v1151, %v1239
      %1241 = vmatmul.bf16.gmra.mxu0 %v648
      %v1242 = vpop.f32.mrf.mxu0
      %v1243 = vadd.f32 %v1154, %v1242
      %v1244 = vpop.f32.mrf.mxu0
      %v1245 = vadd.f32 %v1156, %v1244
      %1246 = vmatmul.bf16.gmra.mxu0 %v653
      %v1247 = vpop.f32.mrf.mxu0
      %v1248 = vadd.f32 %v1159, %v1247
      %v1249 = vpop.f32.mrf.mxu0
      %v1250 = vadd.f32 %v1161, %v1249
      %1251 = vmatmul.bf16.gmra.mxu0 %v658
      %v1252 = vpop.f32.mrf.mxu0
      %v1253 = vadd.f32 %v1164, %v1252
      %v1254 = vpop.f32.mrf.mxu0
      %v1255 = vadd.f32 %v1166, %v1254
      %1256 = vmatmul.bf16.gmra.mxu0 %v663
      %v1257 = vpop.f32.mrf.mxu0
      %v1258 = vadd.f32 %v1169, %v1257
      %v1259 = vpop.f32.mrf.mxu0
      %v1260 = vadd.f32 %v1171, %v1259
      %1261 = vmatmul.bf16.gmra.mxu0 %v668
      %v1262 = vpop.f32.mrf.mxu0
      %v1263 = vadd.f32 %v1174, %v1262
      %v1264 = vpop.f32.mrf.mxu0
      %v1265 = vadd.f32 %v1176, %v1264
      %1266 = vmatmul.bf16.gmra.mxu0 %v673
      %v1267 = vpop.f32.mrf.mxu0
      %v1268 = vadd.f32 %v1179, %v1267
      %v1269 = vpop.f32.mrf.mxu0
      %v1270 = vadd.f32 %v1181, %v1269
      %1271 = vmatmul.bf16.gmra.mxu0 %v678
      %v1272 = vpop.f32.mrf.mxu0
      %v1273 = vadd.f32 %v1184, %v1272
      %v1274 = vpop.f32.mrf.mxu0
      %v1275 = vadd.f32 %v1186, %v1274
      %1276 = vmatmul.bf16.gmra.mxu0 %v683
      %v1277 = vpop.f32.mrf.mxu0
      %v1278 = vadd.f32 %v1189, %v1277
      %v1279 = vpop.f32.mrf.mxu0
      %v1280 = vadd.f32 %v1191, %v1279
      %1281 = vdwg.mxu0
      %1282 = vmatpush.bf16.msra.mxu0 %v925
      %1283 = vmatpush.bf16.msra.mxu0 %v924
      %1284 = vmatpush.bf16.msra.mxu0 %v923
      %1285 = vmatpush.bf16.msra.mxu0 %v922
      %1286 = vmatpush.bf16.msra.mxu0 %v921
      %1287 = vmatpush.bf16.msra.mxu0 %v920
      %1288 = vmatpush.bf16.msra.mxu0 %v919
      %1289 = vmatpush.bf16.msra.mxu0 %v918
      %1290 = vmatmul.bf16.gmra.mxu0 %v609
      %v1291 = vpop.f32.mrf.mxu0
      %v1292 = vadd.f32 %v1203, %v1291
      %v1293 = vpop.f32.mrf.mxu0
      %v1294 = vadd.f32 %v1205, %v1293
      %1295 = vmatmul.bf16.gmra.mxu0 %v614
      %v1296 = vpop.f32.mrf.mxu0
      %v1297 = vadd.f32 %v1208, %v1296
      %v1298 = vpop.f32.mrf.mxu0
      %v1299 = vadd.f32 %v1210, %v1298
      %1300 = vmatmul.bf16.gmra.mxu0 %v619
      %v1301 = vpop.f32.mrf.mxu0
      %v1302 = vadd.f32 %v1213, %v1301
      %v1303 = vpop.f32.mrf.mxu0
      %v1304 = vadd.f32 %v1215, %v1303
      %1305 = vmatmul.bf16.gmra.mxu0 %v624
      %v1306 = vpop.f32.mrf.mxu0
      %v1307 = vadd.f32 %v1218, %v1306
      %v1308 = vpop.f32.mrf.mxu0
      %v1309 = vadd.f32 %v1220, %v1308
      %1310 = vmatmul.bf16.gmra.mxu0 %v629
      %v1311 = vpop.f32.mrf.mxu0
      %v1312 = vadd.f32 %v1223, %v1311
      %v1313 = vpop.f32.mrf.mxu0
      %v1314 = vadd.f32 %v1225, %v1313
      %1315 = vmatmul.bf16.gmra.mxu0 %v634
      %v1316 = vpop.f32.mrf.mxu0
      %v1317 = vadd.f32 %v1228, %v1316
      %v1318 = vpop.f32.mrf.mxu0
      %v1319 = vadd.f32 %v1230, %v1318
      %1320 = vmatmul.bf16.gmra.mxu0 %v639
      %v1321 = vpop.f32.mrf.mxu0
      %v1322 = vadd.f32 %v1233, %v1321
      %v1323 = vpop.f32.mrf.mxu0
      %v1324 = vadd.f32 %v1235, %v1323
      %1325 = vmatmul.bf16.gmra.mxu0 %v644
      %v1326 = vpop.f32.mrf.mxu0
      %v1327 = vadd.f32 %v1238, %v1326
      %v1328 = vpop.f32.mrf.mxu0
      %v1329 = vadd.f32 %v1240, %v1328
      %1330 = vmatmul.bf16.gmra.mxu0 %v649
      %v1331 = vpop.f32.mrf.mxu0
      %v1332 = vadd.f32 %v1243, %v1331
      %v1333 = vpop.f32.mrf.mxu0
      %v1334 = vadd.f32 %v1245, %v1333
      %1335 = vmatmul.bf16.gmra.mxu0 %v654
      %v1336 = vpop.f32.mrf.mxu0
      %v1337 = vadd.f32 %v1248, %v1336
      %v1338 = vpop.f32.mrf.mxu0
      %v1339 = vadd.f32 %v1250, %v1338
      %1340 = vmatmul.bf16.gmra.mxu0 %v659
      %v1341 = vpop.f32.mrf.mxu0
      %v1342 = vadd.f32 %v1253, %v1341
      %v1343 = vpop.f32.mrf.mxu0
      %v1344 = vadd.f32 %v1255, %v1343
      %1345 = vmatmul.bf16.gmra.mxu0 %v664
      %v1346 = vpop.f32.mrf.mxu0
      %v1347 = vadd.f32 %v1258, %v1346
      %v1348 = vpop.f32.mrf.mxu0
      %v1349 = vadd.f32 %v1260, %v1348
      %1350 = vmatmul.bf16.gmra.mxu0 %v669
      %v1351 = vpop.f32.mrf.mxu0
      %v1352 = vadd.f32 %v1263, %v1351
      %v1353 = vpop.f32.mrf.mxu0
      %v1354 = vadd.f32 %v1265, %v1353
      %1355 = vmatmul.bf16.gmra.mxu0 %v674
      %v1356 = vpop.f32.mrf.mxu0
      %v1357 = vadd.f32 %v1268, %v1356
      %v1358 = vpop.f32.mrf.mxu0
      %v1359 = vadd.f32 %v1270, %v1358
      %1360 = vmatmul.bf16.gmra.mxu0 %v679
      %v1361 = vpop.f32.mrf.mxu0
      %v1362 = vadd.f32 %v1273, %v1361
      %v1363 = vpop.f32.mrf.mxu0
      %v1364 = vadd.f32 %v1275, %v1363
      %1365 = vmatmul.bf16.gmra.mxu0 %v684
      %v1366 = vpop.f32.mrf.mxu0
      %v1367 = vadd.f32 %v1278, %v1366
      %v1368 = vpop.f32.mrf.mxu0
      %v1369 = vadd.f32 %v1280, %v1368
      %1370 = vdwg.mxu0
      %1371 = vmatpush.bf16.msra.mxu0 0
      %1372 = vmatpush.bf16.msra.mxu0 0
      %1373 = vmatpush.bf16.msra.mxu0 0
      %1374 = vmatpush.bf16.msra.mxu0 0
      %1375 = vmatpush.bf16.msra.mxu0 %v929
      %1376 = vmatpush.bf16.msra.mxu0 %v928
      %1377 = vmatpush.bf16.msra.mxu0 %v927
      %1378 = vmatpush.bf16.msra.mxu0 %v926
      %1379 = vmatmul.bf16.gmra.mxu0 %v968
      %v1380 = vpop.f32.mrf.mxu0
      %v1381 = vadd.f32 %v1292, %v1380
      %v1382 = vpop.f32.mrf.mxu0
      %v1383 = vadd.f32 %v1294, %v1382
      %1384 = vmatmul.bf16.gmra.mxu0 %v971
      %v1385 = vpop.f32.mrf.mxu0
      %v1386 = vadd.f32 %v1297, %v1385
      %v1387 = vpop.f32.mrf.mxu0
      %v1388 = vadd.f32 %v1299, %v1387
      %1389 = vmatmul.bf16.gmra.mxu0 %v974
      %v1390 = vpop.f32.mrf.mxu0
      %v1391 = vadd.f32 %v1302, %v1390
      %v1392 = vpop.f32.mrf.mxu0
      %v1393 = vadd.f32 %v1304, %v1392
      %1394 = vmatmul.bf16.gmra.mxu0 %v977
      %v1395 = vpop.f32.mrf.mxu0
      %v1396 = vadd.f32 %v1307, %v1395
      %v1397 = vpop.f32.mrf.mxu0
      %v1398 = vadd.f32 %v1309, %v1397
      %1399 = vmatmul.bf16.gmra.mxu0 %v980
      %v1400 = vpop.f32.mrf.mxu0
      %v1401 = vadd.f32 %v1312, %v1400
      %v1402 = vpop.f32.mrf.mxu0
      %v1403 = vadd.f32 %v1314, %v1402
      %1404 = vmatmul.bf16.gmra.mxu0 %v983
      %v1405 = vpop.f32.mrf.mxu0
      %v1406 = vadd.f32 %v1317, %v1405
      %v1407 = vpop.f32.mrf.mxu0
      %v1408 = vadd.f32 %v1319, %v1407
      %1409 = vmatmul.bf16.gmra.mxu0 %v986
      %v1410 = vpop.f32.mrf.mxu0
      %v1411 = vadd.f32 %v1322, %v1410
      %v1412 = vpop.f32.mrf.mxu0
      %v1413 = vadd.f32 %v1324, %v1412
      %1414 = vmatmul.bf16.gmra.mxu0 %v989
      %v1415 = vpop.f32.mrf.mxu0
      %v1416 = vadd.f32 %v1327, %v1415
      %v1417 = vpop.f32.mrf.mxu0
      %v1418 = vadd.f32 %v1329, %v1417
      %1419 = vmatmul.bf16.gmra.mxu0 %v992
      %v1420 = vpop.f32.mrf.mxu0
      %v1421 = vadd.f32 %v1332, %v1420
      %v1422 = vpop.f32.mrf.mxu0
      %v1423 = vadd.f32 %v1334, %v1422
      %1424 = vmatmul.bf16.gmra.mxu0 %v995
      %v1425 = vpop.f32.mrf.mxu0
      %v1426 = vadd.f32 %v1337, %v1425
      %v1427 = vpop.f32.mrf.mxu0
      %v1428 = vadd.f32 %v1339, %v1427
      %1429 = vmatmul.bf16.gmra.mxu0 %v998
      %v1430 = vpop.f32.mrf.mxu0
      %v1431 = vadd.f32 %v1342, %v1430
      %v1432 = vpop.f32.mrf.mxu0
      %v1433 = vadd.f32 %v1344, %v1432
      %1434 = vmatmul.bf16.gmra.mxu0 %v1001
      %v1435 = vpop.f32.mrf.mxu0
      %v1436 = vadd.f32 %v1347, %v1435
      %v1437 = vpop.f32.mrf.mxu0
      %v1438 = vadd.f32 %v1349, %v1437
      %1439 = vmatmul.bf16.gmra.mxu0 %v1004
      %v1440 = vpop.f32.mrf.mxu0
      %v1441 = vadd.f32 %v1352, %v1440
      %v1442 = vpop.f32.mrf.mxu0
      %v1443 = vadd.f32 %v1354, %v1442
      %1444 = vmatmul.bf16.gmra.mxu0 %v1007
      %v1445 = vpop.f32.mrf.mxu0
      %v1446 = vadd.f32 %v1357, %v1445
      %v1447 = vpop.f32.mrf.mxu0
      %v1448 = vadd.f32 %v1359, %v1447
      %1449 = vmatmul.bf16.gmra.mxu0 %v1010
      %v1450 = vpop.f32.mrf.mxu0
      %v1451 = vadd.f32 %v1362, %v1450
      %v1452 = vpop.f32.mrf.mxu0
      %v1453 = vadd.f32 %v1364, %v1452
      %1454 = vmatmul.bf16.gmra.mxu0 %v1013
      %v1455 = vpop.f32.mrf.mxu0
      %v1456 = vadd.f32 %v1367, %v1455
      %v1457 = vpop.f32.mrf.mxu0
      %v1458 = vadd.f32 %v1369, %v1457
      %1459 = vdwg.mxu0
      %v1460 = vmax.f32 %v1381, 0.0
      %v1461 = vmax.f32 %v1383, 0.0
      %v1462 = vmax.f32 %v1386, 0.0
      %v1463 = vmax.f32 %v1388, 0.0
      %v1464 = vmax.f32 %v1391, 0.0
      %v1465 = vmax.f32 %v1393, 0.0
      %v1466 = vmax.f32 %v1396, 0.0
      %v1467 = vmax.f32 %v1398, 0.0
      %v1468 = vmax.f32 %v1401, 0.0
      %v1469 = vmax.f32 %v1403, 0.0
      %v1470 = vmax.f32 %v1406, 0.0
      %v1471 = vmax.f32 %v1408, 0.0
      %v1472 = vmax.f32 %v1411, 0.0
      %v1473 = vmax.f32 %v1413, 0.0
      %v1474 = vmax.f32 %v1416, 0.0
      %v1475 = vmax.f32 %v1418, 0.0
      %v1476 = vmax.f32 %v1421, 0.0
      %v1477 = vmax.f32 %v1423, 0.0
      %v1478 = vmax.f32 %v1426, 0.0
      %v1479 = vmax.f32 %v1428, 0.0
      %v1480 = vmax.f32 %v1431, 0.0
      %v1481 = vmax.f32 %v1433, 0.0
      %v1482 = vmax.f32 %v1436, 0.0
      %v1483 = vmax.f32 %v1438, 0.0
      %v1484 = vmax.f32 %v1441, 0.0
      %v1485 = vmax.f32 %v1443, 0.0
      %v1486 = vmax.f32 %v1446, 0.0
      %v1487 = vmax.f32 %v1448, 0.0
      %v1488 = vmax.f32 %v1451, 0.0
      %v1489 = vmax.f32 %v1453, 0.0
      %v1490 = vmax.f32 %v1456, 0.0
      %v1491 = vmax.f32 %v1458, 0.0
      %v1492 = vpack.c.bf16 %v1460, %v1460
      %v1493 = vpack.c.bf16 %v1461, %v1461
      %v1494 = vpack.c.bf16 %v1462, %v1462
      %v1495 = vpack.c.bf16 %v1463, %v1463
      %v1496 = vpack.c.bf16 %v1464, %v1464
      %v1497 = vpack.c.bf16 %v1465, %v1465
      %v1498 = vpack.c.bf16 %v1466, %v1466
      %v1499 = vpack.c.bf16 %v1467, %v1467
      %v1500 = vpack.c.bf16 %v1468, %v1468
      %v1501 = vpack.c.bf16 %v1469, %v1469
      %v1502 = vpack.c.bf16 %v1470, %v1470
      %v1503 = vpack.c.bf16 %v1471, %v1471
      %v1504 = vpack.c.bf16 %v1472, %v1472
      %v1505 = vpack.c.bf16 %v1473, %v1473
      %v1506 = vpack.c.bf16 %v1474, %v1474
      %v1507 = vpack.c.bf16 %v1475, %v1475
      %v1508 = vpack.c.bf16 %v1476, %v1476
      %v1509 = vpack.c.bf16 %v1477, %v1477
      %v1510 = vpack.c.bf16 %v1478, %v1478
      %v1511 = vpack.c.bf16 %v1479, %v1479
      %v1512 = vpack.c.bf16 %v1480, %v1480
      %v1513 = vpack.c.bf16 %v1481, %v1481
      %v1514 = vpack.c.bf16 %v1482, %v1482
      %v1515 = vpack.c.bf16 %v1483, %v1483
      %v1516 = vpack.c.bf16 %v1484, %v1484
      %v1517 = vpack.c.bf16 %v1485, %v1485
      %v1518 = vpack.c.bf16 %v1486, %v1486
      %v1519 = vpack.c.bf16 %v1487, %v1487
      %v1520 = vpack.c.bf16 %v1488, %v1488
      %v1521 = vpack.c.bf16 %v1489, %v1489
      %v1522 = vpack.c.bf16 %v1490, %v1490
      %v1523 = vpack.c.bf16 %v1491, %v1491
      %vm1524 = vcmask 257024
      %1525 = vst.msk [vmem:[%s175] sm:$0xf] %vm1524, %v1492
      %1526 = vst.msk [vmem:[%s175 + $0x4] sm:$0xf] %vm1524, %v1493
      %1527 = vst.msk [vmem:[%s175 + $0x8] sm:$0xf] %vm1524, %v1494
      %1528 = vst.msk [vmem:[%s175 + $0xc] sm:$0xf] %vm1524, %v1495
      %1529 = vst.msk [vmem:[%s175 + $0x10] sm:$0xf] %vm1524, %v1496
      %1530 = vst.msk [vmem:[%s175 + $0x14] sm:$0xf] %vm1524, %v1497
      %1531 = vst.msk [vmem:[%s175 + $0x18] sm:$0xf] %vm1524, %v1498
      %1532 = vst.msk [vmem:[%s175 + $0x1c] sm:$0xf] %vm1524, %v1499
      %1533 = vst.msk [vmem:[%s175 + $0x20] sm:$0xf] %vm1524, %v1500
      %1534 = vst.msk [vmem:[%s175 + $0x24] sm:$0xf] %vm1524, %v1501
      %1535 = vst.msk [vmem:[%s175 + $0x28] sm:$0xf] %vm1524, %v1502
      %1536 = vst.msk [vmem:[%s175 + $0x2c] sm:$0xf] %vm1524, %v1503
      %1537 = vst.msk [vmem:[%s175 + $0x30] sm:$0xf] %vm1524, %v1504
      %1538 = vst.msk [vmem:[%s175 + $0x34] sm:$0xf] %vm1524, %v1505
      %1539 = vst.msk [vmem:[%s175 + $0x38] sm:$0xf] %vm1524, %v1506
      %1540 = vst.msk [vmem:[%s175 + $0x3c] sm:$0xf] %vm1524, %v1507
      %1541 = vst.msk [vmem:[%s175 + $0x40] sm:$0xf] %vm1524, %v1508
      %1542 = vst.msk [vmem:[%s175 + $0x44] sm:$0xf] %vm1524, %v1509
      %1543 = vst.msk [vmem:[%s175 + $0x48] sm:$0xf] %vm1524, %v1510
      %1544 = vst.msk [vmem:[%s175 + $0x4c] sm:$0xf] %vm1524, %v1511
      %1545 = vst.msk [vmem:[%s175 + $0x50] sm:$0xf] %vm1524, %v1512
      %1546 = vst.msk [vmem:[%s175 + $0x54] sm:$0xf] %vm1524, %v1513
      %1547 = vst.msk [vmem:[%s175 + $0x58] sm:$0xf] %vm1524, %v1514
      %1548 = vst.msk [vmem:[%s175 + $0x5c] sm:$0xf] %vm1524, %v1515
      %1549 = vst.msk [vmem:[%s175 + $0x60] sm:$0xf] %vm1524, %v1516
      %1550 = vst.msk [vmem:[%s175 + $0x64] sm:$0xf] %vm1524, %v1517
      %1551 = vst.msk [vmem:[%s175 + $0x68] sm:$0xf] %vm1524, %v1518
      %1552 = vst.msk [vmem:[%s175 + $0x6c] sm:$0xf] %vm1524, %v1519
      %1553 = vst.msk [vmem:[%s175 + $0x70] sm:$0xf] %vm1524, %v1520
      %1554 = vst.msk [vmem:[%s175 + $0x74] sm:$0xf] %vm1524, %v1521
      %1555 = vst.msk [vmem:[%s175 + $0x78] sm:$0xf] %vm1524, %v1522
      %1556 = vst.msk [vmem:[%s175 + $0x7c] sm:$0xf] %vm1524, %v1523
      %s1557 = smul.u32 32, %s14
      %p1558 = scmp.lt.s32.totalorder %s1557, 63
      %s1559 = scalar_select %p1558, %s1557, 63
      %s1560 = smul.addr %s1559, 4
      %s1561 = scalar_lea.vmem %s3, %s1560
      // Predicated region
      $region33: #{curve_estimation_forward.11} parent=31 // pred_check
        %p1562 = pneg %p100
      $region34: #{curve_estimation_forward.11} parent=31 // pred_check_branch
        %1564 = sbr.rel (%p1562) target = $region36
      $region35: #{curve_estimation_forward.11} parent=31 // pred_region
        %s1565 = smul.u32 32, %s14
      $region36: #{curve_estimation_forward.11} parent=31 // pred_fallthru
        _
    $region32: #{curve_estimation_forward.11} parent=5 // pred_fallthru
      _
    %p1566 = scmp.le.s32.totalorder 2, %s9
    // Predicated region
    $region37: #{curve_estimation_forward.11} parent=5 // pred_check
      %p1567 = pneg %p1566
    $region38: #{curve_estimation_forward.11} parent=5 // pred_check_branch
      %1569 = sbr.rel (%p1567) target = $region40
    $region39: #{curve_estimation_forward.11} parent=5 // pred_region
      %s1570 = ssub.s32 %s9, 2
      // Predicated region
      $region41: #{curve_estimation_forward.11} parent=39 // pred_check
        %p1571 = pneg %p106
      $region42: #{curve_estimation_forward.11} parent=39 // pred_check_branch
        %1573 = sbr.rel (%p1571) target = $region44
      $region43: #{curve_estimation_forward.11} parent=39 // pred_region
        %s1574 = smul.u32 32, %s15
        %p1575 = scmp.lt.s32.totalorder %s1574, 63
        %s1576 = scalar_select %p1575, %s1574, 63
        %s1577 = smul.addr %s1576, 4
        %s1578 = scalar_lea.vmem %s3, %s1577
      $region44: #{curve_estimation_forward.11} parent=39 // pred_fallthru
        _
    $region40: #{curve_estimation_forward.11} parent=5 // pred_fallthru
      _
  $region6: #{curve_estimation_forward.11} parent=0 // loop_footer
    %s13 = sadd.s32 1, %s9
  $region7: #{curve_estimation_forward.11} parent=0 // loop_footer_branch
    %8 = sbr.rel target = $region3
  $region8: #{curve_estimation_forward.11} parent=0 // loop_exit
    _

// kernel: curve_estimation_forward.13
$region0: #{curve_estimation_forward.13}
  #allocation0 [shape = 'u32[]', space=smem, size = 0x4, offset = 0x4, fixed_abs, tag = 'smem constant byte address 0x4 - core index']
  #allocation1 [shape = 'u32[72,128]{1,0:T(1,128)}', space=vmem, size = 0x9000, scoped, tag = 'internal scratch']
  %s0 = inlined_call_operand.vmem [shape: bf16[512,576], index: 0, kind: input, shape index: {}]
  %s1 = inlined_call_operand.vmem [shape: bf16[576,128], index: 1, kind: input, shape index: {}]
  %s2 = inlined_call_operand.vmem [shape: f32[1,128], index: 2, kind: input, shape index: {}]
  %s3 = inlined_call_operand.vmem [shape: f32[512,128], index: 3, kind: output, shape index: {}]
  %s4 = sld [smem:[#allocation0]]
  $region45: #{curve_estimation_forward.13} parent=0
    _
  %s6 = ssub.s32 1, %s4
  %s7 = scalar_select 0, %s6, %s4
  loop: start=0, step=1, limit=4
  $region2: #{curve_estimation_forward.13} parent=0 // loop_pre_header
    _
  $region3: #{curve_estimation_forward.13} parent=0 // loop_header
    %s9 = sphi 0, %s13
    %p10 = scmp.ge.s32.totalorder %s9, 4
    %s19 = sphi 0, %s21
    %s22 = sphi 0, %s19
    %s23 = sphi 0, %s22
    %s39 = sphi 0, %s23
    %s43 = sphi 0, %s43
    %s45 = sphi 0, %s43
    %s46 = sphi 0, %s45
    %s60 = sphi 0, %s46
    %s64 = sphi 0, %s64
    %s66 = sphi 0, %s64
    %s67 = sphi 0, %s66
    %s81 = sphi 0, %s67
    %s87 = sphi 0, %s89
    %s90 = sphi 0, %s87
    %s91 = sphi 0, %s90
    %s107 = sphi 0, %s91
  $region4: #{curve_estimation_forward.13} parent=0 // loop_header_branch
    %12 = sbr.rel (%p10) target = $region8
  $region5: #{curve_estimation_forward.13} parent=0 // loop_body
    %s14 = ssub.s32 %s9, 1
    %s15 = ssub.s32 %s9, 2
    %s16 = sadd.s32 %s9, 1
    %s17 = ssub.s32 %s9, %s16
    %p18 = scmp.eq.s32.totalorder %s17, 0
    %s20 = sadd.s32 %s19, 1
    %s21 = scalar_select %p18, %s19, %s20
    %p24 = pneg %p18
    %p25 = scmp.eq.s32.totalorder %s9, 1
    %p26 = por %p24, %p25
    %p27 = scmp.ne.s32.totalorder %s19, %s22
    %p28 = scmp.eq.s32.totalorder %s9, 0
    %p29 = por %p27, %p28
    %p30 = scmp.ne.s32.totalorder %s19, %s22
    %p31 = scmp.eq.s32.totalorder %s14, 1
    %p32 = por %p30, %p31
    %p33 = scmp.ne.s32.totalorder %s22, %s23
    %p34 = scmp.eq.s32.totalorder %s14, 0
    %p35 = por %p33, %p34
    %p36 = scmp.ne.s32.totalorder %s22, %s23
    %p37 = scmp.eq.s32.totalorder %s15, 1
    %p38 = por %p36, %p37
    %p40 = scmp.ne.s32.totalorder %s23, %s39
    %p41 = scmp.eq.s32.totalorder %s15, 0
    %p42 = por %p40, %p41
    %s44 = sadd.s32 %s43, 1
    %p47 = scmp.eq.s32.totalorder %s9, 1
    %p48 = scmp.ne.s32.totalorder %s43, %s45
    %p49 = scmp.eq.s32.totalorder %s9, 0
    %p50 = por %p48, %p49
    %p51 = scmp.ne.s32.totalorder %s43, %s45
    %p52 = scmp.eq.s32.totalorder %s14, 1
    %p53 = por %p51, %p52
    %p54 = scmp.ne.s32.totalorder %s45, %s46
    %p55 = scmp.eq.s32.totalorder %s14, 0
    %p56 = por %p54, %p55
    %p57 = scmp.ne.s32.totalorder %s45, %s46
    %p58 = scmp.eq.s32.totalorder %s15, 1
    %p59 = por %p57, %p58
    %p61 = scmp.ne.s32.totalorder %s46, %s60
    %p62 = scmp.eq.s32.totalorder %s15, 0
    %p63 = por %p61, %p62
    %s65 = sadd.s32 %s64, 1
    %p68 = scmp.eq.s32.totalorder %s9, 1
    %p69 = scmp.ne.s32.totalorder %s64, %s66
    %p70 = scmp.eq.s32.totalorder %s9, 0
    %p71 = por %p69, %p70
    %p72 = scmp.ne.s32.totalorder %s64, %s66
    %p73 = scmp.eq.s32.totalorder %s14, 1
    %p74 = por %p72, %p73
    %p75 = scmp.ne.s32.totalorder %s66, %s67
    %p76 = scmp.eq.s32.totalorder %s14, 0
    %p77 = por %p75, %p76
    %p78 = scmp.ne.s32.totalorder %s66, %s67
    %p79 = scmp.eq.s32.totalorder %s15, 1
    %p80 = por %p78, %p79
    %p82 = scmp.ne.s32.totalorder %s67, %s81
    %p83 = scmp.eq.s32.totalorder %s15, 0
    %p84 = por %p82, %p83
    %s85 = ssub.s32 %s9, %s16
    %p86 = scmp.eq.s32.totalorder %s85, 0
    %s88 = sadd.s32 %s87, 1
    %s89 = scalar_select %p86, %s87, %s88
    %p92 = pneg %p86
    %p93 = scmp.eq.s32.totalorder %s9, 1
    %p94 = por %p92, %p93
    %p95 = scmp.ne.s32.totalorder %s87, %s90
    %p96 = scmp.eq.s32.totalorder %s9, 0
    %p97 = por %p95, %p96
    %p98 = scmp.ne.s32.totalorder %s87, %s90
    %p99 = scmp.eq.s32.totalorder %s14, 1
    %p100 = por %p98, %p99
    %p101 = scmp.ne.s32.totalorder %s90, %s91
    %p102 = scmp.eq.s32.totalorder %s14, 0
    %p103 = por %p101, %p102
    %p104 = scmp.ne.s32.totalorder %s90, %s91
    %p105 = scmp.eq.s32.totalorder %s15, 1
    %p106 = por %p104, %p105
    %p108 = scmp.ne.s32.totalorder %s91, %s107
    %p109 = scmp.eq.s32.totalorder %s15, 0
    %p110 = por %p108, %p109
    %p111 = scmp.le.s32.totalorder 1, %s9
    %p112 = scmp.lt.s32.totalorder %s9, 3
    %p113 = pnand %p111, %p112
    %p114 = pneg %p113
    // Predicated region
    $region9: #{curve_estimation_forward.13} parent=5 // pred_check
      _
    $region10: #{curve_estimation_forward.13} parent=5 // pred_check_branch
      %116 = sbr.rel (%p113) target = $region12
    $region11: #{curve_estimation_forward.13} parent=5 // pred_region
      %s117 = ssub.s32 %s9, 1
      // Predicated region
      $region13: #{curve_estimation_forward.13} parent=11 // pred_check
        %p118 = pneg %p56
      $region14: #{curve_estimation_forward.13} parent=11 // pred_check_branch
        %120 = sbr.rel (%p118) target = $region16
      $region15: #{curve_estimation_forward.13} parent=11 // pred_region
        _
      $region16: #{curve_estimation_forward.13} parent=11 // pred_fallthru
        _
      // Predicated region
      $region17: #{curve_estimation_forward.13} parent=11 // pred_check
        %p121 = pneg %p77
      $region18: #{curve_estimation_forward.13} parent=11 // pred_check_branch
        %123 = sbr.rel (%p121) target = $region20
      $region19: #{curve_estimation_forward.13} parent=11 // pred_region
        _
      $region20: #{curve_estimation_forward.13} parent=11 // pred_fallthru
        _
    $region12: #{curve_estimation_forward.13} parent=5 // pred_fallthru
      _
    %p124 = scmp.lt.s32.totalorder %s9, 2
    // Predicated region
    $region21: #{curve_estimation_forward.13} parent=5 // pred_check
      %p125 = pneg %p124
    $region22: #{curve_estimation_forward.13} parent=5 // pred_check_branch
      %127 = sbr.rel (%p125) target = $region24
    $region23: #{curve_estimation_forward.13} parent=5 // pred_region
      // Predicated region
      $region25: #{curve_estimation_forward.13} parent=23 // pred_check
        %p128 = pneg %p29
      $region26: #{curve_estimation_forward.13} parent=23 // pred_check_branch
        %130 = sbr.rel (%p128) target = $region28
      $region27: #{curve_estimation_forward.13} parent=23 // pred_region
        %s131 = smul.u32 32, %s9
        %p132 = scmp.lt.s32.totalorder %s131, 63
        %s133 = scalar_select %p132, %s131, 63
        %s134 = smul.addr %s133, 5
        %s135 = smul.addr %s134, 4
        %s136 = scalar_lea.vmem %s0, %s135
        %s137 = smul.u32 32, %s9
      $region28: #{curve_estimation_forward.13} parent=23 // pred_fallthru
        _
    $region24: #{curve_estimation_forward.13} parent=5 // pred_fallthru
      _
    %p138 = scmp.le.s32.totalorder 1, %s9
    %p139 = scmp.lt.s32.totalorder %s9, 3
    %p140 = pnand %p138, %p139
    %p141 = pneg %p140
    // Predicated region
    $region29: #{curve_estimation_forward.13} parent=5 // pred_check
      _
    $region30: #{curve_estimation_forward.13} parent=5 // pred_check_branch
      %143 = sbr.rel (%p140) target = $region32
    $region31: #{curve_estimation_forward.13} parent=5 // pred_region
      %s144 = ssub.s32 %s9, 1
      %s145 = smul.u32 32, %s14
      %p146 = scmp.lt.s32.totalorder %s145, 63
      %s147 = scalar_select %p146, %s145, 63
      %s148 = smul.addr %s147, 5
      %s149 = smul.addr %s148, 4
      %s150 = scalar_lea.vmem %s0, %s149
      %p151 = pneg %p35
      %p152 = pneg %p32
      %p153 = pneg %p56
      %p154 = pneg %p53
      %p155 = pneg %p77
      %p156 = pneg %p74
      %p157 = pneg %p103
      %p158 = pneg %p100
      %s159 = smul.u32 32, %s14
      %p160 = scmp.lt.s32.totalorder %s159, 63
      %s161 = scalar_select %p160, %s159, 63
      %s162 = smul.addr %s161, 8
      %s163 = scalar_lea.vmem %s3, %s162
      %s164 = smul.u32 32, %s14
      %p165 = scmp.lt.s32.totalorder %s164, 63
      %s166 = scalar_select %p165, %s164, 63
      %s167 = smul.addr %s166, 5
      %s168 = smul.addr %s167, 4
      %s169 = scalar_lea.vmem %s0, %s168
      %s170 = smul.u32 32, %s14
      %s171 = smul.u32 32, %s14
      %p172 = scmp.lt.s32.totalorder %s171, 63
      %s173 = scalar_select %p172, %s171, 63
      %s174 = smul.addr %s173, 8
      %s175 = scalar_lea.vmem %s3, %s174
      %s176 = smul.u32 32, %s14
      %v178 = vld [vmem:[%s169] sm:$0xff]
      %v179 = vld [vmem:[%s169 + $0x8] sm:$0xff]
      %v180 = vld [vmem:[%s169 + $0x10] sm:$0xf]
      %v181 = vld [vmem:[%s169 + $0x14] sm:$0xff]
      %v182 = vld [vmem:[%s169 + $0x1c] sm:$0xff]
      %v183 = vld [vmem:[%s169 + $0x24] sm:$0xf]
      %v184 = vld [vmem:[%s169 + $0x28] sm:$0xff]
      %v185 = vld [vmem:[%s169 + $0x30] sm:$0xff]
      %v186 = vld [vmem:[%s169 + $0x38] sm:$0xf]
      %v187 = vld [vmem:[%s169 + $0x3c] sm:$0xff]
      %v188 = vld [vmem:[%s169 + $0x44] sm:$0xff]
      %v189 = vld [vmem:[%s169 + $0x4c] sm:$0xf]
      %v190 = vld [vmem:[%s169 + $0x50] sm:$0xff]
      %v191 = vld [vmem:[%s169 + $0x58] sm:$0xff]
      %v192 = vld [vmem:[%s169 + $0x60] sm:$0xf]
      %v193 = vld [vmem:[%s169 + $0x64] sm:$0xff]
      %v194 = vld [vmem:[%s169 + $0x6c] sm:$0xff]
      %v195 = vld [vmem:[%s169 + $0x74] sm:$0xf]
      %v196 = vld [vmem:[%s169 + $0x78] sm:$0xff]
      %v197 = vld [vmem:[%s169 + $0x80] sm:$0xff]
      %v198 = vld [vmem:[%s169 + $0x88] sm:$0xf]
      %v199 = vld [vmem:[%s169 + $0x8c] sm:$0xff]
      %v200 = vld [vmem:[%s169 + $0x94] sm:$0xff]
      %v201 = vld [vmem:[%s169 + $0x9c] sm:$0xf]
      %v202 = vld [vmem:[%s169 + $0xa0] sm:$0xff]
      %v203 = vld [vmem:[%s169 + $0xa8] sm:$0xff]
      %v204 = vld [vmem:[%s169 + $0xb0] sm:$0xf]
      %v205 = vld [vmem:[%s169 + $0xb4] sm:$0xff]
      %v206 = vld [vmem:[%s169 + $0xbc] sm:$0xff]
      %v207 = vld [vmem:[%s169 + $0xc4] sm:$0xf]
      %v208 = vld [vmem:[%s169 + $0xc8] sm:$0xff]
      %v209 = vld [vmem:[%s169 + $0xd0] sm:$0xff]
      %v210 = vld [vmem:[%s169 + $0xd8] sm:$0xf]
      %v211 = vld [vmem:[%s169 + $0xdc] sm:$0xff]
      %v212 = vld [vmem:[%s169 + $0xe4] sm:$0xff]
      %v213 = vld [vmem:[%s169 + $0xec] sm:$0xf]
      %v214 = vld [vmem:[%s169 + $0xf0] sm:$0xff]
      %v215 = vld [vmem:[%s169 + $0xf8] sm:$0xff]
      %v216 = vld [vmem:[%s169 + $0x100] sm:$0xf]
      %v217 = vld [vmem:[%s169 + $0x104] sm:$0xff]
      %v218 = vld [vmem:[%s169 + $0x10c] sm:$0xff]
      %v219 = vld [vmem:[%s169 + $0x114] sm:$0xf]
      %v220 = vld [vmem:[%s169 + $0x118] sm:$0xff]
      %v221 = vld [vmem:[%s169 + $0x120] sm:$0xff]
      %v222 = vld [vmem:[%s169 + $0x128] sm:$0xf]
      %v223 = vld [vmem:[%s169 + $0x12c] sm:$0xff]
      %v224 = vld [vmem:[%s169 + $0x134] sm:$0xff]
      %v225 = vld [vmem:[%s169 + $0x13c] sm:$0xf]
      %v226 = vld [vmem:[%s169 + $0x140] sm:$0xff]
      %v227 = vld [vmem:[%s169 + $0x148] sm:$0xff]
      %v228 = vld [vmem:[%s169 + $0x150] sm:$0xf]
      %v229 = vld [vmem:[%s169 + $0x154] sm:$0xff]
      %v230 = vld [vmem:[%s169 + $0x15c] sm:$0xff]
      %v231 = vld [vmem:[%s169 + $0x164] sm:$0xf]
      %v232 = vld [vmem:[%s169 + $0x168] sm:$0xff]
      %v233 = vld [vmem:[%s169 + $0x170] sm:$0xff]
      %v234 = vld [vmem:[%s169 + $0x178] sm:$0xf]
      %v235 = vld [vmem:[%s169 + $0x17c] sm:$0xff]
      %v236 = vld [vmem:[%s169 + $0x184] sm:$0xff]
      %v237 = vld [vmem:[%s169 + $0x18c] sm:$0xf]
      %v238 = vld [vmem:[%s169 + $0x190] sm:$0xff]
      %v239 = vld [vmem:[%s169 + $0x198] sm:$0xff]
      %v240 = vld [vmem:[%s169 + $0x1a0] sm:$0xf]
      %v241 = vld [vmem:[%s169 + $0x1a4] sm:$0xff]
      %v242 = vld [vmem:[%s169 + $0x1ac] sm:$0xff]
      %v243 = vld [vmem:[%s169 + $0x1b4] sm:$0xf]
      %v244 = vld [vmem:[%s169 + $0x1b8] sm:$0xff]
      %v245 = vld [vmem:[%s169 + $0x1c0] sm:$0xff]
      %v246 = vld [vmem:[%s169 + $0x1c8] sm:$0xf]
      %v247 = vld [vmem:[%s169 + $0x1cc] sm:$0xff]
      %v248 = vld [vmem:[%s169 + $0x1d4] sm:$0xff]
      %v249 = vld [vmem:[%s169 + $0x1dc] sm:$0xf]
      %v250 = vld [vmem:[%s169 + $0x1e0] sm:$0xff]
      %v251 = vld [vmem:[%s169 + $0x1e8] sm:$0xff]
      %v252 = vld [vmem:[%s169 + $0x1f0] sm:$0xf]
      %v253 = vld [vmem:[%s169 + $0x1f4] sm:$0xff]
      %v254 = vld [vmem:[%s169 + $0x1fc] sm:$0xff]
      %v255 = vld [vmem:[%s169 + $0x204] sm:$0xf]
      %v256 = vld [vmem:[%s169 + $0x208] sm:$0xff]
      %v257 = vld [vmem:[%s169 + $0x210] sm:$0xff]
      %v258 = vld [vmem:[%s169 + $0x218] sm:$0xf]
      %v259 = vld [vmem:[%s169 + $0x21c] sm:$0xff]
      %v260 = vld [vmem:[%s169 + $0x224] sm:$0xff]
      %v261 = vld [vmem:[%s169 + $0x22c] sm:$0xf]
      %v262 = vld [vmem:[%s169 + $0x230] sm:$0xff]
      %v263 = vld [vmem:[%s169 + $0x238] sm:$0xff]
      %v264 = vld [vmem:[%s169 + $0x240] sm:$0xf]
      %v265 = vld [vmem:[%s169 + $0x244] sm:$0xff]
      %v266 = vld [vmem:[%s169 + $0x24c] sm:$0xff]
      %v267 = vld [vmem:[%s169 + $0x254] sm:$0xf]
      %v268 = vld [vmem:[%s169 + $0x258] sm:$0xff]
      %v269 = vld [vmem:[%s169 + $0x260] sm:$0xff]
      %v270 = vld [vmem:[%s169 + $0x268] sm:$0xf]
      %v271 = vld [vmem:[%s169 + $0x26c] sm:$0xff]
      %v272 = vld [vmem:[%s169 + $0x274] sm:$0xff]
      %v273 = vld [vmem:[%s169 + $0x27c] sm:$0xf]
      %v274 = vld [vmem:[%s1] sm:$0xf]
      %v275 = vld [vmem:[%s1 + $0x4] sm:$0xf]
      %v276 = vld [vmem:[%s1 + $0x8] sm:$0xf]
      %v277 = vld [vmem:[%s1 + $0xc] sm:$0xf]
      %v278 = vld [vmem:[%s1 + $0x10] sm:$0xf]
      %v279 = vld [vmem:[%s1 + $0x14] sm:$0xf]
      %v280 = vld [vmem:[%s1 + $0x18] sm:$0xf]
      %v281 = vld [vmem:[%s1 + $0x1c] sm:$0xf]
      %v282 = vld [vmem:[%s1 + $0x20] sm:$0xf]
      %v283 = vld [vmem:[%s1 + $0x24] sm:$0xf]
      %v284 = vld [vmem:[%s1 + $0x28] sm:$0xf]
      %v285 = vld [vmem:[%s1 + $0x2c] sm:$0xf]
      %v286 = vld [vmem:[%s1 + $0x30] sm:$0xf]
      %v287 = vld [vmem:[%s1 + $0x34] sm:$0xf]
      %v288 = vld [vmem:[%s1 + $0x38] sm:$0xf]
      %v289 = vld [vmem:[%s1 + $0x3c] sm:$0xf]
      %v290 = vld [vmem:[%s1 + $0x40] sm:$0xf]
      %v291 = vld [vmem:[%s1 + $0x44] sm:$0xf]
      %v292 = vld [vmem:[%s1 + $0x48] sm:$0xf]
      %v293 = vld [vmem:[%s1 + $0x4c] sm:$0xf]
      %v294 = vld [vmem:[%s1 + $0x50] sm:$0xf]
      %v295 = vld [vmem:[%s1 + $0x54] sm:$0xf]
      %v296 = vld [vmem:[%s1 + $0x58] sm:$0xf]
      %v297 = vld [vmem:[%s1 + $0x5c] sm:$0xf]
      %v298 = vld [vmem:[%s1 + $0x60] sm:$0xf]
      %v299 = vld [vmem:[%s1 + $0x64] sm:$0xf]
      %v300 = vld [vmem:[%s1 + $0x68] sm:$0xf]
      %v301 = vld [vmem:[%s1 + $0x6c] sm:$0xf]
      %v302 = vld [vmem:[%s1 + $0x70] sm:$0xf]
      %v303 = vld [vmem:[%s1 + $0x74] sm:$0xf]
      %v304 = vld [vmem:[%s1 + $0x78] sm:$0xf]
      %v305 = vld [vmem:[%s1 + $0x7c] sm:$0xf]
      %v306 = vld [vmem:[%s1 + $0x80] sm:$0xf]
      %v307 = vld [vmem:[%s1 + $0x84] sm:$0xf]
      %v308 = vld [vmem:[%s1 + $0x88] sm:$0xf]
      %v309 = vld [vmem:[%s1 + $0x8c] sm:$0xf]
      %v310 = vld [vmem:[%s1 + $0x90] sm:$0xf]
      %v311 = vld [vmem:[%s1 + $0x94] sm:$0xf]
      %v312 = vld [vmem:[%s1 + $0x98] sm:$0xf]
      %v313 = vld [vmem:[%s1 + $0x9c] sm:$0xf]
      %v314 = vld [vmem:[%s1 + $0xa0] sm:$0xf]
      %v315 = vld [vmem:[%s1 + $0xa4] sm:$0xf]
      %v316 = vld [vmem:[%s1 + $0xa8] sm:$0xf]
      %v317 = vld [vmem:[%s1 + $0xac] sm:$0xf]
      %v318 = vld [vmem:[%s1 + $0xb0] sm:$0xf]
      %v319 = vld [vmem:[%s1 + $0xb4] sm:$0xf]
      %v320 = vld [vmem:[%s1 + $0xb8] sm:$0xf]
      %v321 = vld [vmem:[%s1 + $0xbc] sm:$0xf]
      %v322 = vld [vmem:[%s1 + $0xc0] sm:$0xf]
      %v323 = vld [vmem:[%s1 + $0xc4] sm:$0xf]
      %v324 = vld [vmem:[%s1 + $0xc8] sm:$0xf]
      %v325 = vld [vmem:[%s1 + $0xcc] sm:$0xf]
      %v326 = vld [vmem:[%s1 + $0xd0] sm:$0xf]
      %v327 = vld [vmem:[%s1 + $0xd4] sm:$0xf]
      %v328 = vld [vmem:[%s1 + $0xd8] sm:$0xf]
      %v329 = vld [vmem:[%s1 + $0xdc] sm:$0xf]
      %v330 = vld [vmem:[%s1 + $0xe0] sm:$0xf]
      %v331 = vld [vmem:[%s1 + $0xe4] sm:$0xf]
      %v332 = vld [vmem:[%s1 + $0xe8] sm:$0xf]
      %v333 = vld [vmem:[%s1 + $0xec] sm:$0xf]
      %v334 = vld [vmem:[%s1 + $0xf0] sm:$0xf]
      %v335 = vld [vmem:[%s1 + $0xf4] sm:$0xf]
      %v336 = vld [vmem:[%s1 + $0xf8] sm:$0xf]
      %v337 = vld [vmem:[%s1 + $0xfc] sm:$0xf]
      %v338 = vld [vmem:[%s1 + $0x100] sm:$0xf]
      %v339 = vld [vmem:[%s1 + $0x104] sm:$0xf]
      %v340 = vld [vmem:[%s1 + $0x108] sm:$0xf]
      %v341 = vld [vmem:[%s1 + $0x10c] sm:$0xf]
      %v342 = vld [vmem:[%s1 + $0x110] sm:$0xf]
      %v343 = vld [vmem:[%s1 + $0x114] sm:$0xf]
      %v344 = vld [vmem:[%s1 + $0x118] sm:$0xf]
      %v345 = vld [vmem:[%s1 + $0x11c] sm:$0xf]
      %v346 = vld [vmem:[%s2] sm:$0x1]
      %v348 = vperm.slane %v346, 0
      %v446 = vunpack.c.l.b16 %v178
      %v447 = vunpack.c.h.b16 %v178
      %v448 = vunpack.c.l.b16 %v179
      %v449 = vunpack.c.h.b16 %v179
      %v450 = vunpack.c.l.b16 %v180
      %v451 = vunpack.c.l.b16 %v181
      %v452 = vunpack.c.h.b16 %v181
      %v453 = vunpack.c.l.b16 %v182
      %v454 = vunpack.c.h.b16 %v182
      %v455 = vunpack.c.l.b16 %v183
      %v456 = vunpack.c.l.b16 %v184
      %v457 = vunpack.c.h.b16 %v184
      %v458 = vunpack.c.l.b16 %v185
      %v459 = vunpack.c.h.b16 %v185
      %v460 = vunpack.c.l.b16 %v186
      %v461 = vunpack.c.l.b16 %v187
      %v462 = vunpack.c.h.b16 %v187
      %v463 = vunpack.c.l.b16 %v188
      %v464 = vunpack.c.h.b16 %v188
      %v465 = vunpack.c.l.b16 %v189
      %v466 = vunpack.c.l.b16 %v190
      %v467 = vunpack.c.h.b16 %v190
      %v468 = vunpack.c.l.b16 %v191
      %v469 = vunpack.c.h.b16 %v191
      %v470 = vunpack.c.l.b16 %v192
      %v471 = vunpack.c.l.b16 %v193
      %v472 = vunpack.c.h.b16 %v193
      %v473 = vunpack.c.l.b16 %v194
      %v474 = vunpack.c.h.b16 %v194
      %v475 = vunpack.c.l.b16 %v195
      %v476 = vunpack.c.l.b16 %v196
      %v477 = vunpack.c.h.b16 %v196
      %v478 = vunpack.c.l.b16 %v197
      %v479 = vunpack.c.h.b16 %v197
      %v480 = vunpack.c.l.b16 %v198
      %v481 = vunpack.c.l.b16 %v199
      %v482 = vunpack.c.h.b16 %v199
      %v483 = vunpack.c.l.b16 %v200
      %v484 = vunpack.c.h.b16 %v200
      %v485 = vunpack.c.l.b16 %v201
      %v486 = vunpack.c.l.b16 %v202
      %v487 = vunpack.c.h.b16 %v202
      %v488 = vunpack.c.l.b16 %v203
      %v489 = vunpack.c.h.b16 %v203
      %v490 = vunpack.c.l.b16 %v204
      %v491 = vunpack.c.l.b16 %v205
      %v492 = vunpack.c.h.b16 %v205
      %v493 = vunpack.c.l.b16 %v206
      %v494 = vunpack.c.h.b16 %v206
      %v495 = vunpack.c.l.b16 %v207
      %v496 = vunpack.c.l.b16 %v208
      %v497 = vunpack.c.h.b16 %v208
      %v498 = vunpack.c.l.b16 %v209
      %v499 = vunpack.c.h.b16 %v209
      %v500 = vunpack.c.l.b16 %v210
      %v501 = vunpack.c.l.b16 %v211
      %v502 = vunpack.c.h.b16 %v211
      %v503 = vunpack.c.l.b16 %v212
      %v504 = vunpack.c.h.b16 %v212
      %v505 = vunpack.c.l.b16 %v213
      %v506 = vunpack.c.l.b16 %v214
      %v507 = vunpack.c.h.b16 %v214
      %v508 = vunpack.c.l.b16 %v215
      %v509 = vunpack.c.h.b16 %v215
      %v510 = vunpack.c.l.b16 %v216
      %v511 = vunpack.c.l.b16 %v217
      %v512 = vunpack.c.h.b16 %v217
      %v513 = vunpack.c.l.b16 %v218
      %v514 = vunpack.c.h.b16 %v218
      %v515 = vunpack.c.l.b16 %v219
      %v516 = vunpack.c.l.b16 %v220
      %v517 = vunpack.c.h.b16 %v220
      %v518 = vunpack.c.l.b16 %v221
      %v519 = vunpack.c.h.b16 %v221
      %v520 = vunpack.c.l.b16 %v222
      %v521 = vunpack.c.l.b16 %v223
      %v522 = vunpack.c.h.b16 %v223
      %v523 = vunpack.c.l.b16 %v224
      %v524 = vunpack.c.h.b16 %v224
      %v525 = vunpack.c.l.b16 %v225
      %v526 = vunpack.c.l.b16 %v226
      %v527 = vunpack.c.h.b16 %v226
      %v528 = vunpack.c.l.b16 %v227
      %v529 = vunpack.c.h.b16 %v227
      %v530 = vunpack.c.l.b16 %v228
      %v531 = vunpack.c.l.b16 %v229
      %v532 = vunpack.c.h.b16 %v229
      %v533 = vunpack.c.l.b16 %v230
      %v534 = vunpack.c.h.b16 %v230
      %v535 = vunpack.c.l.b16 %v231
      %v536 = vunpack.c.l.b16 %v232
      %v537 = vunpack.c.h.b16 %v232
      %v538 = vunpack.c.l.b16 %v233
      %v539 = vunpack.c.h.b16 %v233
      %v540 = vunpack.c.l.b16 %v234
      %v541 = vunpack.c.l.b16 %v235
      %v542 = vunpack.c.h.b16 %v235
      %v543 = vunpack.c.l.b16 %v236
      %v544 = vunpack.c.h.b16 %v236
      %v545 = vunpack.c.l.b16 %v237
      %v546 = vunpack.c.l.b16 %v238
      %v547 = vunpack.c.h.b16 %v238
      %v548 = vunpack.c.l.b16 %v239
      %v549 = vunpack.c.h.b16 %v239
      %v550 = vunpack.c.l.b16 %v240
      %v551 = vunpack.c.l.b16 %v241
      %v552 = vunpack.c.h.b16 %v241
      %v553 = vunpack.c.l.b16 %v242
      %v554 = vunpack.c.h.b16 %v242
      %v555 = vunpack.c.l.b16 %v243
      %v556 = vunpack.c.l.b16 %v244
      %v557 = vunpack.c.h.b16 %v244
      %v558 = vunpack.c.l.b16 %v245
      %v559 = vunpack.c.h.b16 %v245
      %v560 = vunpack.c.l.b16 %v246
      %v561 = vunpack.c.l.b16 %v247
      %v562 = vunpack.c.h.b16 %v247
      %v563 = vunpack.c.l.b16 %v248
      %v564 = vunpack.c.h.b16 %v248
      %v565 = vunpack.c.l.b16 %v249
      %v566 = vunpack.c.l.b16 %v250
      %v567 = vunpack.c.h.b16 %v250
      %v568 = vunpack.c.l.b16 %v251
      %v569 = vunpack.c.h.b16 %v251
      %v570 = vunpack.c.l.b16 %v252
      %v571 = vunpack.c.l.b16 %v253
      %v572 = vunpack.c.h.b16 %v253
      %v573 = vunpack.c.l.b16 %v254
      %v574 = vunpack.c.h.b16 %v254
      %v575 = vunpack.c.l.b16 %v255
      %v576 = vunpack.c.l.b16 %v256
      %v577 = vunpack.c.h.b16 %v256
      %v578 = vunpack.c.l.b16 %v257
      %v579 = vunpack.c.h.b16 %v257
      %v580 = vunpack.c.l.b16 %v258
      %v581 = vunpack.c.l.b16 %v259
      %v582 = vunpack.c.h.b16 %v259
      %v583 = vunpack.c.l.b16 %v260
      %v584 = vunpack.c.h.b16 %v260
      %v585 = vunpack.c.l.b16 %v261
      %v586 = vunpack.c.l.b16 %v262
      %v587 = vunpack.c.h.b16 %v262
      %v588 = vunpack.c.l.b16 %v263
      %v589 = vunpack.c.h.b16 %v263
      %v590 = vunpack.c.l.b16 %v264
      %v591 = vunpack.c.l.b16 %v265
      %v592 = vunpack.c.h.b16 %v265
      %v593 = vunpack.c.l.b16 %v266
      %v594 = vunpack.c.h.b16 %v266
      %v595 = vunpack.c.l.b16 %v267
      %v596 = vunpack.c.l.b16 %v268
      %v597 = vunpack.c.h.b16 %v268
      %v598 = vunpack.c.l.b16 %v269
      %v599 = vunpack.c.h.b16 %v269
      %v600 = vunpack.c.l.b16 %v270
      %v601 = vunpack.c.l.b16 %v271
      %v602 = vunpack.c.h.b16 %v271
      %v603 = vunpack.c.l.b16 %v272
      %v604 = vunpack.c.h.b16 %v272
      %v605 = vunpack.c.l.b16 %v273
      %v606 = vpack.c.b16 %v451, %v446
      %v607 = vpack.c.b16 %v452, %v447
      %v608 = vpack.c.b16 %v453, %v448
      %v609 = vpack.c.b16 %v454, %v449
      %v610 = vpack.c.b16 %v455, %v450
      %v611 = vpack.c.b16 %v461, %v456
      %v612 = vpack.c.b16 %v462, %v457
      %v613 = vpack.c.b16 %v463, %v458
      %v614 = vpack.c.b16 %v464, %v459
      %v615 = vpack.c.b16 %v465, %v460
      %v616 = vpack.c.b16 %v471, %v466
      %v617 = vpack.c.b16 %v472, %v467
      %v618 = vpack.c.b16 %v473, %v468
      %v619 = vpack.c.b16 %v474, %v469
      %v620 = vpack.c.b16 %v475, %v470
      %v621 = vpack.c.b16 %v481, %v476
      %v622 = vpack.c.b16 %v482, %v477
      %v623 = vpack.c.b16 %v483, %v478
      %v624 = vpack.c.b16 %v484, %v479
      %v625 = vpack.c.b16 %v485, %v480
      %v626 = vpack.c.b16 %v491, %v486
      %v627 = vpack.c.b16 %v492, %v487
      %v628 = vpack.c.b16 %v493, %v488
      %v629 = vpack.c.b16 %v494, %v489
      %v630 = vpack.c.b16 %v495, %v490
      %v631 = vpack.c.b16 %v501, %v496
      %v632 = vpack.c.b16 %v502, %v497
      %v633 = vpack.c.b16 %v503, %v498
      %v634 = vpack.c.b16 %v504, %v499
      %v635 = vpack.c.b16 %v505, %v500
      %v636 = vpack.c.b16 %v511, %v506
      %v637 = vpack.c.b16 %v512, %v507
      %v638 = vpack.c.b16 %v513, %v508
      %v639 = vpack.c.b16 %v514, %v509
      %v640 = vpack.c.b16 %v515, %v510
      %v641 = vpack.c.b16 %v521, %v516
      %v642 = vpack.c.b16 %v522, %v517
      %v643 = vpack.c.b16 %v523, %v518
      %v644 = vpack.c.b16 %v524, %v519
      %v645 = vpack.c.b16 %v525, %v520
      %v646 = vpack.c.b16 %v531, %v526
      %v647 = vpack.c.b16 %v532, %v527
      %v648 = vpack.c.b16 %v533, %v528
      %v649 = vpack.c.b16 %v534, %v529
      %v650 = vpack.c.b16 %v535, %v530
      %v651 = vpack.c.b16 %v541, %v536
      %v652 = vpack.c.b16 %v542, %v537
      %v653 = vpack.c.b16 %v543, %v538
      %v654 = vpack.c.b16 %v544, %v539
      %v655 = vpack.c.b16 %v545, %v540
      %v656 = vpack.c.b16 %v551, %v546
      %v657 = vpack.c.b16 %v552, %v547
      %v658 = vpack.c.b16 %v553, %v548
      %v659 = vpack.c.b16 %v554, %v549
      %v660 = vpack.c.b16 %v555, %v550
      %v661 = vpack.c.b16 %v561, %v556
      %v662 = vpack.c.b16 %v562, %v557
      %v663 = vpack.c.b16 %v563, %v558
      %v664 = vpack.c.b16 %v564, %v559
      %v665 = vpack.c.b16 %v565, %v560
      %v666 = vpack.c.b16 %v571, %v566
      %v667 = vpack.c.b16 %v572, %v567
      %v668 = vpack.c.b16 %v573, %v568
      %v669 = vpack.c.b16 %v574, %v569
      %v670 = vpack.c.b16 %v575, %v570
      %v671 = vpack.c.b16 %v581, %v576
      %v672 = vpack.c.b16 %v582, %v577
      %v673 = vpack.c.b16 %v583, %v578
      %v674 = vpack.c.b16 %v584, %v579
      %v675 = vpack.c.b16 %v585, %v580
      %v676 = vpack.c.b16 %v591, %v586
      %v677 = vpack.c.b16 %v592, %v587
      %v678 = vpack.c.b16 %v593, %v588
      %v679 = vpack.c.b16 %v594, %v589
      %v680 = vpack.c.b16 %v595, %v590
      %v681 = vpack.c.b16 %v601, %v596
      %v682 = vpack.c.b16 %v602, %v597
      %v683 = vpack.c.b16 %v603, %v598
      %v684 = vpack.c.b16 %v604, %v599
      %v685 = vpack.c.b16 %v605, %v600
      %v822 = vunpack.c.l.b16 %v274
      %v823 = vunpack.c.l.b16 %v275
      %v824 = vunpack.c.l.b16 %v276
      %v825 = vunpack.c.l.b16 %v277
      %v826 = vunpack.c.l.b16 %v278
      %v827 = vunpack.c.l.b16 %v279
      %v828 = vunpack.c.l.b16 %v280
      %v829 = vunpack.c.l.b16 %v281
      %v830 = vunpack.c.l.b16 %v282
      %v831 = vunpack.c.l.b16 %v283
      %v832 = vunpack.c.l.b16 %v284
      %v833 = vunpack.c.l.b16 %v285
      %v834 = vunpack.c.l.b16 %v286
      %v835 = vunpack.c.l.b16 %v287
      %v836 = vunpack.c.l.b16 %v288
      %v837 = vunpack.c.l.b16 %v289
      %v838 = vunpack.c.l.b16 %v290
      %v839 = vunpack.c.l.b16 %v291
      %v840 = vunpack.c.l.b16 %v292
      %v841 = vunpack.c.l.b16 %v293
      %v842 = vunpack.c.l.b16 %v294
      %v843 = vunpack.c.l.b16 %v295
      %v844 = vunpack.c.l.b16 %v296
      %v845 = vunpack.c.l.b16 %v297
      %v846 = vunpack.c.l.b16 %v298
      %v847 = vunpack.c.l.b16 %v299
      %v848 = vunpack.c.l.b16 %v300
      %v849 = vunpack.c.l.b16 %v301
      %v850 = vunpack.c.l.b16 %v302
      %v851 = vunpack.c.l.b16 %v303
      %v852 = vunpack.c.l.b16 %v304
      %v853 = vunpack.c.l.b16 %v305
      %v854 = vunpack.c.l.b16 %v306
      %v855 = vunpack.c.l.b16 %v307
      %v856 = vunpack.c.l.b16 %v308
      %v857 = vunpack.c.l.b16 %v309
      %v858 = vunpack.c.l.b16 %v310
      %v859 = vunpack.c.l.b16 %v311
      %v860 = vunpack.c.l.b16 %v312
      %v861 = vunpack.c.l.b16 %v313
      %v862 = vunpack.c.l.b16 %v314
      %v863 = vunpack.c.l.b16 %v315
      %v864 = vunpack.c.l.b16 %v316
      %v865 = vunpack.c.l.b16 %v317
      %v866 = vunpack.c.l.b16 %v318
      %v867 = vunpack.c.l.b16 %v319
      %v868 = vunpack.c.l.b16 %v320
      %v869 = vunpack.c.l.b16 %v321
      %v870 = vunpack.c.l.b16 %v322
      %v871 = vunpack.c.l.b16 %v323
      %v872 = vunpack.c.l.b16 %v324
      %v873 = vunpack.c.l.b16 %v325
      %v874 = vunpack.c.l.b16 %v326
      %v875 = vunpack.c.l.b16 %v327
      %v876 = vunpack.c.l.b16 %v328
      %v877 = vunpack.c.l.b16 %v329
      %v878 = vunpack.c.l.b16 %v330
      %v879 = vunpack.c.l.b16 %v331
      %v880 = vunpack.c.l.b16 %v332
      %v881 = vunpack.c.l.b16 %v333
      %v882 = vunpack.c.l.b16 %v334
      %v883 = vunpack.c.l.b16 %v335
      %v884 = vunpack.c.l.b16 %v336
      %v885 = vunpack.c.l.b16 %v337
      %v886 = vunpack.c.l.b16 %v338
      %v887 = vunpack.c.l.b16 %v339
      %v888 = vunpack.c.l.b16 %v340
      %v889 = vunpack.c.l.b16 %v341
      %v890 = vunpack.c.l.b16 %v342
      %v891 = vunpack.c.l.b16 %v343
      %v892 = vunpack.c.l.b16 %v344
      %v893 = vunpack.c.l.b16 %v345
      %v894 = vpack.c.b16 %v823, %v822
      %v895 = vpack.c.b16 %v825, %v824
      %v896 = vpack.c.b16 %v827, %v826
      %v897 = vpack.c.b16 %v829, %v828
      %v898 = vpack.c.b16 %v831, %v830
      %v899 = vpack.c.b16 %v833, %v832
      %v900 = vpack.c.b16 %v835, %v834
      %v901 = vpack.c.b16 %v837, %v836
      %v902 = vpack.c.b16 %v839, %v838
      %v903 = vpack.c.b16 %v841, %v840
      %v904 = vpack.c.b16 %v843, %v842
      %v905 = vpack.c.b16 %v845, %v844
      %v906 = vpack.c.b16 %v847, %v846
      %v907 = vpack.c.b16 %v849, %v848
      %v908 = vpack.c.b16 %v851, %v850
      %v909 = vpack.c.b16 %v853, %v852
      %v910 = vpack.c.b16 %v855, %v854
      %v911 = vpack.c.b16 %v857, %v856
      %v912 = vpack.c.b16 %v859, %v858
      %v913 = vpack.c.b16 %v861, %v860
      %v914 = vpack.c.b16 %v863, %v862
      %v915 = vpack.c.b16 %v865, %v864
      %v916 = vpack.c.b16 %v867, %v866
      %v917 = vpack.c.b16 %v869, %v868
      %v918 = vpack.c.b16 %v871, %v870
      %v919 = vpack.c.b16 %v873, %v872
      %v920 = vpack.c.b16 %v875, %v874
      %v921 = vpack.c.b16 %v877, %v876
      %v922 = vpack.c.b16 %v879, %v878
      %v923 = vpack.c.b16 %v881, %v880
      %v924 = vpack.c.b16 %v883, %v882
      %v925 = vpack.c.b16 %v885, %v884
      %v926 = vpack.c.b16 %v887, %v886
      %v927 = vpack.c.b16 %v889, %v888
      %v928 = vpack.c.b16 %v891, %v890
      %v929 = vpack.c.b16 %v893, %v892
      %vm966 = vcmask 523264
      %v968 = vsel %vm966, %v610, 0
      %v971 = vsel %vm966, %v615, 0
      %v974 = vsel %vm966, %v620, 0
      %v977 = vsel %vm966, %v625, 0
      %v980 = vsel %vm966, %v630, 0
      %v983 = vsel %vm966, %v635, 0
      %v986 = vsel %vm966, %v640, 0
      %v989 = vsel %vm966, %v645, 0
      %v992 = vsel %vm966, %v650, 0
      %v995 = vsel %vm966, %v655, 0
      %v998 = vsel %vm966, %v660, 0
      %v1001 = vsel %vm966, %v665, 0
      %v1004 = vsel %vm966, %v670, 0
      %v1007 = vsel %vm966, %v675, 0
      %v1010 = vsel %vm966, %v680, 0
      %v1013 = vsel %vm966, %v685, 0
      %1015 = vmatpush.bf16.msra.mxu0 %v901
      %1016 = vmatpush.bf16.msra.mxu0 %v900
      %1017 = vmatpush.bf16.msra.mxu0 %v899
      %1018 = vmatpush.bf16.msra.mxu0 %v898
      %1019 = vmatpush.bf16.msra.mxu0 %v897
      %1020 = vmatpush.bf16.msra.mxu0 %v896
      %1021 = vmatpush.bf16.msra.mxu0 %v895
      %1022 = vmatpush.bf16.msra.mxu0 %v894
      %1023 = vmatmul.bf16.gmra.mxu0 %v606
      %v1024 = vpop.f32.mrf.mxu0
      %v1025 = vadd.f32 %v348, %v1024
      %v1026 = vpop.f32.mrf.mxu0
      %v1027 = vadd.f32 %v348, %v1026
      %1028 = vmatmul.bf16.gmra.mxu0 %v611
      %v1029 = vpop.f32.mrf.mxu0
      %v1030 = vadd.f32 %v348, %v1029
      %v1031 = vpop.f32.mrf.mxu0
      %v1032 = vadd.f32 %v348, %v1031
      %1033 = vmatmul.bf16.gmra.mxu0 %v616
      %v1034 = vpop.f32.mrf.mxu0
      %v1035 = vadd.f32 %v348, %v1034
      %v1036 = vpop.f32.mrf.mxu0
      %v1037 = vadd.f32 %v348, %v1036
      %1038 = vmatmul.bf16.gmra.mxu0 %v621
      %v1039 = vpop.f32.mrf.mxu0
      %v1040 = vadd.f32 %v348, %v1039
      %v1041 = vpop.f32.mrf.mxu0
      %v1042 = vadd.f32 %v348, %v1041
      %1043 = vmatmul.bf16.gmra.mxu0 %v626
      %v1044 = vpop.f32.mrf.mxu0
      %v1045 = vadd.f32 %v348, %v1044
      %v1046 = vpop.f32.mrf.mxu0
      %v1047 = vadd.f32 %v348, %v1046
      %1048 = vmatmul.bf16.gmra.mxu0 %v631
      %v1049 = vpop.f32.mrf.mxu0
      %v1050 = vadd.f32 %v348, %v1049
      %v1051 = vpop.f32.mrf.mxu0
      %v1052 = vadd.f32 %v348, %v1051
      %1053 = vmatmul.bf16.gmra.mxu0 %v636
      %v1054 = vpop.f32.mrf.mxu0
      %v1055 = vadd.f32 %v348, %v1054
      %v1056 = vpop.f32.mrf.mxu0
      %v1057 = vadd.f32 %v348, %v1056
      %1058 = vmatmul.bf16.gmra.mxu0 %v641
      %v1059 = vpop.f32.mrf.mxu0
      %v1060 = vadd.f32 %v348, %v1059
      %v1061 = vpop.f32.mrf.mxu0
      %v1062 = vadd.f32 %v348, %v1061
      %1063 = vmatmul.bf16.gmra.mxu0 %v646
      %v1064 = vpop.f32.mrf.mxu0
      %v1065 = vadd.f32 %v348, %v1064
      %v1066 = vpop.f32.mrf.mxu0
      %v1067 = vadd.f32 %v348, %v1066
      %1068 = vmatmul.bf16.gmra.mxu0 %v651
      %v1069 = vpop.f32.mrf.mxu0
      %v1070 = vadd.f32 %v348, %v1069
      %v1071 = vpop.f32.mrf.mxu0
      %v1072 = vadd.f32 %v348, %v1071
      %1073 = vmatmul.bf16.gmra.mxu0 %v656
      %v1074 = vpop.f32.mrf.mxu0
      %v1075 = vadd.f32 %v348, %v1074
      %v1076 = vpop.f32.mrf.mxu0
      %v1077 = vadd.f32 %v348, %v1076
      %1078 = vmatmul.bf16.gmra.mxu0 %v661
      %v1079 = vpop.f32.mrf.mxu0
      %v1080 = vadd.f32 %v348, %v1079
      %v1081 = vpop.f32.mrf.mxu0
      %v1082 = vadd.f32 %v348, %v1081
      %1083 = vmatmul.bf16.gmra.mxu0 %v666
      %v1084 = vpop.f32.mrf.mxu0
      %v1085 = vadd.f32 %v348, %v1084
      %v1086 = vpop.f32.mrf.mxu0
      %v1087 = vadd.f32 %v348, %v1086
      %1088 = vmatmul.bf16.gmra.mxu0 %v671
      %v1089 = vpop.f32.mrf.mxu0
      %v1090 = vadd.f32 %v348, %v1089
      %v1091 = vpop.f32.mrf.mxu0
      %v1092 = vadd.f32 %v348, %v1091
      %1093 = vmatmul.bf16.gmra.mxu0 %v676
      %v1094 = vpop.f32.mrf.mxu0
      %v1095 = vadd.f32 %v348, %v1094
      %v1096 = vpop.f32.mrf.mxu0
      %v1097 = vadd.f32 %v348, %v1096
      %1098 = vmatmul.bf16.gmra.mxu0 %v681
      %v1099 = vpop.f32.mrf.mxu0
      %v1100 = vadd.f32 %v348, %v1099
      %v1101 = vpop.f32.mrf.mxu0
      %v1102 = vadd.f32 %v348, %v1101
      %1103 = vdwg.mxu0
      %1104 = vmatpush.bf16.msra.mxu0 %v909
      %1105 = vmatpush.bf16.msra.mxu0 %v908
      %1106 = vmatpush.bf16.msra.mxu0 %v907
      %1107 = vmatpush.bf16.msra.mxu0 %v906
      %1108 = vmatpush.bf16.msra.mxu0 %v905
      %1109 = vmatpush.bf16.msra.mxu0 %v904
      %1110 = vmatpush.bf16.msra.mxu0 %v903
      %1111 = vmatpush.bf16.msra.mxu0 %v902
      %1112 = vmatmul.bf16.gmra.mxu0 %v607
      %v1113 = vpop.f32.mrf.mxu0
      %v1114 = vadd.f32 %v1025, %v1113
      %v1115 = vpop.f32.mrf.mxu0
      %v1116 = vadd.f32 %v1027, %v1115
      %1117 = vmatmul.bf16.gmra.mxu0 %v612
      %v1118 = vpop.f32.mrf.mxu0
      %v1119 = vadd.f32 %v1030, %v1118
      %v1120 = vpop.f32.mrf.mxu0
      %v1121 = vadd.f32 %v1032, %v1120
      %1122 = vmatmul.bf16.gmra.mxu0 %v617
      %v1123 = vpop.f32.mrf.mxu0
      %v1124 = vadd.f32 %v1035, %v1123
      %v1125 = vpop.f32.mrf.mxu0
      %v1126 = vadd.f32 %v1037, %v1125
      %1127 = vmatmul.bf16.gmra.mxu0 %v622
      %v1128 = vpop.f32.mrf.mxu0
      %v1129 = vadd.f32 %v1040, %v1128
      %v1130 = vpop.f32.mrf.mxu0
      %v1131 = vadd.f32 %v1042, %v1130
      %1132 = vmatmul.bf16.gmra.mxu0 %v627
      %v1133 = vpop.f32.mrf.mxu0
      %v1134 = vadd.f32 %v1045, %v1133
      %v1135 = vpop.f32.mrf.mxu0
      %v1136 = vadd.f32 %v1047, %v1135
      %1137 = vmatmul.bf16.gmra.mxu0 %v632
      %v1138 = vpop.f32.mrf.mxu0
      %v1139 = vadd.f32 %v1050, %v1138
      %v1140 = vpop.f32.mrf.mxu0
      %v1141 = vadd.f32 %v1052, %v1140
      %1142 = vmatmul.bf16.gmra.mxu0 %v637
      %v1143 = vpop.f32.mrf.mxu0
      %v1144 = vadd.f32 %v1055, %v1143
      %v1145 = vpop.f32.mrf.mxu0
      %v1146 = vadd.f32 %v1057, %v1145
      %1147 = vmatmul.bf16.gmra.mxu0 %v642
      %v1148 = vpop.f32.mrf.mxu0
      %v1149 = vadd.f32 %v1060, %v1148
      %v1150 = vpop.f32.mrf.mxu0
      %v1151 = vadd.f32 %v1062, %v1150
      %1152 = vmatmul.bf16.gmra.mxu0 %v647
      %v1153 = vpop.f32.mrf.mxu0
      %v1154 = vadd.f32 %v1065, %v1153
      %v1155 = vpop.f32.mrf.mxu0
      %v1156 = vadd.f32 %v1067, %v1155
      %1157 = vmatmul.bf16.gmra.mxu0 %v652
      %v1158 = vpop.f32.mrf.mxu0
      %v1159 = vadd.f32 %v1070, %v1158
      %v1160 = vpop.f32.mrf.mxu0
      %v1161 = vadd.f32 %v1072, %v1160
      %1162 = vmatmul.bf16.gmra.mxu0 %v657
      %v1163 = vpop.f32.mrf.mxu0
      %v1164 = vadd.f32 %v1075, %v1163
      %v1165 = vpop.f32.mrf.mxu0
      %v1166 = vadd.f32 %v1077, %v1165
      %1167 = vmatmul.bf16.gmra.mxu0 %v662
      %v1168 = vpop.f32.mrf.mxu0
      %v1169 = vadd.f32 %v1080, %v1168
      %v1170 = vpop.f32.mrf.mxu0
      %v1171 = vadd.f32 %v1082, %v1170
      %1172 = vmatmul.bf16.gmra.mxu0 %v667
      %v1173 = vpop.f32.mrf.mxu0
      %v1174 = vadd.f32 %v1085, %v1173
      %v1175 = vpop.f32.mrf.mxu0
      %v1176 = vadd.f32 %v1087, %v1175
      %1177 = vmatmul.bf16.gmra.mxu0 %v672
      %v1178 = vpop.f32.mrf.mxu0
      %v1179 = vadd.f32 %v1090, %v1178
      %v1180 = vpop.f32.mrf.mxu0
      %v1181 = vadd.f32 %v1092, %v1180
      %1182 = vmatmul.bf16.gmra.mxu0 %v677
      %v1183 = vpop.f32.mrf.mxu0
      %v1184 = vadd.f32 %v1095, %v1183
      %v1185 = vpop.f32.mrf.mxu0
      %v1186 = vadd.f32 %v1097, %v1185
      %1187 = vmatmul.bf16.gmra.mxu0 %v682
      %v1188 = vpop.f32.mrf.mxu0
      %v1189 = vadd.f32 %v1100, %v1188
      %v1190 = vpop.f32.mrf.mxu0
      %v1191 = vadd.f32 %v1102, %v1190
      %1192 = vdwg.mxu0
      %1193 = vmatpush.bf16.msra.mxu0 %v917
      %1194 = vmatpush.bf16.msra.mxu0 %v916
      %1195 = vmatpush.bf16.msra.mxu0 %v915
      %1196 = vmatpush.bf16.msra.mxu0 %v914
      %1197 = vmatpush.bf16.msra.mxu0 %v913
      %1198 = vmatpush.bf16.msra.mxu0 %v912
      %1199 = vmatpush.bf16.msra.mxu0 %v911
      %1200 = vmatpush.bf16.msra.mxu0 %v910
      %1201 = vmatmul.bf16.gmra.mxu0 %v608
      %v1202 = vpop.f32.mrf.mxu0
      %v1203 = vadd.f32 %v1114, %v1202
      %v1204 = vpop.f32.mrf.mxu0
      %v1205 = vadd.f32 %v1116, %v1204
      %1206 = vmatmul.bf16.gmra.mxu0 %v613
      %v1207 = vpop.f32.mrf.mxu0
      %v1208 = vadd.f32 %v1119, %v1207
      %v1209 = vpop.f32.mrf.mxu0
      %v1210 = vadd.f32 %v1121, %v1209
      %1211 = vmatmul.bf16.gmra.mxu0 %v618
      %v1212 = vpop.f32.mrf.mxu0
      %v1213 = vadd.f32 %v1124, %v1212
      %v1214 = vpop.f32.mrf.mxu0
      %v1215 = vadd.f32 %v1126, %v1214
      %1216 = vmatmul.bf16.gmra.mxu0 %v623
      %v1217 = vpop.f32.mrf.mxu0
      %v1218 = vadd.f32 %v1129, %v1217
      %v1219 = vpop.f32.mrf.mxu0
      %v1220 = vadd.f32 %v1131, %v1219
      %1221 = vmatmul.bf16.gmra.mxu0 %v628
      %v1222 = vpop.f32.mrf.mxu0
      %v1223 = vadd.f32 %v1134, %v1222
      %v1224 = vpop.f32.mrf.mxu0
      %v1225 = vadd.f32 %v1136, %v1224
      %1226 = vmatmul.bf16.gmra.mxu0 %v633
      %v1227 = vpop.f32.mrf.mxu0
      %v1228 = vadd.f32 %v1139, %v1227
      %v1229 = vpop.f32.mrf.mxu0
      %v1230 = vadd.f32 %v1141, %v1229
      %1231 = vmatmul.bf16.gmra.mxu0 %v638
      %v1232 = vpop.f32.mrf.mxu0
      %v1233 = vadd.f32 %v1144, %v1232
      %v1234 = vpop.f32.mrf.mxu0
      %v1235 = vadd.f32 %v1146, %v1234
      %1236 = vmatmul.bf16.gmra.mxu0 %v643
      %v1237 = vpop.f32.mrf.mxu0
      %v1238 = vadd.f32 %v1149, %v1237
      %v1239 = vpop.f32.mrf.mxu0
      %v1240 = vadd.f32 %v1151, %v1239
      %1241 = vmatmul.bf16.gmra.mxu0 %v648
      %v1242 = vpop.f32.mrf.mxu0
      %v1243 = vadd.f32 %v1154, %v1242
      %v1244 = vpop.f32.mrf.mxu0
      %v1245 = vadd.f32 %v1156, %v1244
      %1246 = vmatmul.bf16.gmra.mxu0 %v653
      %v1247 = vpop.f32.mrf.mxu0
      %v1248 = vadd.f32 %v1159, %v1247
      %v1249 = vpop.f32.mrf.mxu0
      %v1250 = vadd.f32 %v1161, %v1249
      %1251 = vmatmul.bf16.gmra.mxu0 %v658
      %v1252 = vpop.f32.mrf.mxu0
      %v1253 = vadd.f32 %v1164, %v1252
      %v1254 = vpop.f32.mrf.mxu0
      %v1255 = vadd.f32 %v1166, %v1254
      %1256 = vmatmul.bf16.gmra.mxu0 %v663
      %v1257 = vpop.f32.mrf.mxu0
      %v1258 = vadd.f32 %v1169, %v1257
      %v1259 = vpop.f32.mrf.mxu0
      %v1260 = vadd.f32 %v1171, %v1259
      %1261 = vmatmul.bf16.gmra.mxu0 %v668
      %v1262 = vpop.f32.mrf.mxu0
      %v1263 = vadd.f32 %v1174, %v1262
      %v1264 = vpop.f32.mrf.mxu0
      %v1265 = vadd.f32 %v1176, %v1264
      %1266 = vmatmul.bf16.gmra.mxu0 %v673
      %v1267 = vpop.f32.mrf.mxu0
      %v1268 = vadd.f32 %v1179, %v1267
      %v1269 = vpop.f32.mrf.mxu0
      %v1270 = vadd.f32 %v1181, %v1269
      %1271 = vmatmul.bf16.gmra.mxu0 %v678
      %v1272 = vpop.f32.mrf.mxu0
      %v1273 = vadd.f32 %v1184, %v1272
      %v1274 = vpop.f32.mrf.mxu0
      %v1275 = vadd.f32 %v1186, %v1274
      %1276 = vmatmul.bf16.gmra.mxu0 %v683
      %v1277 = vpop.f32.mrf.mxu0
      %v1278 = vadd.f32 %v1189, %v1277
      %v1279 = vpop.f32.mrf.mxu0
      %v1280 = vadd.f32 %v1191, %v1279
      %1281 = vdwg.mxu0
      %1282 = vmatpush.bf16.msra.mxu0 %v925
      %1283 = vmatpush.bf16.msra.mxu0 %v924
      %1284 = vmatpush.bf16.msra.mxu0 %v923
      %1285 = vmatpush.bf16.msra.mxu0 %v922
      %1286 = vmatpush.bf16.msra.mxu0 %v921
      %1287 = vmatpush.bf16.msra.mxu0 %v920
      %1288 = vmatpush.bf16.msra.mxu0 %v919
      %1289 = vmatpush.bf16.msra.mxu0 %v918
      %1290 = vmatmul.bf16.gmra.mxu0 %v609
      %v1291 = vpop.f32.mrf.mxu0
      %v1292 = vadd.f32 %v1203, %v1291
      %v1293 = vpop.f32.mrf.mxu0
      %v1294 = vadd.f32 %v1205, %v1293
      %1295 = vmatmul.bf16.gmra.mxu0 %v614
      %v1296 = vpop.f32.mrf.mxu0
      %v1297 = vadd.f32 %v1208, %v1296
      %v1298 = vpop.f32.mrf.mxu0
      %v1299 = vadd.f32 %v1210, %v1298
      %1300 = vmatmul.bf16.gmra.mxu0 %v619
      %v1301 = vpop.f32.mrf.mxu0
      %v1302 = vadd.f32 %v1213, %v1301
      %v1303 = vpop.f32.mrf.mxu0
      %v1304 = vadd.f32 %v1215, %v1303
      %1305 = vmatmul.bf16.gmra.mxu0 %v624
      %v1306 = vpop.f32.mrf.mxu0
      %v1307 = vadd.f32 %v1218, %v1306
      %v1308 = vpop.f32.mrf.mxu0
      %v1309 = vadd.f32 %v1220, %v1308
      %1310 = vmatmul.bf16.gmra.mxu0 %v629
      %v1311 = vpop.f32.mrf.mxu0
      %v1312 = vadd.f32 %v1223, %v1311
      %v1313 = vpop.f32.mrf.mxu0
      %v1314 = vadd.f32 %v1225, %v1313
      %1315 = vmatmul.bf16.gmra.mxu0 %v634
      %v1316 = vpop.f32.mrf.mxu0
      %v1317 = vadd.f32 %v1228, %v1316
      %v1318 = vpop.f32.mrf.mxu0
      %v1319 = vadd.f32 %v1230, %v1318
      %1320 = vmatmul.bf16.gmra.mxu0 %v639
      %v1321 = vpop.f32.mrf.mxu0
      %v1322 = vadd.f32 %v1233, %v1321
      %v1323 = vpop.f32.mrf.mxu0
      %v1324 = vadd.f32 %v1235, %v1323
      %1325 = vmatmul.bf16.gmra.mxu0 %v644
      %v1326 = vpop.f32.mrf.mxu0
      %v1327 = vadd.f32 %v1238, %v1326
      %v1328 = vpop.f32.mrf.mxu0
      %v1329 = vadd.f32 %v1240, %v1328
      %1330 = vmatmul.bf16.gmra.mxu0 %v649
      %v1331 = vpop.f32.mrf.mxu0
      %v1332 = vadd.f32 %v1243, %v1331
      %v1333 = vpop.f32.mrf.mxu0
      %v1334 = vadd.f32 %v1245, %v1333
      %1335 = vmatmul.bf16.gmra.mxu0 %v654
      %v1336 = vpop.f32.mrf.mxu0
      %v1337 = vadd.f32 %v1248, %v1336
      %v1338 = vpop.f32.mrf.mxu0
      %v1339 = vadd.f32 %v1250, %v1338
      %1340 = vmatmul.bf16.gmra.mxu0 %v659
      %v1341 = vpop.f32.mrf.mxu0
      %v1342 = vadd.f32 %v1253, %v1341
      %v1343 = vpop.f32.mrf.mxu0
      %v1344 = vadd.f32 %v1255, %v1343
      %1345 = vmatmul.bf16.gmra.mxu0 %v664
      %v1346 = vpop.f32.mrf.mxu0
      %v1347 = vadd.f32 %v1258, %v1346
      %v1348 = vpop.f32.mrf.mxu0
      %v1349 = vadd.f32 %v1260, %v1348
      %1350 = vmatmul.bf16.gmra.mxu0 %v669
      %v1351 = vpop.f32.mrf.mxu0
      %v1352 = vadd.f32 %v1263, %v1351
      %v1353 = vpop.f32.mrf.mxu0
      %v1354 = vadd.f32 %v1265, %v1353
      %1355 = vmatmul.bf16.gmra.mxu0 %v674
      %v1356 = vpop.f32.mrf.mxu0
      %v1357 = vadd.f32 %v1268, %v1356
      %v1358 = vpop.f32.mrf.mxu0
      %v1359 = vadd.f32 %v1270, %v1358
      %1360 = vmatmul.bf16.gmra.mxu0 %v679
      %v1361 = vpop.f32.mrf.mxu0
      %v1362 = vadd.f32 %v1273, %v1361
      %v1363 = vpop.f32.mrf.mxu0
      %v1364 = vadd.f32 %v1275, %v1363
      %1365 = vmatmul.bf16.gmra.mxu0 %v684
      %v1366 = vpop.f32.mrf.mxu0
      %v1367 = vadd.f32 %v1278, %v1366
      %v1368 = vpop.f32.mrf.mxu0
      %v1369 = vadd.f32 %v1280, %v1368
      %1370 = vdwg.mxu0
      %1371 = vmatpush.bf16.msra.mxu0 0
      %1372 = vmatpush.bf16.msra.mxu0 0
      %1373 = vmatpush.bf16.msra.mxu0 0
      %1374 = vmatpush.bf16.msra.mxu0 0
      %1375 = vmatpush.bf16.msra.mxu0 %v929
      %1376 = vmatpush.bf16.msra.mxu0 %v928
      %1377 = vmatpush.bf16.msra.mxu0 %v927
      %1378 = vmatpush.bf16.msra.mxu0 %v926
      %1379 = vmatmul.bf16.gmra.mxu0 %v968
      %v1380 = vpop.f32.mrf.mxu0
      %v1381 = vadd.f32 %v1292, %v1380
      %v1382 = vpop.f32.mrf.mxu0
      %v1383 = vadd.f32 %v1294, %v1382
      %1384 = vmatmul.bf16.gmra.mxu0 %v971
      %v1385 = vpop.f32.mrf.mxu0
      %v1386 = vadd.f32 %v1297, %v1385
      %v1387 = vpop.f32.mrf.mxu0
      %v1388 = vadd.f32 %v1299, %v1387
      %1389 = vmatmul.bf16.gmra.mxu0 %v974
      %v1390 = vpop.f32.mrf.mxu0
      %v1391 = vadd.f32 %v1302, %v1390
      %v1392 = vpop.f32.mrf.mxu0
      %v1393 = vadd.f32 %v1304, %v1392
      %1394 = vmatmul.bf16.gmra.mxu0 %v977
      %v1395 = vpop.f32.mrf.mxu0
      %v1396 = vadd.f32 %v1307, %v1395
      %v1397 = vpop.f32.mrf.mxu0
      %v1398 = vadd.f32 %v1309, %v1397
      %1399 = vmatmul.bf16.gmra.mxu0 %v980
      %v1400 = vpop.f32.mrf.mxu0
      %v1401 = vadd.f32 %v1312, %v1400
      %v1402 = vpop.f32.mrf.mxu0
      %v1403 = vadd.f32 %v1314, %v1402
      %1404 = vmatmul.bf16.gmra.mxu0 %v983
      %v1405 = vpop.f32.mrf.mxu0
      %v1406 = vadd.f32 %v1317, %v1405
      %v1407 = vpop.f32.mrf.mxu0
      %v1408 = vadd.f32 %v1319, %v1407
      %1409 = vmatmul.bf16.gmra.mxu0 %v986
      %v1410 = vpop.f32.mrf.mxu0
      %v1411 = vadd.f32 %v1322, %v1410
      %v1412 = vpop.f32.mrf.mxu0
      %v1413 = vadd.f32 %v1324, %v1412
      %1414 = vmatmul.bf16.gmra.mxu0 %v989
      %v1415 = vpop.f32.mrf.mxu0
      %v1416 = vadd.f32 %v1327, %v1415
      %v1417 = vpop.f32.mrf.mxu0
      %v1418 = vadd.f32 %v1329, %v1417
      %1419 = vmatmul.bf16.gmra.mxu0 %v992
      %v1420 = vpop.f32.mrf.mxu0
      %v1421 = vadd.f32 %v1332, %v1420
      %v1422 = vpop.f32.mrf.mxu0
      %v1423 = vadd.f32 %v1334, %v1422
      %1424 = vmatmul.bf16.gmra.mxu0 %v995
      %v1425 = vpop.f32.mrf.mxu0
      %v1426 = vadd.f32 %v1337, %v1425
      %v1427 = vpop.f32.mrf.mxu0
      %v1428 = vadd.f32 %v1339, %v1427
      %1429 = vmatmul.bf16.gmra.mxu0 %v998
      %v1430 = vpop.f32.mrf.mxu0
      %v1431 = vadd.f32 %v1342, %v1430
      %v1432 = vpop.f32.mrf.mxu0
      %v1433 = vadd.f32 %v1344, %v1432
      %1434 = vmatmul.bf16.gmra.mxu0 %v1001
      %v1435 = vpop.f32.mrf.mxu0
      %v1436 = vadd.f32 %v1347, %v1435
      %v1437 = vpop.f32.mrf.mxu0
      %v1438 = vadd.f32 %v1349, %v1437
      %1439 = vmatmul.bf16.gmra.mxu0 %v1004
      %v1440 = vpop.f32.mrf.mxu0
      %v1441 = vadd.f32 %v1352, %v1440
      %v1442 = vpop.f32.mrf.mxu0
      %v1443 = vadd.f32 %v1354, %v1442
      %1444 = vmatmul.bf16.gmra.mxu0 %v1007
      %v1445 = vpop.f32.mrf.mxu0
      %v1446 = vadd.f32 %v1357, %v1445
      %v1447 = vpop.f32.mrf.mxu0
      %v1448 = vadd.f32 %v1359, %v1447
      %1449 = vmatmul.bf16.gmra.mxu0 %v1010
      %v1450 = vpop.f32.mrf.mxu0
      %v1451 = vadd.f32 %v1362, %v1450
      %v1452 = vpop.f32.mrf.mxu0
      %v1453 = vadd.f32 %v1364, %v1452
      %1454 = vmatmul.bf16.gmra.mxu0 %v1013
      %v1455 = vpop.f32.mrf.mxu0
      %v1456 = vadd.f32 %v1367, %v1455
      %v1457 = vpop.f32.mrf.mxu0
      %v1458 = vadd.f32 %v1369, %v1457
      %1459 = vdwg.mxu0
      %v1460 = vmax.f32 %v1381, 0.0
      %v1461 = vmax.f32 %v1383, 0.0
      %v1462 = vmax.f32 %v1386, 0.0
      %v1463 = vmax.f32 %v1388, 0.0
      %v1464 = vmax.f32 %v1391, 0.0
      %v1465 = vmax.f32 %v1393, 0.0
      %v1466 = vmax.f32 %v1396, 0.0
      %v1467 = vmax.f32 %v1398, 0.0
      %v1468 = vmax.f32 %v1401, 0.0
      %v1469 = vmax.f32 %v1403, 0.0
      %v1470 = vmax.f32 %v1406, 0.0
      %v1471 = vmax.f32 %v1408, 0.0
      %v1472 = vmax.f32 %v1411, 0.0
      %v1473 = vmax.f32 %v1413, 0.0
      %v1474 = vmax.f32 %v1416, 0.0
      %v1475 = vmax.f32 %v1418, 0.0
      %v1476 = vmax.f32 %v1421, 0.0
      %v1477 = vmax.f32 %v1423, 0.0
      %v1478 = vmax.f32 %v1426, 0.0
      %v1479 = vmax.f32 %v1428, 0.0
      %v1480 = vmax.f32 %v1431, 0.0
      %v1481 = vmax.f32 %v1433, 0.0
      %v1482 = vmax.f32 %v1436, 0.0
      %v1483 = vmax.f32 %v1438, 0.0
      %v1484 = vmax.f32 %v1441, 0.0
      %v1485 = vmax.f32 %v1443, 0.0
      %v1486 = vmax.f32 %v1446, 0.0
      %v1487 = vmax.f32 %v1448, 0.0
      %v1488 = vmax.f32 %v1451, 0.0
      %v1489 = vmax.f32 %v1453, 0.0
      %v1490 = vmax.f32 %v1456, 0.0
      %v1491 = vmax.f32 %v1458, 0.0
      %1492 = vst [vmem:[%s175] sm:$0xff] %v1460
      %1493 = vst [vmem:[%s175 + $0x8] sm:$0xff] %v1461
      %1494 = vst [vmem:[%s175 + $0x10] sm:$0xff] %v1462
      %1495 = vst [vmem:[%s175 + $0x18] sm:$0xff] %v1463
      %1496 = vst [vmem:[%s175 + $0x20] sm:$0xff] %v1464
      %1497 = vst [vmem:[%s175 + $0x28] sm:$0xff] %v1465
      %1498 = vst [vmem:[%s175 + $0x30] sm:$0xff] %v1466
      %1499 = vst [vmem:[%s175 + $0x38] sm:$0xff] %v1467
      %1500 = vst [vmem:[%s175 + $0x40] sm:$0xff] %v1468
      %1501 = vst [vmem:[%s175 + $0x48] sm:$0xff] %v1469
      %1502 = vst [vmem:[%s175 + $0x50] sm:$0xff] %v1470
      %1503 = vst [vmem:[%s175 + $0x58] sm:$0xff] %v1471
      %1504 = vst [vmem:[%s175 + $0x60] sm:$0xff] %v1472
      %1505 = vst [vmem:[%s175 + $0x68] sm:$0xff] %v1473
      %1506 = vst [vmem:[%s175 + $0x70] sm:$0xff] %v1474
      %1507 = vst [vmem:[%s175 + $0x78] sm:$0xff] %v1475
      %1508 = vst [vmem:[%s175 + $0x80] sm:$0xff] %v1476
      %1509 = vst [vmem:[%s175 + $0x88] sm:$0xff] %v1477
      %1510 = vst [vmem:[%s175 + $0x90] sm:$0xff] %v1478
      %1511 = vst [vmem:[%s175 + $0x98] sm:$0xff] %v1479
      %1512 = vst [vmem:[%s175 + $0xa0] sm:$0xff] %v1480
      %1513 = vst [vmem:[%s175 + $0xa8] sm:$0xff] %v1481
      %1514 = vst [vmem:[%s175 + $0xb0] sm:$0xff] %v1482
      %1515 = vst [vmem:[%s175 + $0xb8] sm:$0xff] %v1483
      %1516 = vst [vmem:[%s175 + $0xc0] sm:$0xff] %v1484
      %1517 = vst [vmem:[%s175 + $0xc8] sm:$0xff] %v1485
      %1518 = vst [vmem:[%s175 + $0xd0] sm:$0xff] %v1486
      %1519 = vst [vmem:[%s175 + $0xd8] sm:$0xff] %v1487
      %1520 = vst [vmem:[%s175 + $0xe0] sm:$0xff] %v1488
      %1521 = vst [vmem:[%s175 + $0xe8] sm:$0xff] %v1489
      %1522 = vst [vmem:[%s175 + $0xf0] sm:$0xff] %v1490
      %1523 = vst [vmem:[%s175 + $0xf8] sm:$0xff] %v1491
      %s1524 = smul.u32 32, %s14
      %p1525 = scmp.lt.s32.totalorder %s1524, 63
      %s1526 = scalar_select %p1525, %s1524, 63
      %s1527 = smul.addr %s1526, 8
      %s1528 = scalar_lea.vmem %s3, %s1527
      // Predicated region
      $region33: #{curve_estimation_forward.13} parent=31 // pred_check
        %p1529 = pneg %p100
      $region34: #{curve_estimation_forward.13} parent=31 // pred_check_branch
        %1531 = sbr.rel (%p1529) target = $region36
      $region35: #{curve_estimation_forward.13} parent=31 // pred_region
        %s1532 = smul.u32 32, %s14
      $region36: #{curve_estimation_forward.13} parent=31 // pred_fallthru
        _
    $region32: #{curve_estimation_forward.13} parent=5 // pred_fallthru
      _
    %p1533 = scmp.le.s32.totalorder 2, %s9
    // Predicated region
    $region37: #{curve_estimation_forward.13} parent=5 // pred_check
      %p1534 = pneg %p1533
    $region38: #{curve_estimation_forward.13} parent=5 // pred_check_branch
      %1536 = sbr.rel (%p1534) target = $region40
    $region39: #{curve_estimation_forward.13} parent=5 // pred_region
      %s1537 = ssub.s32 %s9, 2
      // Predicated region
      $region41: #{curve_estimation_forward.13} parent=39 // pred_check
        %p1538 = pneg %p106
      $region42: #{curve_estimation_forward.13} parent=39 // pred_check_branch
        %1540 = sbr.rel (%p1538) target = $region44
      $region43: #{curve_estimation_forward.13} parent=39 // pred_region
        %s1541 = smul.u32 32, %s15
        %p1542 = scmp.lt.s32.totalorder %s1541, 63
        %s1543 = scalar_select %p1542, %s1541, 63
        %s1544 = smul.addr %s1543, 8
        %s1545 = scalar_lea.vmem %s3, %s1544
      $region44: #{curve_estimation_forward.13} parent=39 // pred_fallthru
        _
    $region40: #{curve_estimation_forward.13} parent=5 // pred_fallthru
      _
  $region6: #{curve_estimation_forward.13} parent=0 // loop_footer
    %s13 = sadd.s32 1, %s9
  $region7: #{curve_estimation_forward.13} parent=0 // loop_footer_branch
    %8 = sbr.rel target = $region3
  $region8: #{curve_estimation_forward.13} parent=0 // loop_exit
    _

</llo_original>
